<compile_context>
chip_gen: v7x
topology: tpu7x:2x2x1
jax: 0.10.0
libtpu: 0.0.40
codegen_flags: <defaults>
</compile_context>

<pallas_src>
import functools

import jax
import jax.numpy as jnp
from jax import lax
from jax.experimental import pallas as pl
from jax.experimental.pallas import tpu as pltpu

DEGREE = 4
LN_EPS = 1e-5                    # PyTorch nn.LayerNorm default
IN_DIM = 28 * 28                 # 784 (contracted directly, no padding)
HID = 256
OUT_DIM = 10
OUT_PAD = 128                    # lane-dense final output, sliced to 10 outside
MATMUL_DTYPE = jnp.bfloat16      # MXU operand dtype (f32 accumulation kept)


# ---------------------------------------------------------------------------
# Kernel
# ---------------------------------------------------------------------------
def _cheby_layer(x, w_ref, b_ref, degree):
  """One ChebyKAN layer on a VMEM-resident activation tile.

  x:     (B, I)          float32 (pre-tanh)
  w_ref: (degree, I, O)  packed T_1..T_degree coefficients (MATMUL_DTYPE)
  b_ref: (1, O)          float32 bias = column-sum of the T_0 coefficients
  """
  wdt = w_ref.dtype
  t1 = jnp.tanh(x)                                     # T_1, f32 elementwise
  # Per-term matmuls accumulated in f32: avoids materializing a (B, degree*I)
  # concat buffer; static leading-axis slices of the weight ref are free.
  acc = b_ref[...] + jnp.dot(t1.astype(wdt), w_ref[0],
                             preferred_element_type=jnp.float32)
  if degree >= 2:
    t_prev, t_curr = t1, 2.0 * t1 * t1 - 1.0           # T_1, T_2 (direct form)
    acc += jnp.dot(t_curr.astype(wdt), w_ref[1],
                   preferred_element_type=jnp.float32)
    for k in range(2, degree):
      t_prev, t_curr = t_curr, 2.0 * t1 * t_curr - t_prev   # T_{k+1}
      acc += jnp.dot(t_curr.astype(wdt), w_ref[k],
                     preferred_element_type=jnp.float32)
  return acc


def _layer_norm(x, g_ref, b_ref):
  # One-pass statistics: sum(x) and sum(x*x) reductions are independent.
  inv_n = 1.0 / x.shape[-1]
  mean = jnp.sum(x, axis=-1, keepdims=True) * inv_n
  mean_sq = jnp.sum(x * x, axis=-1, keepdims=True) * inv_n
  var = mean_sq - mean * mean
  return (x - mean) * lax.rsqrt(var + LN_EPS) * g_ref[...] + b_ref[...]


def _chebynet_kernel(x_ref,
                     w1_ref, b1_ref, g1_ref, be1_ref,
                     w2_ref, b2_ref, g2_ref, be2_ref,
                     w3_ref, b3_ref,
                     o_ref, *, degree):
  h = x_ref[...].astype(jnp.float32)               # (TILE_B, 784)
  h = _cheby_layer(h, w1_ref, b1_ref, degree)      # (TILE_B, 256)
  h = _layer_norm(h, g1_ref, be1_ref)
  h = _cheby_layer(h, w2_ref, b2_ref, degree)      # (TILE_B, 256)
  h = _layer_norm(h, g2_ref, be2_ref)
  h = _cheby_layer(h, w3_ref, b3_ref, degree)      # (TILE_B, 128) padded
  o_ref[...] = h.astype(o_ref.dtype)


# ---------------------------------------------------------------------------
# Parameter packing (done once, outside the forward pass)
# ---------------------------------------------------------------------------
def pack_cheby_params(coeffs, out_pad=None, dtype=MATMUL_DTYPE):
  """Pack torch-layout Chebyshev coeffs (I, O, degree+1) into
  (W (degree, I, out_pad) in `dtype`, bias (1, out_pad) f32).

  W[k-1, i, o] = coeffs[i, o, k] for k = 1..degree (T_0 folded into the bias
  since T_0 == 1). Padding output columns are zero, so results are exact
  after slicing."""
  i_dim, o_dim, d1 = coeffs.shape
  degree = d1 - 1
  assert degree >= 1
  out_pad = out_pad or o_dim
  c = coeffs.astype(jnp.float32)
  c = jnp.pad(c, ((0, 0), (0, out_pad - o_dim), (0, 0)))
  bias = jnp.sum(c[:, :, 0], axis=0).reshape(1, out_pad)          # T_0 == 1
  w = jnp.transpose(c[:, :, 1:], (2, 0, 1))                       # (d, I, O)
  return w.astype(dtype), bias.astype(jnp.float32)


def init_params(key):
  """ChebyKAN init: normal(0, 1/(input_dim*(degree+1))); LN weight=1, bias=0.
  Parameters are stored pre-packed so the forward pass does no relayout."""
  k1, k2, k3 = jax.random.split(key, 3)
  d1 = DEGREE + 1

  def cheby(k, i, o):
    std = 1.0 / (i * d1)
    return std * jax.random.normal(k, (i, o, d1), dtype=jnp.float32)

  w1, b1 = pack_cheby_params(cheby(k1, IN_DIM, HID))
  w2, b2 = pack_cheby_params(cheby(k2, HID, HID))
  w3, b3 = pack_cheby_params(cheby(k3, HID, OUT_DIM), out_pad=OUT_PAD)
  return {
      "w1": w1, "b1": b1,
      "ln1_w": jnp.ones((1, HID), jnp.float32),
      "ln1_b": jnp.zeros((1, HID), jnp.float32),
      "w2": w2, "b2": b2,
      "ln2_w": jnp.ones((1, HID), jnp.float32),
      "ln2_b": jnp.zeros((1, HID), jnp.float32),
      "w3": w3, "b3": b3,
  }


# ---------------------------------------------------------------------------
# Forward pass
# ---------------------------------------------------------------------------
def _choose_tile_b(batch):
  # Large tiles amortize the ~0.35 us per-grid-step overhead; with per-term
  # matmuls the live set stays small enough for 1024 on v7x's 64 MiB VMEM.
  for t in (1024, 512, 256, 128):
    if batch % t == 0:
      return t
  # Small / ragged batches: split into two blocks when possible so the
  # "parallel" batch axis can shard across both v7x TensorCores.
  if batch % 16 == 0:
    return batch // 2
  return batch  # tiny batch (e.g. demo): single block equal to the batch dim


def _vmem_limit_bytes(tile_b):
  # Double-buffered activation I/O tiles + pipeline-buffered bf16 weights +
  # headroom for the in-kernel f32 temporaries (tanh / recurrence / acc).
  io = 2 * tile_b * (IN_DIM + OUT_PAD) * 4
  wts = 2 * 2 * DEGREE * (IN_DIM * HID + HID * HID + HID * OUT_PAD)
  scratch = (6 * IN_DIM + 6 * HID) * tile_b * 4
  return min(io + wts + scratch + (6 << 20), 56 * 1024 * 1024)


@jax.jit
def chebynet_forward(x, params):
  batch = x.shape[0]
  x = x.reshape(batch, -1).astype(jnp.float32)
  assert x.shape[1] == IN_DIM

  tile_b = _choose_tile_b(batch)
  grid = (batch // tile_b,)
  degree = DEGREE

  act_spec = pl.BlockSpec((tile_b, IN_DIM), lambda b: (b, 0))
  out_spec = pl.BlockSpec((tile_b, OUT_PAD), lambda b: (b, 0))

  def const2(shape):  # 2-D params: full array, VMEM-resident across steps
    return pl.BlockSpec(shape, lambda b: (0, 0))

  def const3(shape):  # 3-D weight stacks: full array, VMEM-resident
    return pl.BlockSpec(shape, lambda b: (0, 0, 0))

  kern = functools.partial(_chebynet_kernel, degree=degree)
  out = pl.pallas_call(
      kern,
      out_shape=jax.ShapeDtypeStruct((batch, OUT_PAD), jnp.float32),
      grid=grid,
      in_specs=[
          act_spec,
          const3((degree, IN_DIM, HID)), const2((1, HID)),   # w1, b1
          const2((1, HID)), const2((1, HID)),                # ln1 gamma, beta
          const3((degree, HID, HID)), const2((1, HID)),      # w2, b2
          const2((1, HID)), const2((1, HID)),                # ln2 gamma, beta
          const3((degree, HID, OUT_PAD)), const2((1, OUT_PAD)),  # w3, b3
      ],
      out_specs=out_spec,
      compiler_params=pltpu.CompilerParams(
          dimension_semantics=("parallel",),
          vmem_limit_bytes=_vmem_limit_bytes(tile_b),
      ),
  )(x,
    params["w1"], params["b1"], params["ln1_w"], params["ln1_b"],
    params["w2"], params["b2"], params["ln2_w"], params["ln2_b"],
    params["w3"], params["b3"])

  return out[:, :OUT_DIM]


if __name__ == "__main__":
  key = jax.random.PRNGKey(0)
  kx, kp = jax.random.split(key)

  # Small batch; spatial dims are fixed by the module (28x28 -> 784 features).
  x = jax.random.normal(kx, (2, 1, 28, 28), dtype=jnp.float32)
  params = init_params(kp)

  out = chebynet_forward(x, params)
  out = jax.block_until_ready(out)

  assert out.shape == (2, OUT_DIM), out.shape
  assert out.dtype == jnp.float32
  assert bool(jnp.all(jnp.isfinite(out)))
  print("KERNEL_OK")
</pallas_src>

<mosaic_0001>
module attributes {stable_mosaic.version = 11 : i64} {
  func.func @_chebynet_kernel(%arg0: i32, %arg1: memref<2x784xf32, #tpu.memory_space<vmem>>, %arg2: memref<4x784x256xbf16, #tpu.memory_space<vmem>>, %arg3: memref<1x256xf32, #tpu.memory_space<vmem>>, %arg4: memref<1x256xf32, #tpu.memory_space<vmem>>, %arg5: memref<1x256xf32, #tpu.memory_space<vmem>>, %arg6: memref<4x256x256xbf16, #tpu.memory_space<vmem>>, %arg7: memref<1x256xf32, #tpu.memory_space<vmem>>, %arg8: memref<1x256xf32, #tpu.memory_space<vmem>>, %arg9: memref<1x256xf32, #tpu.memory_space<vmem>>, %arg10: memref<4x256x128xbf16, #tpu.memory_space<vmem>>, %arg11: memref<1x128xf32, #tpu.memory_space<vmem>>, %arg12: memref<2x128xf32, #tpu.memory_space<vmem>>) attributes {dimension_semantics = [#tpu.dimension_semantics<parallel>], iteration_bounds = array<i64: 1>, scalar_prefetch = 0 : i64, scratch_operands = 0 : i64, tpu.core_type = #tpu.core_type<tc>, window_params = [{transform_indices = @transform_0, window_bounds = array<i64: 2, 784>}, {pipeline_mode = #tpu.pipeline_mode<synchronous>, transform_indices = @transform_1, window_bounds = array<i64: 4, 784, 256>}, {pipeline_mode = #tpu.pipeline_mode<synchronous>, transform_indices = @transform_2, window_bounds = array<i64: 1, 256>}, {pipeline_mode = #tpu.pipeline_mode<synchronous>, transform_indices = @transform_3, window_bounds = array<i64: 1, 256>}, {pipeline_mode = #tpu.pipeline_mode<synchronous>, transform_indices = @transform_4, window_bounds = array<i64: 1, 256>}, {pipeline_mode = #tpu.pipeline_mode<synchronous>, transform_indices = @transform_5, window_bounds = array<i64: 4, 256, 256>}, {pipeline_mode = #tpu.pipeline_mode<synchronous>, transform_indices = @transform_6, window_bounds = array<i64: 1, 256>}, {pipeline_mode = #tpu.pipeline_mode<synchronous>, transform_indices = @transform_7, window_bounds = array<i64: 1, 256>}, {pipeline_mode = #tpu.pipeline_mode<synchronous>, transform_indices = @transform_8, window_bounds = array<i64: 1, 256>}, {pipeline_mode = #tpu.pipeline_mode<synchronous>, transform_indices = @transform_9, window_bounds = array<i64: 4, 256, 128>}, {pipeline_mode = #tpu.pipeline_mode<synchronous>, transform_indices = @transform_10, window_bounds = array<i64: 1, 128>}, {transform_indices = @transform_11, window_bounds = array<i64: 2, 128>}]} {
    %c0 = arith.constant 0 : index
    %c0_0 = arith.constant 0 : index
    %0 = vector.load %arg1[%c0, %c0_0] : memref<2x784xf32, #tpu.memory_space<vmem>>, vector<2x784xf32>
    %1 = math.tanh %0 : vector<2x784xf32>
    %c0_1 = arith.constant 0 : index
    %c0_2 = arith.constant 0 : index
    %2 = vector.load %arg3[%c0_1, %c0_2] : memref<1x256xf32, #tpu.memory_space<vmem>>, vector<1x256xf32>
    %3 = arith.truncf %1 : vector<2x784xf32> to vector<2x784xbf16>
    %c0_3 = arith.constant 0 : index
    %c0_4 = arith.constant 0 : index
    %c0_5 = arith.constant 0 : index
    %4 = vector.load %arg2[%c0_3, %c0_4, %c0_5] : memref<4x784x256xbf16, #tpu.memory_space<vmem>>, vector<1x784x256xbf16>
    %5 = vector.shape_cast %4 : vector<1x784x256xbf16> to vector<784x256xbf16>
    %cst = arith.constant dense<0.000000e+00> : vector<2x256xf32>
    %6 = tpu.matmul %3, %5, %cst {dimension_numbers = #tpu.dot_dimension_numbers<[1], [0], [0], [1], [0, 0, 1, 1], [], []>} : vector<2x784xbf16>, vector<784x256xbf16>, vector<2x256xf32> -> vector<2x256xf32>
    %7 = vector.broadcast %2 : vector<1x256xf32> to vector<2x256xf32>
    %8 = arith.addf %7, %6 : vector<2x256xf32>
    %cst_6 = arith.constant 2.000000e+00 : f32
    %9 = vector.broadcast %cst_6 : f32 to vector<2x784xf32>
    %10 = arith.mulf %9, %1 : vector<2x784xf32>
    %11 = arith.mulf %10, %1 : vector<2x784xf32>
    %cst_7 = arith.constant 1.000000e+00 : f32
    %12 = vector.broadcast %cst_7 : f32 to vector<2x784xf32>
    %13 = arith.subf %11, %12 : vector<2x784xf32>
    %14 = arith.truncf %13 : vector<2x784xf32> to vector<2x784xbf16>
    %c1 = arith.constant 1 : index
    %c0_8 = arith.constant 0 : index
    %c0_9 = arith.constant 0 : index
    %15 = vector.load %arg2[%c1, %c0_8, %c0_9] : memref<4x784x256xbf16, #tpu.memory_space<vmem>>, vector<1x784x256xbf16>
    %16 = vector.shape_cast %15 : vector<1x784x256xbf16> to vector<784x256xbf16>
    %cst_10 = arith.constant dense<0.000000e+00> : vector<2x256xf32>
    %17 = tpu.matmul %14, %16, %cst_10 {dimension_numbers = #tpu.dot_dimension_numbers<[1], [0], [0], [1], [0, 0, 1, 1], [], []>} : vector<2x784xbf16>, vector<784x256xbf16>, vector<2x256xf32> -> vector<2x256xf32>
    %18 = arith.addf %8, %17 : vector<2x256xf32>
    %cst_11 = arith.constant 2.000000e+00 : f32
    %19 = vector.broadcast %cst_11 : f32 to vector<2x784xf32>
    %20 = arith.mulf %19, %1 : vector<2x784xf32>
    %21 = arith.mulf %20, %13 : vector<2x784xf32>
    %22 = arith.subf %21, %1 : vector<2x784xf32>
    %23 = arith.truncf %22 : vector<2x784xf32> to vector<2x784xbf16>
    %c2 = arith.constant 2 : index
    %c0_12 = arith.constant 0 : index
    %c0_13 = arith.constant 0 : index
    %24 = vector.load %arg2[%c2, %c0_12, %c0_13] : memref<4x784x256xbf16, #tpu.memory_space<vmem>>, vector<1x784x256xbf16>
    %25 = vector.shape_cast %24 : vector<1x784x256xbf16> to vector<784x256xbf16>
    %cst_14 = arith.constant dense<0.000000e+00> : vector<2x256xf32>
    %26 = tpu.matmul %23, %25, %cst_14 {dimension_numbers = #tpu.dot_dimension_numbers<[1], [0], [0], [1], [0, 0, 1, 1], [], []>} : vector<2x784xbf16>, vector<784x256xbf16>, vector<2x256xf32> -> vector<2x256xf32>
    %27 = arith.addf %18, %26 : vector<2x256xf32>
    %cst_15 = arith.constant 2.000000e+00 : f32
    %28 = vector.broadcast %cst_15 : f32 to vector<2x784xf32>
    %29 = arith.mulf %28, %1 : vector<2x784xf32>
    %30 = arith.mulf %29, %22 : vector<2x784xf32>
    %31 = arith.subf %30, %13 : vector<2x784xf32>
    %32 = arith.truncf %31 : vector<2x784xf32> to vector<2x784xbf16>
    %c3 = arith.constant 3 : index
    %c0_16 = arith.constant 0 : index
    %c0_17 = arith.constant 0 : index
    %33 = vector.load %arg2[%c3, %c0_16, %c0_17] : memref<4x784x256xbf16, #tpu.memory_space<vmem>>, vector<1x784x256xbf16>
    %34 = vector.shape_cast %33 : vector<1x784x256xbf16> to vector<784x256xbf16>
    %cst_18 = arith.constant dense<0.000000e+00> : vector<2x256xf32>
    %35 = tpu.matmul %32, %34, %cst_18 {dimension_numbers = #tpu.dot_dimension_numbers<[1], [0], [0], [1], [0, 0, 1, 1], [], []>} : vector<2x784xbf16>, vector<784x256xbf16>, vector<2x256xf32> -> vector<2x256xf32>
    %36 = arith.addf %27, %35 : vector<2x256xf32>
    %cst_19 = arith.constant dense<0.000000e+00> : vector<2xf32>
    %37 = vector.multi_reduction <add>, %36, %cst_19 [1] : vector<2x256xf32> to vector<2xf32>
    %38 = vector.shape_cast %37 : vector<2xf32> to vector<2x1xf32>
    %cst_20 = arith.constant 3.906250e-03 : f32
    %39 = vector.broadcast %cst_20 : f32 to vector<2x1xf32>
    %40 = arith.mulf %38, %39 : vector<2x1xf32>
    %41 = arith.mulf %36, %36 : vector<2x256xf32>
    %cst_21 = arith.constant dense<0.000000e+00> : vector<2xf32>
    %42 = vector.multi_reduction <add>, %41, %cst_21 [1] : vector<2x256xf32> to vector<2xf32>
    %43 = vector.shape_cast %42 : vector<2xf32> to vector<2x1xf32>
    %cst_22 = arith.constant 3.906250e-03 : f32
    %44 = vector.broadcast %cst_22 : f32 to vector<2x1xf32>
    %45 = arith.mulf %43, %44 : vector<2x1xf32>
    %46 = arith.mulf %40, %40 : vector<2x1xf32>
    %47 = arith.subf %45, %46 : vector<2x1xf32>
    %48 = vector.broadcast %40 : vector<2x1xf32> to vector<2x256xf32>
    %49 = arith.subf %36, %48 : vector<2x256xf32>
    %cst_23 = arith.constant 9.99999974E-6 : f32
    %50 = vector.broadcast %cst_23 : f32 to vector<2x1xf32>
    %51 = arith.addf %47, %50 : vector<2x1xf32>
    %52 = math.rsqrt %51 : vector<2x1xf32>
    %53 = vector.broadcast %52 : vector<2x1xf32> to vector<2x256xf32>
    %54 = arith.mulf %49, %53 : vector<2x256xf32>
    %c0_24 = arith.constant 0 : index
    %c0_25 = arith.constant 0 : index
    %55 = vector.load %arg4[%c0_24, %c0_25] : memref<1x256xf32, #tpu.memory_space<vmem>>, vector<1x256xf32>
    %56 = vector.broadcast %55 : vector<1x256xf32> to vector<2x256xf32>
    %57 = arith.mulf %54, %56 : vector<2x256xf32>
    %c0_26 = arith.constant 0 : index
    %c0_27 = arith.constant 0 : index
    %58 = vector.load %arg5[%c0_26, %c0_27] : memref<1x256xf32, #tpu.memory_space<vmem>>, vector<1x256xf32>
    %59 = vector.broadcast %58 : vector<1x256xf32> to vector<2x256xf32>
    %60 = arith.addf %57, %59 : vector<2x256xf32>
    %61 = math.tanh %60 : vector<2x256xf32>
    %c0_28 = arith.constant 0 : index
    %c0_29 = arith.constant 0 : index
    %62 = vector.load %arg7[%c0_28, %c0_29] : memref<1x256xf32, #tpu.memory_space<vmem>>, vector<1x256xf32>
    %63 = arith.truncf %61 : vector<2x256xf32> to vector<2x256xbf16>
    %c0_30 = arith.constant 0 : index
    %c0_31 = arith.constant 0 : index
    %c0_32 = arith.constant 0 : index
    %64 = vector.load %arg6[%c0_30, %c0_31, %c0_32] : memref<4x256x256xbf16, #tpu.memory_space<vmem>>, vector<1x256x256xbf16>
    %65 = vector.shape_cast %64 : vector<1x256x256xbf16> to vector<256x256xbf16>
    %cst_33 = arith.constant dense<0.000000e+00> : vector<2x256xf32>
    %66 = tpu.matmul %63, %65, %cst_33 {dimension_numbers = #tpu.dot_dimension_numbers<[1], [0], [0], [1], [0, 0, 1, 1], [], []>} : vector<2x256xbf16>, vector<256x256xbf16>, vector<2x256xf32> -> vector<2x256xf32>
    %67 = vector.broadcast %62 : vector<1x256xf32> to vector<2x256xf32>
    %68 = arith.addf %67, %66 : vector<2x256xf32>
    %cst_34 = arith.constant 2.000000e+00 : f32
    %69 = vector.broadcast %cst_34 : f32 to vector<2x256xf32>
    %70 = arith.mulf %69, %61 : vector<2x256xf32>
    %71 = arith.mulf %70, %61 : vector<2x256xf32>
    %cst_35 = arith.constant 1.000000e+00 : f32
    %72 = vector.broadcast %cst_35 : f32 to vector<2x256xf32>
    %73 = arith.subf %71, %72 : vector<2x256xf32>
    %74 = arith.truncf %73 : vector<2x256xf32> to vector<2x256xbf16>
    %c1_36 = arith.constant 1 : index
    %c0_37 = arith.constant 0 : index
    %c0_38 = arith.constant 0 : index
    %75 = vector.load %arg6[%c1_36, %c0_37, %c0_38] : memref<4x256x256xbf16, #tpu.memory_space<vmem>>, vector<1x256x256xbf16>
    %76 = vector.shape_cast %75 : vector<1x256x256xbf16> to vector<256x256xbf16>
    %cst_39 = arith.constant dense<0.000000e+00> : vector<2x256xf32>
    %77 = tpu.matmul %74, %76, %cst_39 {dimension_numbers = #tpu.dot_dimension_numbers<[1], [0], [0], [1], [0, 0, 1, 1], [], []>} : vector<2x256xbf16>, vector<256x256xbf16>, vector<2x256xf32> -> vector<2x256xf32>
    %78 = arith.addf %68, %77 : vector<2x256xf32>
    %cst_40 = arith.constant 2.000000e+00 : f32
    %79 = vector.broadcast %cst_40 : f32 to vector<2x256xf32>
    %80 = arith.mulf %79, %61 : vector<2x256xf32>
    %81 = arith.mulf %80, %73 : vector<2x256xf32>
    %82 = arith.subf %81, %61 : vector<2x256xf32>
    %83 = arith.truncf %82 : vector<2x256xf32> to vector<2x256xbf16>
    %c2_41 = arith.constant 2 : index
    %c0_42 = arith.constant 0 : index
    %c0_43 = arith.constant 0 : index
    %84 = vector.load %arg6[%c2_41, %c0_42, %c0_43] : memref<4x256x256xbf16, #tpu.memory_space<vmem>>, vector<1x256x256xbf16>
    %85 = vector.shape_cast %84 : vector<1x256x256xbf16> to vector<256x256xbf16>
    %cst_44 = arith.constant dense<0.000000e+00> : vector<2x256xf32>
    %86 = tpu.matmul %83, %85, %cst_44 {dimension_numbers = #tpu.dot_dimension_numbers<[1], [0], [0], [1], [0, 0, 1, 1], [], []>} : vector<2x256xbf16>, vector<256x256xbf16>, vector<2x256xf32> -> vector<2x256xf32>
    %87 = arith.addf %78, %86 : vector<2x256xf32>
    %cst_45 = arith.constant 2.000000e+00 : f32
    %88 = vector.broadcast %cst_45 : f32 to vector<2x256xf32>
    %89 = arith.mulf %88, %61 : vector<2x256xf32>
    %90 = arith.mulf %89, %82 : vector<2x256xf32>
    %91 = arith.subf %90, %73 : vector<2x256xf32>
    %92 = arith.truncf %91 : vector<2x256xf32> to vector<2x256xbf16>
    %c3_46 = arith.constant 3 : index
    %c0_47 = arith.constant 0 : index
    %c0_48 = arith.constant 0 : index
    %93 = vector.load %arg6[%c3_46, %c0_47, %c0_48] : memref<4x256x256xbf16, #tpu.memory_space<vmem>>, vector<1x256x256xbf16>
    %94 = vector.shape_cast %93 : vector<1x256x256xbf16> to vector<256x256xbf16>
    %cst_49 = arith.constant dense<0.000000e+00> : vector<2x256xf32>
    %95 = tpu.matmul %92, %94, %cst_49 {dimension_numbers = #tpu.dot_dimension_numbers<[1], [0], [0], [1], [0, 0, 1, 1], [], []>} : vector<2x256xbf16>, vector<256x256xbf16>, vector<2x256xf32> -> vector<2x256xf32>
    %96 = arith.addf %87, %95 : vector<2x256xf32>
    %cst_50 = arith.constant dense<0.000000e+00> : vector<2xf32>
    %97 = vector.multi_reduction <add>, %96, %cst_50 [1] : vector<2x256xf32> to vector<2xf32>
    %98 = vector.shape_cast %97 : vector<2xf32> to vector<2x1xf32>
    %cst_51 = arith.constant 3.906250e-03 : f32
    %99 = vector.broadcast %cst_51 : f32 to vector<2x1xf32>
    %100 = arith.mulf %98, %99 : vector<2x1xf32>
    %101 = arith.mulf %96, %96 : vector<2x256xf32>
    %cst_52 = arith.constant dense<0.000000e+00> : vector<2xf32>
    %102 = vector.multi_reduction <add>, %101, %cst_52 [1] : vector<2x256xf32> to vector<2xf32>
    %103 = vector.shape_cast %102 : vector<2xf32> to vector<2x1xf32>
    %cst_53 = arith.constant 3.906250e-03 : f32
    %104 = vector.broadcast %cst_53 : f32 to vector<2x1xf32>
    %105 = arith.mulf %103, %104 : vector<2x1xf32>
    %106 = arith.mulf %100, %100 : vector<2x1xf32>
    %107 = arith.subf %105, %106 : vector<2x1xf32>
    %108 = vector.broadcast %100 : vector<2x1xf32> to vector<2x256xf32>
    %109 = arith.subf %96, %108 : vector<2x256xf32>
    %cst_54 = arith.constant 9.99999974E-6 : f32
    %110 = vector.broadcast %cst_54 : f32 to vector<2x1xf32>
    %111 = arith.addf %107, %110 : vector<2x1xf32>
    %112 = math.rsqrt %111 : vector<2x1xf32>
    %113 = vector.broadcast %112 : vector<2x1xf32> to vector<2x256xf32>
    %114 = arith.mulf %109, %113 : vector<2x256xf32>
    %c0_55 = arith.constant 0 : index
    %c0_56 = arith.constant 0 : index
    %115 = vector.load %arg8[%c0_55, %c0_56] : memref<1x256xf32, #tpu.memory_space<vmem>>, vector<1x256xf32>
    %116 = vector.broadcast %115 : vector<1x256xf32> to vector<2x256xf32>
    %117 = arith.mulf %114, %116 : vector<2x256xf32>
    %c0_57 = arith.constant 0 : index
    %c0_58 = arith.constant 0 : index
    %118 = vector.load %arg9[%c0_57, %c0_58] : memref<1x256xf32, #tpu.memory_space<vmem>>, vector<1x256xf32>
    %119 = vector.broadcast %118 : vector<1x256xf32> to vector<2x256xf32>
    %120 = arith.addf %117, %119 : vector<2x256xf32>
    %121 = math.tanh %120 : vector<2x256xf32>
    %c0_59 = arith.constant 0 : index
    %c0_60 = arith.constant 0 : index
    %122 = vector.load %arg11[%c0_59, %c0_60] : memref<1x128xf32, #tpu.memory_space<vmem>>, vector<1x128xf32>
    %123 = arith.truncf %121 : vector<2x256xf32> to vector<2x256xbf16>
    %c0_61 = arith.constant 0 : index
    %c0_62 = arith.constant 0 : index
    %c0_63 = arith.constant 0 : index
    %124 = vector.load %arg10[%c0_61, %c0_62, %c0_63] : memref<4x256x128xbf16, #tpu.memory_space<vmem>>, vector<1x256x128xbf16>
    %125 = vector.shape_cast %124 : vector<1x256x128xbf16> to vector<256x128xbf16>
    %cst_64 = arith.constant dense<0.000000e+00> : vector<2x128xf32>
    %126 = tpu.matmul %123, %125, %cst_64 {dimension_numbers = #tpu.dot_dimension_numbers<[1], [0], [0], [1], [0, 0, 1, 1], [], []>} : vector<2x256xbf16>, vector<256x128xbf16>, vector<2x128xf32> -> vector<2x128xf32>
    %127 = vector.broadcast %122 : vector<1x128xf32> to vector<2x128xf32>
    %128 = arith.addf %127, %126 : vector<2x128xf32>
    %cst_65 = arith.constant 2.000000e+00 : f32
    %129 = vector.broadcast %cst_65 : f32 to vector<2x256xf32>
    %130 = arith.mulf %129, %121 : vector<2x256xf32>
    %131 = arith.mulf %130, %121 : vector<2x256xf32>
    %cst_66 = arith.constant 1.000000e+00 : f32
    %132 = vector.broadcast %cst_66 : f32 to vector<2x256xf32>
    %133 = arith.subf %131, %132 : vector<2x256xf32>
    %134 = arith.truncf %133 : vector<2x256xf32> to vector<2x256xbf16>
    %c1_67 = arith.constant 1 : index
    %c0_68 = arith.constant 0 : index
    %c0_69 = arith.constant 0 : index
    %135 = vector.load %arg10[%c1_67, %c0_68, %c0_69] : memref<4x256x128xbf16, #tpu.memory_space<vmem>>, vector<1x256x128xbf16>
    %136 = vector.shape_cast %135 : vector<1x256x128xbf16> to vector<256x128xbf16>
    %cst_70 = arith.constant dense<0.000000e+00> : vector<2x128xf32>
    %137 = tpu.matmul %134, %136, %cst_70 {dimension_numbers = #tpu.dot_dimension_numbers<[1], [0], [0], [1], [0, 0, 1, 1], [], []>} : vector<2x256xbf16>, vector<256x128xbf16>, vector<2x128xf32> -> vector<2x128xf32>
    %138 = arith.addf %128, %137 : vector<2x128xf32>
    %cst_71 = arith.constant 2.000000e+00 : f32
    %139 = vector.broadcast %cst_71 : f32 to vector<2x256xf32>
    %140 = arith.mulf %139, %121 : vector<2x256xf32>
    %141 = arith.mulf %140, %133 : vector<2x256xf32>
    %142 = arith.subf %141, %121 : vector<2x256xf32>
    %143 = arith.truncf %142 : vector<2x256xf32> to vector<2x256xbf16>
    %c2_72 = arith.constant 2 : index
    %c0_73 = arith.constant 0 : index
    %c0_74 = arith.constant 0 : index
    %144 = vector.load %arg10[%c2_72, %c0_73, %c0_74] : memref<4x256x128xbf16, #tpu.memory_space<vmem>>, vector<1x256x128xbf16>
    %145 = vector.shape_cast %144 : vector<1x256x128xbf16> to vector<256x128xbf16>
    %cst_75 = arith.constant dense<0.000000e+00> : vector<2x128xf32>
    %146 = tpu.matmul %143, %145, %cst_75 {dimension_numbers = #tpu.dot_dimension_numbers<[1], [0], [0], [1], [0, 0, 1, 1], [], []>} : vector<2x256xbf16>, vector<256x128xbf16>, vector<2x128xf32> -> vector<2x128xf32>
    %147 = arith.addf %138, %146 : vector<2x128xf32>
    %cst_76 = arith.constant 2.000000e+00 : f32
    %148 = vector.broadcast %cst_76 : f32 to vector<2x256xf32>
    %149 = arith.mulf %148, %121 : vector<2x256xf32>
    %150 = arith.mulf %149, %142 : vector<2x256xf32>
    %151 = arith.subf %150, %133 : vector<2x256xf32>
    %152 = arith.truncf %151 : vector<2x256xf32> to vector<2x256xbf16>
    %c3_77 = arith.constant 3 : index
    %c0_78 = arith.constant 0 : index
    %c0_79 = arith.constant 0 : index
    %153 = vector.load %arg10[%c3_77, %c0_78, %c0_79] : memref<4x256x128xbf16, #tpu.memory_space<vmem>>, vector<1x256x128xbf16>
    %154 = vector.shape_cast %153 : vector<1x256x128xbf16> to vector<256x128xbf16>
    %cst_80 = arith.constant dense<0.000000e+00> : vector<2x128xf32>
    %155 = tpu.matmul %152, %154, %cst_80 {dimension_numbers = #tpu.dot_dimension_numbers<[1], [0], [0], [1], [0, 0, 1, 1], [], []>} : vector<2x256xbf16>, vector<256x128xbf16>, vector<2x128xf32> -> vector<2x128xf32>
    %156 = arith.addf %147, %155 : vector<2x128xf32>
    %c0_81 = arith.constant 0 : index
    %c0_82 = arith.constant 0 : index
    %157 = vector.load %arg12[%c0_81, %c0_82] : memref<2x128xf32, #tpu.memory_space<vmem>>, vector<2x128xf32>
    tpu.vector_store %arg12[%c0_81, %c0_82], %156 {strides = array<i32>} : memref<2x128xf32, #tpu.memory_space<vmem>>, vector<2x128xf32>,
    return
  }
  func.func @transform_0(%arg0: i32) -> (i32, i32) {
    %c0_i32 = arith.constant 0 : i32
    %c0_i32_0 = arith.constant 0 : i32
    return %arg0, %c0_i32 : i32, i32
  }
  func.func @transform_1(%arg0: i32) -> (i32, i32, i32) {
    %c0_i32 = arith.constant 0 : i32
    %c0_i32_0 = arith.constant 0 : i32
    %c0_i32_1 = arith.constant 0 : i32
    %c0_i32_2 = arith.constant 0 : i32
    return %c0_i32, %c0_i32_0, %c0_i32_1 : i32, i32, i32
  }
  func.func @transform_2(%arg0: i32) -> (i32, i32) {
    %c0_i32 = arith.constant 0 : i32
    %c0_i32_0 = arith.constant 0 : i32
    %c0_i32_1 = arith.constant 0 : i32
    return %c0_i32, %c0_i32_0 : i32, i32
  }
  func.func @transform_3(%arg0: i32) -> (i32, i32) {
    %c0_i32 = arith.constant 0 : i32
    %c0_i32_0 = arith.constant 0 : i32
    %c0_i32_1 = arith.constant 0 : i32
    return %c0_i32, %c0_i32_0 : i32, i32
  }
  func.func @transform_4(%arg0: i32) -> (i32, i32) {
    %c0_i32 = arith.constant 0 : i32
    %c0_i32_0 = arith.constant 0 : i32
    %c0_i32_1 = arith.constant 0 : i32
    return %c0_i32, %c0_i32_0 : i32, i32
  }
  func.func @transform_5(%arg0: i32) -> (i32, i32, i32) {
    %c0_i32 = arith.constant 0 : i32
    %c0_i32_0 = arith.constant 0 : i32
    %c0_i32_1 = arith.constant 0 : i32
    %c0_i32_2 = arith.constant 0 : i32
    return %c0_i32, %c0_i32_0, %c0_i32_1 : i32, i32, i32
  }
  func.func @transform_6(%arg0: i32) -> (i32, i32) {
    %c0_i32 = arith.constant 0 : i32
    %c0_i32_0 = arith.constant 0 : i32
    %c0_i32_1 = arith.constant 0 : i32
    return %c0_i32, %c0_i32_0 : i32, i32
  }
  func.func @transform_7(%arg0: i32) -> (i32, i32) {
    %c0_i32 = arith.constant 0 : i32
    %c0_i32_0 = arith.constant 0 : i32
    %c0_i32_1 = arith.constant 0 : i32
    return %c0_i32, %c0_i32_0 : i32, i32
  }
  func.func @transform_8(%arg0: i32) -> (i32, i32) {
    %c0_i32 = arith.constant 0 : i32
    %c0_i32_0 = arith.constant 0 : i32
    %c0_i32_1 = arith.constant 0 : i32
    return %c0_i32, %c0_i32_0 : i32, i32
  }
  func.func @transform_9(%arg0: i32) -> (i32, i32, i32) {
    %c0_i32 = arith.constant 0 : i32
    %c0_i32_0 = arith.constant 0 : i32
    %c0_i32_1 = arith.constant 0 : i32
    %c0_i32_2 = arith.constant 0 : i32
    return %c0_i32, %c0_i32_0, %c0_i32_1 : i32, i32, i32
  }
  func.func @transform_10(%arg0: i32) -> (i32, i32) {
    %c0_i32 = arith.constant 0 : i32
    %c0_i32_0 = arith.constant 0 : i32
    %c0_i32_1 = arith.constant 0 : i32
    return %c0_i32, %c0_i32_0 : i32, i32
  }
  func.func @transform_11(%arg0: i32) -> (i32, i32) {
    %c0_i32 = arith.constant 0 : i32
    %c0_i32_0 = arith.constant 0 : i32
    return %arg0, %c0_i32 : i32, i32
  }
}

</mosaic_0001>

<llo_original>
// kernel: chebynet_forward.1
$region0: #{chebynet_forward.1}
  #allocation0 [shape = 'u32[]', space=smem, size = 0x4, offset = 0x4, fixed_abs, tag = 'smem constant byte address 0x4 - core index']
  #allocation1 [shape = 'u32[144,128]{1,0:T(1,128)}', space=vmem, size = 0x12000, scoped, tag = 'internal scratch']
  %s0 = inlined_call_operand.vmem [shape: f32[2,784], index: 0, kind: input, shape index: {}]
  %s1 = inlined_call_operand.hbm [shape: bf16[4,784,256], index: 1, kind: input, shape index: {}]
  %s2 = inlined_call_operand.hbm [shape: f32[1,256], index: 2, kind: input, shape index: {}]
  %s3 = inlined_call_operand.hbm [shape: f32[1,256], index: 3, kind: input, shape index: {}]
  %s4 = inlined_call_operand.hbm [shape: f32[1,256], index: 4, kind: input, shape index: {}]
  %s5 = inlined_call_operand.hbm [shape: bf16[4,256,256], index: 5, kind: input, shape index: {}]
  %s6 = inlined_call_operand.hbm [shape: f32[1,256], index: 6, kind: input, shape index: {}]
  %s7 = inlined_call_operand.hbm [shape: f32[1,256], index: 7, kind: input, shape index: {}]
  %s8 = inlined_call_operand.hbm [shape: f32[1,256], index: 8, kind: input, shape index: {}]
  %s9 = inlined_call_operand.hbm [shape: bf16[4,256,128], index: 9, kind: input, shape index: {}]
  %s10 = inlined_call_operand.hbm [shape: f32[1,128], index: 10, kind: input, shape index: {}]
  %s11 = inlined_call_operand.hbm [shape: f32[2,128], index: 11, kind: output, shape index: {}]
  %s12 = sld [smem:[#allocation0]]
  $region94: #{chebynet_forward.1} parent=0
    _
  %s14 = ssub.s32 1, %s12
  %s15 = scalar_select 0, %s14, %s12
  $region1: #{chebynet_forward.1} parent=0
    #allocation2 [shape = 'u8[1605632]{0}', space=vmem, size = 0x188000, scoped, tag = 'input window, operand 1, single buffered']
    #allocation3 [shape = 's32[1]{0}', space=sflag, size = 0x4, scoped, tag = 'scoped memory for chebynet_forward.1']
    #allocation4 [shape = 's32[1]{0}', space=sflag, size = 0x4, scoped, tag = 'scoped memory for chebynet_forward.1']
    #allocation5 [shape = 'u8[1024]{0}', space=vmem, size = 0x400, scoped, tag = 'input window, operand 2, single buffered']
    #allocation6 [shape = 's32[1]{0}', space=sflag, size = 0x4, scoped, tag = 'scoped memory for chebynet_forward.1']
    #allocation7 [shape = 'u8[1024]{0}', space=vmem, size = 0x400, scoped, tag = 'input window, operand 3, single buffered']
    #allocation8 [shape = 'u8[1024]{0}', space=vmem, size = 0x400, scoped, tag = 'input window, operand 4, single buffered']
    #allocation9 [shape = 's32[1]{0}', space=sflag, size = 0x4, scoped, tag = 'scoped memory for chebynet_forward.1']
    #allocation10 [shape = 'u8[524288]{0}', space=vmem, size = 0x80000, scoped, tag = 'input window, operand 5, single buffered']
    #allocation11 [shape = 'u8[1024]{0}', space=vmem, size = 0x400, scoped, tag = 'input window, operand 6, single buffered']
    #allocation12 [shape = 's32[1]{0}', space=sflag, size = 0x4, scoped, tag = 'scoped memory for chebynet_forward.1']
    #allocation13 [shape = 'u8[1024]{0}', space=vmem, size = 0x400, scoped, tag = 'input window, operand 7, single buffered']
    #allocation14 [shape = 'u8[1024]{0}', space=vmem, size = 0x400, scoped, tag = 'input window, operand 8, single buffered']
    #allocation15 [shape = 's32[1]{0}', space=sflag, size = 0x4, scoped, tag = 'scoped memory for chebynet_forward.1']
    #allocation16 [shape = 'u8[262144]{0}', space=vmem, size = 0x40000, scoped, tag = 'input window, operand 9, single buffered']
    #allocation17 [shape = 'u8[512]{0}', space=vmem, size = 0x400, scoped, tag = 'input window, operand 10, single buffered']
    #allocation18 [shape = 's32[1]{0}', space=sflag, size = 0x4, scoped, tag = 'scoped memory for chebynet_forward.1']
    #allocation19 [shape = 'u8[1024]{0}', space=vmem, size = 0x400, scoped, tag = 'output window, operand 0, single buffered']
    %16 = vsyncpa [#allocation3], 0
    %17 = vsyncpa [#allocation6], 0
    %18 = vsyncpa [#allocation9], 0
    %19 = vsyncpa [#allocation12], 0
    %20 = vsyncpa [#allocation15], 0
    %21 = vsyncpa [#allocation18], 0
    %22 = vsyncpa [#allocation4], 0
    // Predicated region
    $region2: #{chebynet_forward.1} parent=1 // pred_check
      _
    $region3: #{chebynet_forward.1} parent=1 // pred_check_branch
      %24 = sbr.rel (0) target = $region5
    $region4: #{chebynet_forward.1} parent=1 // pred_region
      _
    $region5: #{chebynet_forward.1} parent=1 // pred_fallthru
      _
    // Predicated region
    $region6: #{chebynet_forward.1} parent=1 // pred_check
      _
    $region7: #{chebynet_forward.1} parent=1 // pred_check_branch
      %26 = sbr.rel (0) target = $region9
    $region8: #{chebynet_forward.1} parent=1 // pred_region
      %s28 = ssub.s32 50176, 50176
      %29 = vsyncadd [#allocation3], %s28
      %s30 = sshll.u32 [#allocation2], 4
      %s31 = int_to_ptr.vmem [resolvable:$true] %s30
      %36 = dma.hbm_to_vmem [thread:$0]  %s1, 50176, %s31, [#allocation3], 128, 128, 8
    $region9: #{chebynet_forward.1} parent=1 // pred_fallthru
      _
    // Predicated region
    $region10: #{chebynet_forward.1} parent=1 // pred_check
      _
    $region11: #{chebynet_forward.1} parent=1 // pred_check_branch
      %38 = sbr.rel (0) target = $region13
    $region12: #{chebynet_forward.1} parent=1 // pred_region
      %s40 = ssub.s32 32, 32
      %41 = vsyncadd [#allocation6], %s40
      %s43 = sshll.u32 [#allocation5], 4
      %s44 = int_to_ptr.vmem [resolvable:$true] %s43
      %46 = dma.hbm_to_vmem [thread:$0]  %s2, 32, %s44, [#allocation6]
    $region13: #{chebynet_forward.1} parent=1 // pred_fallthru
      _
    // Predicated region
    $region14: #{chebynet_forward.1} parent=1 // pred_check
      _
    $region15: #{chebynet_forward.1} parent=1 // pred_check_branch
      %48 = sbr.rel (0) target = $region17
    $region16: #{chebynet_forward.1} parent=1 // pred_region
      %s50 = ssub.s32 32, 32
      %51 = vsyncadd [#allocation6], %s50
      %s53 = sshll.u32 [#allocation7], 4
      %s54 = int_to_ptr.vmem [resolvable:$true] %s53
      %56 = dma.hbm_to_vmem [thread:$0]  %s3, 32, %s54, [#allocation6]
    $region17: #{chebynet_forward.1} parent=1 // pred_fallthru
      _
    // Predicated region
    $region18: #{chebynet_forward.1} parent=1 // pred_check
      _
    $region19: #{chebynet_forward.1} parent=1 // pred_check_branch
      %58 = sbr.rel (0) target = $region21
    $region20: #{chebynet_forward.1} parent=1 // pred_region
      %s60 = ssub.s32 32, 32
      %61 = vsyncadd [#allocation9], %s60
      %s63 = sshll.u32 [#allocation8], 4
      %s64 = int_to_ptr.vmem [resolvable:$true] %s63
      %66 = dma.hbm_to_vmem [thread:$0]  %s4, 32, %s64, [#allocation9]
    $region21: #{chebynet_forward.1} parent=1 // pred_fallthru
      _
    // Predicated region
    $region22: #{chebynet_forward.1} parent=1 // pred_check
      _
    $region23: #{chebynet_forward.1} parent=1 // pred_check_branch
      %68 = sbr.rel (0) target = $region25
    $region24: #{chebynet_forward.1} parent=1 // pred_region
      %s70 = ssub.s32 16384, 16384
      %71 = vsyncadd [#allocation9], %s70
      %s72 = sshll.u32 [#allocation10], 4
      %s73 = int_to_ptr.vmem [resolvable:$true] %s72
      %78 = dma.hbm_to_vmem [thread:$0]  %s5, 16384, %s73, [#allocation9], 128, 128, 8
    $region25: #{chebynet_forward.1} parent=1 // pred_fallthru
      _
    // Predicated region
    $region26: #{chebynet_forward.1} parent=1 // pred_check
      _
    $region27: #{chebynet_forward.1} parent=1 // pred_check_branch
      %80 = sbr.rel (0) target = $region29
    $region28: #{chebynet_forward.1} parent=1 // pred_region
      %s82 = ssub.s32 32, 32
      %83 = vsyncadd [#allocation12], %s82
      %s85 = sshll.u32 [#allocation11], 4
      %s86 = int_to_ptr.vmem [resolvable:$true] %s85
      %88 = dma.hbm_to_vmem [thread:$0]  %s6, 32, %s86, [#allocation12]
    $region29: #{chebynet_forward.1} parent=1 // pred_fallthru
      _
    // Predicated region
    $region30: #{chebynet_forward.1} parent=1 // pred_check
      _
    $region31: #{chebynet_forward.1} parent=1 // pred_check_branch
      %90 = sbr.rel (0) target = $region33
    $region32: #{chebynet_forward.1} parent=1 // pred_region
      %s92 = ssub.s32 32, 32
      %93 = vsyncadd [#allocation12], %s92
      %s95 = sshll.u32 [#allocation13], 4
      %s96 = int_to_ptr.vmem [resolvable:$true] %s95
      %98 = dma.hbm_to_vmem [thread:$0]  %s7, 32, %s96, [#allocation12]
    $region33: #{chebynet_forward.1} parent=1 // pred_fallthru
      _
    // Predicated region
    $region34: #{chebynet_forward.1} parent=1 // pred_check
      _
    $region35: #{chebynet_forward.1} parent=1 // pred_check_branch
      %100 = sbr.rel (0) target = $region37
    $region36: #{chebynet_forward.1} parent=1 // pred_region
      %s102 = ssub.s32 32, 32
      %103 = vsyncadd [#allocation15], %s102
      %s105 = sshll.u32 [#allocation14], 4
      %s106 = int_to_ptr.vmem [resolvable:$true] %s105
      %108 = dma.hbm_to_vmem [thread:$0]  %s8, 32, %s106, [#allocation15]
    $region37: #{chebynet_forward.1} parent=1 // pred_fallthru
      _
    // Predicated region
    $region38: #{chebynet_forward.1} parent=1 // pred_check
      _
    $region39: #{chebynet_forward.1} parent=1 // pred_check_branch
      %110 = sbr.rel (0) target = $region41
    $region40: #{chebynet_forward.1} parent=1 // pred_region
      %s112 = ssub.s32 8192, 8192
      %113 = vsyncadd [#allocation15], %s112
      %s114 = sshll.u32 [#allocation16], 4
      %s115 = int_to_ptr.vmem [resolvable:$true] %s114
      %120 = dma.hbm_to_vmem [thread:$0]  %s9, 8192, %s115, [#allocation15], 64, 64, 4
    $region41: #{chebynet_forward.1} parent=1 // pred_fallthru
      _
    // Predicated region
    $region42: #{chebynet_forward.1} parent=1 // pred_check
      _
    $region43: #{chebynet_forward.1} parent=1 // pred_check_branch
      %122 = sbr.rel (0) target = $region45
    $region44: #{chebynet_forward.1} parent=1 // pred_region
      %s124 = ssub.s32 16, 16
      %125 = vsyncadd [#allocation18], %s124
      %s127 = sshll.u32 [#allocation17], 4
      %s128 = int_to_ptr.vmem [resolvable:$true] %s127
      %130 = dma.hbm_to_vmem [thread:$0]  %s10, 16, %s128, [#allocation18]
    $region45: #{chebynet_forward.1} parent=1 // pred_fallthru
      _
    // Predicated region
    $region46: #{chebynet_forward.1} parent=1 // pred_check
      _
    $region47: #{chebynet_forward.1} parent=1 // pred_check_branch
      %132 = sbr.rel (0) target = $region49
    $region48: #{chebynet_forward.1} parent=1 // pred_region
      %133 = dma.done [#allocation3], 50176
    $region49: #{chebynet_forward.1} parent=1 // pred_fallthru
      _
    // Predicated region
    $region50: #{chebynet_forward.1} parent=1 // pred_check
      _
    $region51: #{chebynet_forward.1} parent=1 // pred_check_branch
      %135 = sbr.rel (0) target = $region53
    $region52: #{chebynet_forward.1} parent=1 // pred_region
      %136 = dma.done [#allocation6], 32
    $region53: #{chebynet_forward.1} parent=1 // pred_fallthru
      _
    // Predicated region
    $region54: #{chebynet_forward.1} parent=1 // pred_check
      _
    $region55: #{chebynet_forward.1} parent=1 // pred_check_branch
      %138 = sbr.rel (0) target = $region57
    $region56: #{chebynet_forward.1} parent=1 // pred_region
      %139 = dma.done [#allocation6], 32
    $region57: #{chebynet_forward.1} parent=1 // pred_fallthru
      _
    // Predicated region
    $region58: #{chebynet_forward.1} parent=1 // pred_check
      _
    $region59: #{chebynet_forward.1} parent=1 // pred_check_branch
      %141 = sbr.rel (0) target = $region61
    $region60: #{chebynet_forward.1} parent=1 // pred_region
      %142 = dma.done [#allocation9], 32
    $region61: #{chebynet_forward.1} parent=1 // pred_fallthru
      _
    // Predicated region
    $region62: #{chebynet_forward.1} parent=1 // pred_check
      _
    $region63: #{chebynet_forward.1} parent=1 // pred_check_branch
      %144 = sbr.rel (0) target = $region65
    $region64: #{chebynet_forward.1} parent=1 // pred_region
      %145 = dma.done [#allocation9], 16384
    $region65: #{chebynet_forward.1} parent=1 // pred_fallthru
      _
    // Predicated region
    $region66: #{chebynet_forward.1} parent=1 // pred_check
      _
    $region67: #{chebynet_forward.1} parent=1 // pred_check_branch
      %147 = sbr.rel (0) target = $region69
    $region68: #{chebynet_forward.1} parent=1 // pred_region
      %148 = dma.done [#allocation12], 32
    $region69: #{chebynet_forward.1} parent=1 // pred_fallthru
      _
    // Predicated region
    $region70: #{chebynet_forward.1} parent=1 // pred_check
      _
    $region71: #{chebynet_forward.1} parent=1 // pred_check_branch
      %150 = sbr.rel (0) target = $region73
    $region72: #{chebynet_forward.1} parent=1 // pred_region
      %151 = dma.done [#allocation12], 32
    $region73: #{chebynet_forward.1} parent=1 // pred_fallthru
      _
    // Predicated region
    $region74: #{chebynet_forward.1} parent=1 // pred_check
      _
    $region75: #{chebynet_forward.1} parent=1 // pred_check_branch
      %153 = sbr.rel (0) target = $region77
    $region76: #{chebynet_forward.1} parent=1 // pred_region
      %154 = dma.done [#allocation15], 32
    $region77: #{chebynet_forward.1} parent=1 // pred_fallthru
      _
    // Predicated region
    $region78: #{chebynet_forward.1} parent=1 // pred_check
      _
    $region79: #{chebynet_forward.1} parent=1 // pred_check_branch
      %156 = sbr.rel (0) target = $region81
    $region80: #{chebynet_forward.1} parent=1 // pred_region
      %157 = dma.done [#allocation15], 8192
    $region81: #{chebynet_forward.1} parent=1 // pred_fallthru
      _
    // Predicated region
    $region82: #{chebynet_forward.1} parent=1 // pred_check
      _
    $region83: #{chebynet_forward.1} parent=1 // pred_check_branch
      %159 = sbr.rel (0) target = $region85
    $region84: #{chebynet_forward.1} parent=1 // pred_region
      %160 = dma.done [#allocation18], 16
    $region85: #{chebynet_forward.1} parent=1 // pred_fallthru
      _
    %v162 = vld [vmem:[%s0] sm:$0xff]
    %v163 = vld [vmem:[%s0 + $0x8] sm:$0x3f]
    %v164 = vtanh.pop %v162
    %v165 = vtanh.pop %v163
    %v166 = vld [vmem:[#allocation5] sm:$0x3]
    %v169 = vcombine.high %v164, %v164
    %v171 = vunpack.c.l.s4 1983009808
    %v172 = vunpack.c.0.s8 %v171
    %v173 = vlaneseq
    %v174 = vshrl.u32 %v173, 7
    %v175 = vsub.s32 %v172, %v174
    %v176 = vrot.slane %v164, %v175
    %v178 = vunpack.c.l.s4 1983009808
    %v179 = vunpack.c.0.s8 %v178
    %v180 = vlaneseq
    %v181 = vshrl.u32 %v180, 7
    %v182 = vsub.s32 %v179, %v181
    %v183 = vrot.slane %v169, %v182
    %v184 = vcombine.high %v176, %v176
    %v185 = vcombine.high %v183, %v183
    %v186 = vcombine.high %v165, %v165
    %v188 = vunpack.c.l.s4 1983009808
    %v189 = vunpack.c.0.s8 %v188
    %v190 = vlaneseq
    %v191 = vshrl.u32 %v190, 7
    %v192 = vsub.s32 %v189, %v191
    %v193 = vrot.slane %v165, %v192
    %v195 = vunpack.c.l.s4 1983009808
    %v196 = vunpack.c.0.s8 %v195
    %v197 = vlaneseq
    %v198 = vshrl.u32 %v197, 7
    %v199 = vsub.s32 %v196, %v198
    %v200 = vrot.slane %v186, %v199
    %v201 = vcombine.high %v193, %v193
    %v209 = vpack.c.bf16 %v176, %v176
    %v210 = vpack.c.bf16 %v184, %v184
    %v211 = vpack.c.bf16 %v183, %v183
    %v212 = vpack.c.bf16 %v185, %v185
    %v213 = vpack.c.bf16 %v193, %v193
    %v214 = vpack.c.bf16 %v201, %v201
    %v215 = vpack.c.bf16 %v200, %v200
    %v216 = vld [vmem:[#allocation2] sm:$0xff]
    %v217 = vld [vmem:[#allocation2 + $0x8] sm:$0xff]
    %v218 = vld [vmem:[#allocation2 + $0x10] sm:$0xff]
    %v219 = vld [vmem:[#allocation2 + $0x18] sm:$0xff]
    %v220 = vld [vmem:[#allocation2 + $0x20] sm:$0xff]
    %v221 = vld [vmem:[#allocation2 + $0x28] sm:$0xff]
    %v222 = vld [vmem:[#allocation2 + $0x30] sm:$0xff]
    %v223 = vld [vmem:[#allocation2 + $0x38] sm:$0xff]
    %v224 = vld [vmem:[#allocation2 + $0x40] sm:$0xff]
    %v225 = vld [vmem:[#allocation2 + $0x48] sm:$0xff]
    %v226 = vld [vmem:[#allocation2 + $0x50] sm:$0xff]
    %v227 = vld [vmem:[#allocation2 + $0x58] sm:$0xff]
    %v228 = vld [vmem:[#allocation2 + $0x60] sm:$0xff]
    %v229 = vld [vmem:[#allocation2 + $0x68] sm:$0xff]
    %v230 = vld [vmem:[#allocation2 + $0x70] sm:$0xff]
    %v231 = vld [vmem:[#allocation2 + $0x78] sm:$0xff]
    %v232 = vld [vmem:[#allocation2 + $0x80] sm:$0xff]
    %v233 = vld [vmem:[#allocation2 + $0x88] sm:$0xff]
    %v234 = vld [vmem:[#allocation2 + $0x90] sm:$0xff]
    %v235 = vld [vmem:[#allocation2 + $0x98] sm:$0xff]
    %v236 = vld [vmem:[#allocation2 + $0xa0] sm:$0xff]
    %v237 = vld [vmem:[#allocation2 + $0xa8] sm:$0xff]
    %v238 = vld [vmem:[#allocation2 + $0xb0] sm:$0xff]
    %v239 = vld [vmem:[#allocation2 + $0xb8] sm:$0xff]
    %v240 = vld [vmem:[#allocation2 + $0xc0] sm:$0xff]
    %v241 = vld [vmem:[#allocation2 + $0xc8] sm:$0xff]
    %v242 = vld [vmem:[#allocation2 + $0xd0] sm:$0xff]
    %v243 = vld [vmem:[#allocation2 + $0xd8] sm:$0xff]
    %v244 = vld [vmem:[#allocation2 + $0xe0] sm:$0xff]
    %v245 = vld [vmem:[#allocation2 + $0xe8] sm:$0xff]
    %v246 = vld [vmem:[#allocation2 + $0xf0] sm:$0xff]
    %v247 = vld [vmem:[#allocation2 + $0xf8] sm:$0xff]
    %v248 = vld [vmem:[#allocation2 + $0x100] sm:$0xff]
    %v249 = vld [vmem:[#allocation2 + $0x108] sm:$0xff]
    %v250 = vld [vmem:[#allocation2 + $0x110] sm:$0xff]
    %v251 = vld [vmem:[#allocation2 + $0x118] sm:$0xff]
    %v252 = vld [vmem:[#allocation2 + $0x120] sm:$0xff]
    %v253 = vld [vmem:[#allocation2 + $0x128] sm:$0xff]
    %v254 = vld [vmem:[#allocation2 + $0x130] sm:$0xff]
    %v255 = vld [vmem:[#allocation2 + $0x138] sm:$0xff]
    %v256 = vld [vmem:[#allocation2 + $0x140] sm:$0xff]
    %v257 = vld [vmem:[#allocation2 + $0x148] sm:$0xff]
    %v258 = vld [vmem:[#allocation2 + $0x150] sm:$0xff]
    %v259 = vld [vmem:[#allocation2 + $0x158] sm:$0xff]
    %v260 = vld [vmem:[#allocation2 + $0x160] sm:$0xff]
    %v261 = vld [vmem:[#allocation2 + $0x168] sm:$0xff]
    %v262 = vld [vmem:[#allocation2 + $0x170] sm:$0xff]
    %v263 = vld [vmem:[#allocation2 + $0x178] sm:$0xff]
    %v264 = vld [vmem:[#allocation2 + $0x180] sm:$0xff]
    %v265 = vld [vmem:[#allocation2 + $0x188] sm:$0xff]
    %v266 = vld [vmem:[#allocation2 + $0x190] sm:$0xff]
    %v267 = vld [vmem:[#allocation2 + $0x198] sm:$0xff]
    %v268 = vld [vmem:[#allocation2 + $0x1a0] sm:$0xff]
    %v269 = vld [vmem:[#allocation2 + $0x1a8] sm:$0xff]
    %v270 = vld [vmem:[#allocation2 + $0x1b0] sm:$0xff]
    %v271 = vld [vmem:[#allocation2 + $0x1b8] sm:$0xff]
    %v272 = vld [vmem:[#allocation2 + $0x1c0] sm:$0xff]
    %v273 = vld [vmem:[#allocation2 + $0x1c8] sm:$0xff]
    %v274 = vld [vmem:[#allocation2 + $0x1d0] sm:$0xff]
    %v275 = vld [vmem:[#allocation2 + $0x1d8] sm:$0xff]
    %v276 = vld [vmem:[#allocation2 + $0x1e0] sm:$0xff]
    %v277 = vld [vmem:[#allocation2 + $0x1e8] sm:$0xff]
    %v278 = vld [vmem:[#allocation2 + $0x1f0] sm:$0xff]
    %v279 = vld [vmem:[#allocation2 + $0x1f8] sm:$0xff]
    %v280 = vld [vmem:[#allocation2 + $0x200] sm:$0xff]
    %v281 = vld [vmem:[#allocation2 + $0x208] sm:$0xff]
    %v282 = vld [vmem:[#allocation2 + $0x210] sm:$0xff]
    %v283 = vld [vmem:[#allocation2 + $0x218] sm:$0xff]
    %v284 = vld [vmem:[#allocation2 + $0x220] sm:$0xff]
    %v285 = vld [vmem:[#allocation2 + $0x228] sm:$0xff]
    %v286 = vld [vmem:[#allocation2 + $0x230] sm:$0xff]
    %v287 = vld [vmem:[#allocation2 + $0x238] sm:$0xff]
    %v288 = vld [vmem:[#allocation2 + $0x240] sm:$0xff]
    %v289 = vld [vmem:[#allocation2 + $0x248] sm:$0xff]
    %v290 = vld [vmem:[#allocation2 + $0x250] sm:$0xff]
    %v291 = vld [vmem:[#allocation2 + $0x258] sm:$0xff]
    %v292 = vld [vmem:[#allocation2 + $0x260] sm:$0xff]
    %v293 = vld [vmem:[#allocation2 + $0x268] sm:$0xff]
    %v294 = vld [vmem:[#allocation2 + $0x270] sm:$0xff]
    %v295 = vld [vmem:[#allocation2 + $0x278] sm:$0xff]
    %v296 = vld [vmem:[#allocation2 + $0x280] sm:$0xff]
    %v297 = vld [vmem:[#allocation2 + $0x288] sm:$0xff]
    %v298 = vld [vmem:[#allocation2 + $0x290] sm:$0xff]
    %v299 = vld [vmem:[#allocation2 + $0x298] sm:$0xff]
    %v300 = vld [vmem:[#allocation2 + $0x2a0] sm:$0xff]
    %v301 = vld [vmem:[#allocation2 + $0x2a8] sm:$0xff]
    %v302 = vld [vmem:[#allocation2 + $0x2b0] sm:$0xff]
    %v303 = vld [vmem:[#allocation2 + $0x2b8] sm:$0xff]
    %v304 = vld [vmem:[#allocation2 + $0x2c0] sm:$0xff]
    %v305 = vld [vmem:[#allocation2 + $0x2c8] sm:$0xff]
    %v306 = vld [vmem:[#allocation2 + $0x2d0] sm:$0xff]
    %v307 = vld [vmem:[#allocation2 + $0x2d8] sm:$0xff]
    %v308 = vld [vmem:[#allocation2 + $0x2e0] sm:$0xff]
    %v309 = vld [vmem:[#allocation2 + $0x2e8] sm:$0xff]
    %v310 = vld [vmem:[#allocation2 + $0x2f0] sm:$0xff]
    %v311 = vld [vmem:[#allocation2 + $0x2f8] sm:$0xff]
    %v312 = vld [vmem:[#allocation2 + $0x300] sm:$0xff]
    %v313 = vld [vmem:[#allocation2 + $0x308] sm:$0xff]
    %v412 = vunpack.c.l.b16 %v216
    %v413 = vunpack.c.h.b16 %v216
    %v414 = vunpack.c.l.b16 %v217
    %v415 = vunpack.c.h.b16 %v217
    %v416 = vunpack.c.l.b16 %v218
    %v417 = vunpack.c.h.b16 %v218
    %v418 = vunpack.c.l.b16 %v219
    %v419 = vunpack.c.h.b16 %v219
    %v420 = vunpack.c.l.b16 %v220
    %v421 = vunpack.c.h.b16 %v220
    %v422 = vunpack.c.l.b16 %v221
    %v423 = vunpack.c.h.b16 %v221
    %v424 = vunpack.c.l.b16 %v222
    %v425 = vunpack.c.h.b16 %v222
    %v426 = vunpack.c.l.b16 %v223
    %v427 = vunpack.c.h.b16 %v223
    %v428 = vunpack.c.l.b16 %v224
    %v429 = vunpack.c.h.b16 %v224
    %v430 = vunpack.c.l.b16 %v225
    %v431 = vunpack.c.h.b16 %v225
    %v432 = vunpack.c.l.b16 %v226
    %v433 = vunpack.c.h.b16 %v226
    %v434 = vunpack.c.l.b16 %v227
    %v435 = vunpack.c.h.b16 %v227
    %v436 = vunpack.c.l.b16 %v228
    %v437 = vunpack.c.h.b16 %v228
    %v438 = vunpack.c.l.b16 %v229
    %v439 = vunpack.c.h.b16 %v229
    %v440 = vunpack.c.l.b16 %v230
    %v441 = vunpack.c.h.b16 %v230
    %v442 = vunpack.c.l.b16 %v231
    %v443 = vunpack.c.h.b16 %v231
    %v444 = vunpack.c.l.b16 %v232
    %v445 = vunpack.c.h.b16 %v232
    %v446 = vunpack.c.l.b16 %v233
    %v447 = vunpack.c.h.b16 %v233
    %v448 = vunpack.c.l.b16 %v234
    %v449 = vunpack.c.h.b16 %v234
    %v450 = vunpack.c.l.b16 %v235
    %v451 = vunpack.c.h.b16 %v235
    %v452 = vunpack.c.l.b16 %v236
    %v453 = vunpack.c.h.b16 %v236
    %v454 = vunpack.c.l.b16 %v237
    %v455 = vunpack.c.h.b16 %v237
    %v456 = vunpack.c.l.b16 %v238
    %v457 = vunpack.c.h.b16 %v238
    %v458 = vunpack.c.l.b16 %v239
    %v459 = vunpack.c.h.b16 %v239
    %v460 = vunpack.c.l.b16 %v240
    %v461 = vunpack.c.h.b16 %v240
    %v462 = vunpack.c.l.b16 %v241
    %v463 = vunpack.c.h.b16 %v241
    %v464 = vunpack.c.l.b16 %v242
    %v465 = vunpack.c.h.b16 %v242
    %v466 = vunpack.c.l.b16 %v243
    %v467 = vunpack.c.h.b16 %v243
    %v468 = vunpack.c.l.b16 %v244
    %v469 = vunpack.c.h.b16 %v244
    %v470 = vunpack.c.l.b16 %v245
    %v471 = vunpack.c.h.b16 %v245
    %v472 = vunpack.c.l.b16 %v246
    %v473 = vunpack.c.h.b16 %v246
    %v474 = vunpack.c.l.b16 %v247
    %v475 = vunpack.c.h.b16 %v247
    %v476 = vunpack.c.l.b16 %v248
    %v477 = vunpack.c.h.b16 %v248
    %v478 = vunpack.c.l.b16 %v249
    %v479 = vunpack.c.h.b16 %v249
    %v480 = vunpack.c.l.b16 %v250
    %v481 = vunpack.c.h.b16 %v250
    %v482 = vunpack.c.l.b16 %v251
    %v483 = vunpack.c.h.b16 %v251
    %v484 = vunpack.c.l.b16 %v252
    %v485 = vunpack.c.h.b16 %v252
    %v486 = vunpack.c.l.b16 %v253
    %v487 = vunpack.c.h.b16 %v253
    %v488 = vunpack.c.l.b16 %v254
    %v489 = vunpack.c.h.b16 %v254
    %v490 = vunpack.c.l.b16 %v255
    %v491 = vunpack.c.h.b16 %v255
    %v492 = vunpack.c.l.b16 %v256
    %v493 = vunpack.c.h.b16 %v256
    %v494 = vunpack.c.l.b16 %v257
    %v495 = vunpack.c.h.b16 %v257
    %v496 = vunpack.c.l.b16 %v258
    %v497 = vunpack.c.h.b16 %v258
    %v498 = vunpack.c.l.b16 %v259
    %v499 = vunpack.c.h.b16 %v259
    %v500 = vunpack.c.l.b16 %v260
    %v501 = vunpack.c.h.b16 %v260
    %v502 = vunpack.c.l.b16 %v261
    %v503 = vunpack.c.h.b16 %v261
    %v504 = vunpack.c.l.b16 %v262
    %v505 = vunpack.c.h.b16 %v262
    %v506 = vunpack.c.l.b16 %v263
    %v507 = vunpack.c.h.b16 %v263
    %v508 = vunpack.c.l.b16 %v264
    %v509 = vunpack.c.h.b16 %v264
    %v510 = vunpack.c.l.b16 %v265
    %v511 = vunpack.c.h.b16 %v265
    %v512 = vunpack.c.l.b16 %v266
    %v513 = vunpack.c.h.b16 %v266
    %v514 = vunpack.c.l.b16 %v267
    %v515 = vunpack.c.h.b16 %v267
    %v516 = vunpack.c.l.b16 %v268
    %v517 = vunpack.c.h.b16 %v268
    %v518 = vunpack.c.l.b16 %v269
    %v519 = vunpack.c.h.b16 %v269
    %v520 = vunpack.c.l.b16 %v270
    %v521 = vunpack.c.h.b16 %v270
    %v522 = vunpack.c.l.b16 %v271
    %v523 = vunpack.c.h.b16 %v271
    %v524 = vunpack.c.l.b16 %v272
    %v525 = vunpack.c.h.b16 %v272
    %v526 = vunpack.c.l.b16 %v273
    %v527 = vunpack.c.h.b16 %v273
    %v528 = vunpack.c.l.b16 %v274
    %v529 = vunpack.c.h.b16 %v274
    %v530 = vunpack.c.l.b16 %v275
    %v531 = vunpack.c.h.b16 %v275
    %v532 = vunpack.c.l.b16 %v276
    %v533 = vunpack.c.h.b16 %v276
    %v534 = vunpack.c.l.b16 %v277
    %v535 = vunpack.c.h.b16 %v277
    %v536 = vunpack.c.l.b16 %v278
    %v537 = vunpack.c.h.b16 %v278
    %v538 = vunpack.c.l.b16 %v279
    %v539 = vunpack.c.h.b16 %v279
    %v540 = vunpack.c.l.b16 %v280
    %v541 = vunpack.c.h.b16 %v280
    %v542 = vunpack.c.l.b16 %v281
    %v543 = vunpack.c.h.b16 %v281
    %v544 = vunpack.c.l.b16 %v282
    %v545 = vunpack.c.h.b16 %v282
    %v546 = vunpack.c.l.b16 %v283
    %v547 = vunpack.c.h.b16 %v283
    %v548 = vunpack.c.l.b16 %v284
    %v549 = vunpack.c.h.b16 %v284
    %v550 = vunpack.c.l.b16 %v285
    %v551 = vunpack.c.h.b16 %v285
    %v552 = vunpack.c.l.b16 %v286
    %v553 = vunpack.c.h.b16 %v286
    %v554 = vunpack.c.l.b16 %v287
    %v555 = vunpack.c.h.b16 %v287
    %v556 = vunpack.c.l.b16 %v288
    %v557 = vunpack.c.h.b16 %v288
    %v558 = vunpack.c.l.b16 %v289
    %v559 = vunpack.c.h.b16 %v289
    %v560 = vunpack.c.l.b16 %v290
    %v561 = vunpack.c.h.b16 %v290
    %v562 = vunpack.c.l.b16 %v291
    %v563 = vunpack.c.h.b16 %v291
    %v564 = vunpack.c.l.b16 %v292
    %v565 = vunpack.c.h.b16 %v292
    %v566 = vunpack.c.l.b16 %v293
    %v567 = vunpack.c.h.b16 %v293
    %v568 = vunpack.c.l.b16 %v294
    %v569 = vunpack.c.h.b16 %v294
    %v570 = vunpack.c.l.b16 %v295
    %v571 = vunpack.c.h.b16 %v295
    %v572 = vunpack.c.l.b16 %v296
    %v573 = vunpack.c.h.b16 %v296
    %v574 = vunpack.c.l.b16 %v297
    %v575 = vunpack.c.h.b16 %v297
    %v576 = vunpack.c.l.b16 %v298
    %v577 = vunpack.c.h.b16 %v298
    %v578 = vunpack.c.l.b16 %v299
    %v579 = vunpack.c.h.b16 %v299
    %v580 = vunpack.c.l.b16 %v300
    %v581 = vunpack.c.h.b16 %v300
    %v582 = vunpack.c.l.b16 %v301
    %v583 = vunpack.c.h.b16 %v301
    %v584 = vunpack.c.l.b16 %v302
    %v585 = vunpack.c.h.b16 %v302
    %v586 = vunpack.c.l.b16 %v303
    %v587 = vunpack.c.h.b16 %v303
    %v588 = vunpack.c.l.b16 %v304
    %v589 = vunpack.c.h.b16 %v304
    %v590 = vunpack.c.l.b16 %v305
    %v591 = vunpack.c.h.b16 %v305
    %v592 = vunpack.c.l.b16 %v306
    %v593 = vunpack.c.h.b16 %v306
    %v594 = vunpack.c.l.b16 %v307
    %v595 = vunpack.c.h.b16 %v307
    %v596 = vunpack.c.l.b16 %v308
    %v597 = vunpack.c.h.b16 %v308
    %v598 = vunpack.c.l.b16 %v309
    %v599 = vunpack.c.h.b16 %v309
    %v600 = vunpack.c.l.b16 %v310
    %v601 = vunpack.c.h.b16 %v310
    %v602 = vunpack.c.l.b16 %v311
    %v603 = vunpack.c.h.b16 %v311
    %v604 = vunpack.c.l.b16 %v312
    %v605 = vunpack.c.h.b16 %v312
    %v606 = vunpack.c.l.b16 %v313
    %v607 = vunpack.c.h.b16 %v313
    %v608 = vpack.c.b16 %v414, %v412
    %v609 = vpack.c.b16 %v415, %v413
    %v610 = vpack.c.b16 %v418, %v416
    %v611 = vpack.c.b16 %v419, %v417
    %v612 = vpack.c.b16 %v422, %v420
    %v613 = vpack.c.b16 %v423, %v421
    %v614 = vpack.c.b16 %v426, %v424
    %v615 = vpack.c.b16 %v427, %v425
    %v616 = vpack.c.b16 %v430, %v428
    %v617 = vpack.c.b16 %v431, %v429
    %v618 = vpack.c.b16 %v434, %v432
    %v619 = vpack.c.b16 %v435, %v433
    %v620 = vpack.c.b16 %v438, %v436
    %v621 = vpack.c.b16 %v439, %v437
    %v622 = vpack.c.b16 %v442, %v440
    %v623 = vpack.c.b16 %v443, %v441
    %v624 = vpack.c.b16 %v446, %v444
    %v625 = vpack.c.b16 %v447, %v445
    %v626 = vpack.c.b16 %v450, %v448
    %v627 = vpack.c.b16 %v451, %v449
    %v628 = vpack.c.b16 %v454, %v452
    %v629 = vpack.c.b16 %v455, %v453
    %v630 = vpack.c.b16 %v458, %v456
    %v631 = vpack.c.b16 %v459, %v457
    %v632 = vpack.c.b16 %v462, %v460
    %v633 = vpack.c.b16 %v463, %v461
    %v634 = vpack.c.b16 %v466, %v464
    %v635 = vpack.c.b16 %v467, %v465
    %v636 = vpack.c.b16 %v470, %v468
    %v637 = vpack.c.b16 %v471, %v469
    %v638 = vpack.c.b16 %v474, %v472
    %v639 = vpack.c.b16 %v475, %v473
    %v640 = vpack.c.b16 %v478, %v476
    %v641 = vpack.c.b16 %v479, %v477
    %v642 = vpack.c.b16 %v482, %v480
    %v643 = vpack.c.b16 %v483, %v481
    %v644 = vpack.c.b16 %v486, %v484
    %v645 = vpack.c.b16 %v487, %v485
    %v646 = vpack.c.b16 %v490, %v488
    %v647 = vpack.c.b16 %v491, %v489
    %v648 = vpack.c.b16 %v494, %v492
    %v649 = vpack.c.b16 %v495, %v493
    %v650 = vpack.c.b16 %v498, %v496
    %v651 = vpack.c.b16 %v499, %v497
    %v652 = vpack.c.b16 %v502, %v500
    %v653 = vpack.c.b16 %v503, %v501
    %v654 = vpack.c.b16 %v506, %v504
    %v655 = vpack.c.b16 %v507, %v505
    %v656 = vpack.c.b16 %v510, %v508
    %v657 = vpack.c.b16 %v511, %v509
    %v658 = vpack.c.b16 %v514, %v512
    %v659 = vpack.c.b16 %v515, %v513
    %v660 = vpack.c.b16 %v518, %v516
    %v661 = vpack.c.b16 %v519, %v517
    %v662 = vpack.c.b16 %v522, %v520
    %v663 = vpack.c.b16 %v523, %v521
    %v664 = vpack.c.b16 %v526, %v524
    %v665 = vpack.c.b16 %v527, %v525
    %v666 = vpack.c.b16 %v530, %v528
    %v667 = vpack.c.b16 %v531, %v529
    %v668 = vpack.c.b16 %v534, %v532
    %v669 = vpack.c.b16 %v535, %v533
    %v670 = vpack.c.b16 %v538, %v536
    %v671 = vpack.c.b16 %v539, %v537
    %v672 = vpack.c.b16 %v542, %v540
    %v673 = vpack.c.b16 %v543, %v541
    %v674 = vpack.c.b16 %v546, %v544
    %v675 = vpack.c.b16 %v547, %v545
    %v676 = vpack.c.b16 %v550, %v548
    %v677 = vpack.c.b16 %v551, %v549
    %v678 = vpack.c.b16 %v554, %v552
    %v679 = vpack.c.b16 %v555, %v553
    %v680 = vpack.c.b16 %v558, %v556
    %v681 = vpack.c.b16 %v559, %v557
    %v682 = vpack.c.b16 %v562, %v560
    %v683 = vpack.c.b16 %v563, %v561
    %v684 = vpack.c.b16 %v566, %v564
    %v685 = vpack.c.b16 %v567, %v565
    %v686 = vpack.c.b16 %v570, %v568
    %v687 = vpack.c.b16 %v571, %v569
    %v688 = vpack.c.b16 %v574, %v572
    %v689 = vpack.c.b16 %v575, %v573
    %v690 = vpack.c.b16 %v578, %v576
    %v691 = vpack.c.b16 %v579, %v577
    %v692 = vpack.c.b16 %v582, %v580
    %v693 = vpack.c.b16 %v583, %v581
    %v694 = vpack.c.b16 %v586, %v584
    %v695 = vpack.c.b16 %v587, %v585
    %v696 = vpack.c.b16 %v590, %v588
    %v697 = vpack.c.b16 %v591, %v589
    %v698 = vpack.c.b16 %v594, %v592
    %v699 = vpack.c.b16 %v595, %v593
    %v700 = vpack.c.b16 %v598, %v596
    %v701 = vpack.c.b16 %v599, %v597
    %v702 = vpack.c.b16 %v602, %v600
    %v703 = vpack.c.b16 %v603, %v601
    %v704 = vpack.c.b16 %v606, %v604
    %v705 = vpack.c.b16 %v607, %v605
    %vm804 = vcmask 130048
    %v806 = vsel %vm804, %v215, 0
    %808 = vmatprep.subr.bf16.mxu0 %v609
    %809 = vmatpush1.bf16.msra.mxu0 %v608
    %810 = vmatprep.subr.bf16.mxu0 %v611
    %811 = vmatpush1.bf16.msra.mxu0 %v610
    %812 = vmatprep.subr.bf16.mxu0 %v613
    %813 = vmatpush1.bf16.msra.mxu0 %v612
    %814 = vmatprep.subr.bf16.mxu0 %v615
    %815 = vmatpush1.bf16.msra.mxu0 %v614
    %816 = vmatprep.subr.bf16.mxu0 %v617
    %817 = vmatpush1.bf16.msra.mxu0 %v616
    %818 = vmatprep.subr.bf16.mxu0 %v619
    %819 = vmatpush1.bf16.msra.mxu0 %v618
    %820 = vmatprep.subr.bf16.mxu0 %v621
    %821 = vmatpush1.bf16.msra.mxu0 %v620
    %822 = vmatprep.subr.bf16.mxu0 %v623
    %823 = vmatpush1.bf16.msra.mxu0 %v622
    %824 = vmatprep.subr.bf16.mxu0 %v625
    %825 = vmatpush1.bf16.msra.mxu0 %v624
    %826 = vmatprep.subr.bf16.mxu0 %v627
    %827 = vmatpush1.bf16.msra.mxu0 %v626
    %828 = vmatprep.subr.bf16.mxu0 %v629
    %829 = vmatpush1.bf16.msra.mxu0 %v628
    %830 = vmatprep.subr.bf16.mxu0 %v631
    %831 = vmatpush1.bf16.msra.mxu0 %v630
    %832 = vmatprep.subr.bf16.mxu0 %v633
    %833 = vmatpush1.bf16.msra.mxu0 %v632
    %834 = vmatprep.subr.bf16.mxu0 %v635
    %835 = vmatpush1.bf16.msra.mxu0 %v634
    %836 = vmatprep.subr.bf16.mxu0 %v637
    %837 = vmatpush1.bf16.msra.mxu0 %v636
    %838 = vmatprep.subr.bf16.mxu0 %v639
    %839 = vmatpush1.bf16.msra.mxu0 %v638
    %840 = vmatprep.mubr.bf16.mxu0 %v210
    %841 = vmatmul.mubr.bf16.gmra.mrb[0].mxu0 %v209
    %v842 = vpop.f32.mrb[0].mxu0
    %v843 = vadd.f32 0.0, %v842
    %v844 = vpop.f32.mrb[0].mxu0
    %v845 = vadd.f32 0.0, %v844
    %v846 = vpop.f32.mrb[0].mxu0
    %v847 = vpop.f32.mrb[0].mxu0
    %848 = vdwg.mxu0
    %849 = vmatprep.subr.bf16.mxu0 %v641
    %850 = vmatpush1.bf16.msra.mxu0 %v640
    %851 = vmatprep.subr.bf16.mxu0 %v643
    %852 = vmatpush1.bf16.msra.mxu0 %v642
    %853 = vmatprep.subr.bf16.mxu0 %v645
    %854 = vmatpush1.bf16.msra.mxu0 %v644
    %855 = vmatprep.subr.bf16.mxu0 %v647
    %856 = vmatpush1.bf16.msra.mxu0 %v646
    %857 = vmatprep.subr.bf16.mxu0 %v649
    %858 = vmatpush1.bf16.msra.mxu0 %v648
    %859 = vmatprep.subr.bf16.mxu0 %v651
    %860 = vmatpush1.bf16.msra.mxu0 %v650
    %861 = vmatprep.subr.bf16.mxu0 %v653
    %862 = vmatpush1.bf16.msra.mxu0 %v652
    %863 = vmatprep.subr.bf16.mxu0 %v655
    %864 = vmatpush1.bf16.msra.mxu0 %v654
    %865 = vmatprep.subr.bf16.mxu0 %v657
    %866 = vmatpush1.bf16.msra.mxu0 %v656
    %867 = vmatprep.subr.bf16.mxu0 %v659
    %868 = vmatpush1.bf16.msra.mxu0 %v658
    %869 = vmatprep.subr.bf16.mxu0 %v661
    %870 = vmatpush1.bf16.msra.mxu0 %v660
    %871 = vmatprep.subr.bf16.mxu0 %v663
    %872 = vmatpush1.bf16.msra.mxu0 %v662
    %873 = vmatprep.subr.bf16.mxu0 %v665
    %874 = vmatpush1.bf16.msra.mxu0 %v664
    %875 = vmatprep.subr.bf16.mxu0 %v667
    %876 = vmatpush1.bf16.msra.mxu0 %v666
    %877 = vmatprep.subr.bf16.mxu0 %v669
    %878 = vmatpush1.bf16.msra.mxu0 %v668
    %879 = vmatprep.subr.bf16.mxu0 %v671
    %880 = vmatpush1.bf16.msra.mxu0 %v670
    %881 = vmatprep.mubr.bf16.mxu0 %v212
    %882 = vmatmul.mubr.bf16.gmra.mrb[0].mxu0 %v211
    %v883 = vpop.f32.mrb[0].mxu0
    %v884 = vadd.f32 %v843, %v883
    %v885 = vpop.f32.mrb[0].mxu0
    %v886 = vadd.f32 %v845, %v885
    %v887 = vpop.f32.mrb[0].mxu0
    %v888 = vpop.f32.mrb[0].mxu0
    %889 = vdwg.mxu0
    %890 = vmatprep.subr.bf16.mxu0 %v673
    %891 = vmatpush1.bf16.msra.mxu0 %v672
    %892 = vmatprep.subr.bf16.mxu0 %v675
    %893 = vmatpush1.bf16.msra.mxu0 %v674
    %894 = vmatprep.subr.bf16.mxu0 %v677
    %895 = vmatpush1.bf16.msra.mxu0 %v676
    %896 = vmatprep.subr.bf16.mxu0 %v679
    %897 = vmatpush1.bf16.msra.mxu0 %v678
    %898 = vmatprep.subr.bf16.mxu0 %v681
    %899 = vmatpush1.bf16.msra.mxu0 %v680
    %900 = vmatprep.subr.bf16.mxu0 %v683
    %901 = vmatpush1.bf16.msra.mxu0 %v682
    %902 = vmatprep.subr.bf16.mxu0 %v685
    %903 = vmatpush1.bf16.msra.mxu0 %v684
    %904 = vmatprep.subr.bf16.mxu0 %v687
    %905 = vmatpush1.bf16.msra.mxu0 %v686
    %906 = vmatprep.subr.bf16.mxu0 %v689
    %907 = vmatpush1.bf16.msra.mxu0 %v688
    %908 = vmatprep.subr.bf16.mxu0 %v691
    %909 = vmatpush1.bf16.msra.mxu0 %v690
    %910 = vmatprep.subr.bf16.mxu0 %v693
    %911 = vmatpush1.bf16.msra.mxu0 %v692
    %912 = vmatprep.subr.bf16.mxu0 %v695
    %913 = vmatpush1.bf16.msra.mxu0 %v694
    %914 = vmatprep.subr.bf16.mxu0 %v697
    %915 = vmatpush1.bf16.msra.mxu0 %v696
    %916 = vmatprep.subr.bf16.mxu0 %v699
    %917 = vmatpush1.bf16.msra.mxu0 %v698
    %918 = vmatprep.subr.bf16.mxu0 %v701
    %919 = vmatpush1.bf16.msra.mxu0 %v700
    %920 = vmatprep.subr.bf16.mxu0 %v703
    %921 = vmatpush1.bf16.msra.mxu0 %v702
    %922 = vmatprep.mubr.bf16.mxu0 %v214
    %923 = vmatmul.mubr.bf16.gmra.mrb[0].mxu0 %v213
    %v924 = vpop.f32.mrb[0].mxu0
    %v925 = vadd.f32 %v884, %v924
    %v926 = vpop.f32.mrb[0].mxu0
    %v927 = vadd.f32 %v886, %v926
    %v928 = vpop.f32.mrb[0].mxu0
    %v929 = vpop.f32.mrb[0].mxu0
    %930 = vdwg.mxu0
    %931 = vmatprep.subr.bf16.mxu0 %v705
    %932 = vmatpush1.bf16.msra.mxu0 %v704
    %933 = vmatprep.subr.bf16.mxu0 0
    %934 = vmatpush1.bf16.msra.mxu0 0
    %935 = vmatprep.subr.bf16.mxu0 0
    %936 = vmatpush1.bf16.msra.mxu0 0
    %937 = vmatprep.subr.bf16.mxu0 0
    %938 = vmatpush1.bf16.msra.mxu0 0
    %939 = vmatprep.subr.bf16.mxu0 0
    %940 = vmatpush1.bf16.msra.mxu0 0
    %941 = vmatprep.subr.bf16.mxu0 0
    %942 = vmatpush1.bf16.msra.mxu0 0
    %943 = vmatprep.subr.bf16.mxu0 0
    %944 = vmatpush1.bf16.msra.mxu0 0
    %945 = vmatprep.subr.bf16.mxu0 0
    %946 = vmatpush1.bf16.msra.mxu0 0
    %947 = vmatprep.subr.bf16.mxu0 0
    %948 = vmatpush1.bf16.msra.mxu0 0
    %949 = vmatprep.subr.bf16.mxu0 0
    %950 = vmatpush1.bf16.msra.mxu0 0
    %951 = vmatprep.subr.bf16.mxu0 0
    %952 = vmatpush1.bf16.msra.mxu0 0
    %953 = vmatprep.subr.bf16.mxu0 0
    %954 = vmatpush1.bf16.msra.mxu0 0
    %955 = vmatprep.subr.bf16.mxu0 0
    %956 = vmatpush1.bf16.msra.mxu0 0
    %957 = vmatprep.subr.bf16.mxu0 0
    %958 = vmatpush1.bf16.msra.mxu0 0
    %959 = vmatprep.subr.bf16.mxu0 0
    %960 = vmatpush1.bf16.msra.mxu0 0
    %961 = vmatprep.subr.bf16.mxu0 0
    %962 = vmatpush1.bf16.msra.mxu0 0
    %963 = vmatprep.mubr.bf16.mxu0 0
    %964 = vmatmul.mubr.bf16.gmra.mrb[0].mxu0 %v806
    %v965 = vpop.f32.mrb[0].mxu0
    %v966 = vadd.f32 %v925, %v965
    %v967 = vpop.f32.mrb[0].mxu0
    %v968 = vadd.f32 %v927, %v967
    %v969 = vpop.f32.mrb[0].mxu0
    %v970 = vpop.f32.mrb[0].mxu0
    %971 = vdwg.mxu0
    %v973 = vlaneseq
    %v974 = vshrl.u32 %v973, 7
    %v975 = vsub.s32 0, %v974
    %v976 = vrot.slane %v166, %v975
    %v977 = vlaneseq
    %v978 = vshrl.u32 %v977, 7
    %v979 = vsub.s32 1, %v978
    %v980 = vrot.slane %v166, %v979
    %v983 = vadd.f32 %v976, %v966
    %v984 = vadd.f32 %v980, %v968
    %v985 = vmul.f32 %v164, 2.0
    %v986 = vmul.f32 %v165, 2.0
    %v987 = vmul.f32 %v985, %v164
    %v988 = vmul.f32 %v986, %v165
    %v989 = vsub.f32 %v987, 1.0
    %v990 = vsub.f32 %v988, 1.0
    %v993 = vcombine.high %v989, %v989
    %v995 = vunpack.c.l.s4 1983009808
    %v996 = vunpack.c.0.s8 %v995
    %v997 = vlaneseq
    %v998 = vshrl.u32 %v997, 7
    %v999 = vsub.s32 %v996, %v998
    %v1000 = vrot.slane %v989, %v999
    %v1002 = vunpack.c.l.s4 1983009808
    %v1003 = vunpack.c.0.s8 %v1002
    %v1004 = vlaneseq
    %v1005 = vshrl.u32 %v1004, 7
    %v1006 = vsub.s32 %v1003, %v1005
    %v1007 = vrot.slane %v993, %v1006
    %v1008 = vcombine.high %v1000, %v1000
    %v1009 = vcombine.high %v1007, %v1007
    %v1010 = vcombine.high %v990, %v990
    %v1012 = vunpack.c.l.s4 1983009808
    %v1013 = vunpack.c.0.s8 %v1012
    %v1014 = vlaneseq
    %v1015 = vshrl.u32 %v1014, 7
    %v1016 = vsub.s32 %v1013, %v1015
    %v1017 = vrot.slane %v990, %v1016
    %v1019 = vunpack.c.l.s4 1983009808
    %v1020 = vunpack.c.0.s8 %v1019
    %v1021 = vlaneseq
    %v1022 = vshrl.u32 %v1021, 7
    %v1023 = vsub.s32 %v1020, %v1022
    %v1024 = vrot.slane %v1010, %v1023
    %v1025 = vcombine.high %v1017, %v1017
    %v1033 = vpack.c.bf16 %v1000, %v1000
    %v1034 = vpack.c.bf16 %v1008, %v1008
    %v1035 = vpack.c.bf16 %v1007, %v1007
    %v1036 = vpack.c.bf16 %v1009, %v1009
    %v1037 = vpack.c.bf16 %v1017, %v1017
    %v1038 = vpack.c.bf16 %v1025, %v1025
    %v1039 = vpack.c.bf16 %v1024, %v1024
    %s1040 = scalar_lea.vmem [#allocation2], 784
    %v1041 = vld [vmem:[%s1040] sm:$0xff]
    %v1042 = vld [vmem:[%s1040 + $0x8] sm:$0xff]
    %v1043 = vld [vmem:[%s1040 + $0x10] sm:$0xff]
    %v1044 = vld [vmem:[%s1040 + $0x18] sm:$0xff]
    %v1045 = vld [vmem:[%s1040 + $0x20] sm:$0xff]
    %v1046 = vld [vmem:[%s1040 + $0x28] sm:$0xff]
    %v1047 = vld [vmem:[%s1040 + $0x30] sm:$0xff]
    %v1048 = vld [vmem:[%s1040 + $0x38] sm:$0xff]
    %v1049 = vld [vmem:[%s1040 + $0x40] sm:$0xff]
    %v1050 = vld [vmem:[%s1040 + $0x48] sm:$0xff]
    %v1051 = vld [vmem:[%s1040 + $0x50] sm:$0xff]
    %v1052 = vld [vmem:[%s1040 + $0x58] sm:$0xff]
    %v1053 = vld [vmem:[%s1040 + $0x60] sm:$0xff]
    %v1054 = vld [vmem:[%s1040 + $0x68] sm:$0xff]
    %v1055 = vld [vmem:[%s1040 + $0x70] sm:$0xff]
    %v1056 = vld [vmem:[%s1040 + $0x78] sm:$0xff]
    %v1057 = vld [vmem:[%s1040 + $0x80] sm:$0xff]
    %v1058 = vld [vmem:[%s1040 + $0x88] sm:$0xff]
    %v1059 = vld [vmem:[%s1040 + $0x90] sm:$0xff]
    %v1060 = vld [vmem:[%s1040 + $0x98] sm:$0xff]
    %v1061 = vld [vmem:[%s1040 + $0xa0] sm:$0xff]
    %v1062 = vld [vmem:[%s1040 + $0xa8] sm:$0xff]
    %v1063 = vld [vmem:[%s1040 + $0xb0] sm:$0xff]
    %v1064 = vld [vmem:[%s1040 + $0xb8] sm:$0xff]
    %v1065 = vld [vmem:[%s1040 + $0xc0] sm:$0xff]
    %v1066 = vld [vmem:[%s1040 + $0xc8] sm:$0xff]
    %v1067 = vld [vmem:[%s1040 + $0xd0] sm:$0xff]
    %v1068 = vld [vmem:[%s1040 + $0xd8] sm:$0xff]
    %v1069 = vld [vmem:[%s1040 + $0xe0] sm:$0xff]
    %v1070 = vld [vmem:[%s1040 + $0xe8] sm:$0xff]
    %v1071 = vld [vmem:[%s1040 + $0xf0] sm:$0xff]
    %v1072 = vld [vmem:[%s1040 + $0xf8] sm:$0xff]
    %v1073 = vld [vmem:[%s1040 + $0x100] sm:$0xff]
    %v1074 = vld [vmem:[%s1040 + $0x108] sm:$0xff]
    %v1075 = vld [vmem:[%s1040 + $0x110] sm:$0xff]
    %v1076 = vld [vmem:[%s1040 + $0x118] sm:$0xff]
    %v1077 = vld [vmem:[%s1040 + $0x120] sm:$0xff]
    %v1078 = vld [vmem:[%s1040 + $0x128] sm:$0xff]
    %v1079 = vld [vmem:[%s1040 + $0x130] sm:$0xff]
    %v1080 = vld [vmem:[%s1040 + $0x138] sm:$0xff]
    %v1081 = vld [vmem:[%s1040 + $0x140] sm:$0xff]
    %v1082 = vld [vmem:[%s1040 + $0x148] sm:$0xff]
    %v1083 = vld [vmem:[%s1040 + $0x150] sm:$0xff]
    %v1084 = vld [vmem:[%s1040 + $0x158] sm:$0xff]
    %v1085 = vld [vmem:[%s1040 + $0x160] sm:$0xff]
    %v1086 = vld [vmem:[%s1040 + $0x168] sm:$0xff]
    %v1087 = vld [vmem:[%s1040 + $0x170] sm:$0xff]
    %v1088 = vld [vmem:[%s1040 + $0x178] sm:$0xff]
    %v1089 = vld [vmem:[%s1040 + $0x180] sm:$0xff]
    %v1090 = vld [vmem:[%s1040 + $0x188] sm:$0xff]
    %v1091 = vld [vmem:[%s1040 + $0x190] sm:$0xff]
    %v1092 = vld [vmem:[%s1040 + $0x198] sm:$0xff]
    %v1093 = vld [vmem:[%s1040 + $0x1a0] sm:$0xff]
    %v1094 = vld [vmem:[%s1040 + $0x1a8] sm:$0xff]
    %v1095 = vld [vmem:[%s1040 + $0x1b0] sm:$0xff]
    %v1096 = vld [vmem:[%s1040 + $0x1b8] sm:$0xff]
    %v1097 = vld [vmem:[%s1040 + $0x1c0] sm:$0xff]
    %v1098 = vld [vmem:[%s1040 + $0x1c8] sm:$0xff]
    %v1099 = vld [vmem:[%s1040 + $0x1d0] sm:$0xff]
    %v1100 = vld [vmem:[%s1040 + $0x1d8] sm:$0xff]
    %v1101 = vld [vmem:[%s1040 + $0x1e0] sm:$0xff]
    %v1102 = vld [vmem:[%s1040 + $0x1e8] sm:$0xff]
    %v1103 = vld [vmem:[%s1040 + $0x1f0] sm:$0xff]
    %v1104 = vld [vmem:[%s1040 + $0x1f8] sm:$0xff]
    %v1105 = vld [vmem:[%s1040 + $0x200] sm:$0xff]
    %v1106 = vld [vmem:[%s1040 + $0x208] sm:$0xff]
    %v1107 = vld [vmem:[%s1040 + $0x210] sm:$0xff]
    %v1108 = vld [vmem:[%s1040 + $0x218] sm:$0xff]
    %v1109 = vld [vmem:[%s1040 + $0x220] sm:$0xff]
    %v1110 = vld [vmem:[%s1040 + $0x228] sm:$0xff]
    %v1111 = vld [vmem:[%s1040 + $0x230] sm:$0xff]
    %v1112 = vld [vmem:[%s1040 + $0x238] sm:$0xff]
    %v1113 = vld [vmem:[%s1040 + $0x240] sm:$0xff]
    %v1114 = vld [vmem:[%s1040 + $0x248] sm:$0xff]
    %v1115 = vld [vmem:[%s1040 + $0x250] sm:$0xff]
    %v1116 = vld [vmem:[%s1040 + $0x258] sm:$0xff]
    %v1117 = vld [vmem:[%s1040 + $0x260] sm:$0xff]
    %v1118 = vld [vmem:[%s1040 + $0x268] sm:$0xff]
    %v1119 = vld [vmem:[%s1040 + $0x270] sm:$0xff]
    %v1120 = vld [vmem:[%s1040 + $0x278] sm:$0xff]
    %v1121 = vld [vmem:[%s1040 + $0x280] sm:$0xff]
    %v1122 = vld [vmem:[%s1040 + $0x288] sm:$0xff]
    %v1123 = vld [vmem:[%s1040 + $0x290] sm:$0xff]
    %v1124 = vld [vmem:[%s1040 + $0x298] sm:$0xff]
    %v1125 = vld [vmem:[%s1040 + $0x2a0] sm:$0xff]
    %v1126 = vld [vmem:[%s1040 + $0x2a8] sm:$0xff]
    %v1127 = vld [vmem:[%s1040 + $0x2b0] sm:$0xff]
    %v1128 = vld [vmem:[%s1040 + $0x2b8] sm:$0xff]
    %v1129 = vld [vmem:[%s1040 + $0x2c0] sm:$0xff]
    %v1130 = vld [vmem:[%s1040 + $0x2c8] sm:$0xff]
    %v1131 = vld [vmem:[%s1040 + $0x2d0] sm:$0xff]
    %v1132 = vld [vmem:[%s1040 + $0x2d8] sm:$0xff]
    %v1133 = vld [vmem:[%s1040 + $0x2e0] sm:$0xff]
    %v1134 = vld [vmem:[%s1040 + $0x2e8] sm:$0xff]
    %v1135 = vld [vmem:[%s1040 + $0x2f0] sm:$0xff]
    %v1136 = vld [vmem:[%s1040 + $0x2f8] sm:$0xff]
    %v1137 = vld [vmem:[%s1040 + $0x300] sm:$0xff]
    %v1138 = vld [vmem:[%s1040 + $0x308] sm:$0xff]
    %v1237 = vunpack.c.l.b16 %v1041
    %v1238 = vunpack.c.h.b16 %v1041
    %v1239 = vunpack.c.l.b16 %v1042
    %v1240 = vunpack.c.h.b16 %v1042
    %v1241 = vunpack.c.l.b16 %v1043
    %v1242 = vunpack.c.h.b16 %v1043
    %v1243 = vunpack.c.l.b16 %v1044
    %v1244 = vunpack.c.h.b16 %v1044
    %v1245 = vunpack.c.l.b16 %v1045
    %v1246 = vunpack.c.h.b16 %v1045
    %v1247 = vunpack.c.l.b16 %v1046
    %v1248 = vunpack.c.h.b16 %v1046
    %v1249 = vunpack.c.l.b16 %v1047
    %v1250 = vunpack.c.h.b16 %v1047
    %v1251 = vunpack.c.l.b16 %v1048
    %v1252 = vunpack.c.h.b16 %v1048
    %v1253 = vunpack.c.l.b16 %v1049
    %v1254 = vunpack.c.h.b16 %v1049
    %v1255 = vunpack.c.l.b16 %v1050
    %v1256 = vunpack.c.h.b16 %v1050
    %v1257 = vunpack.c.l.b16 %v1051
    %v1258 = vunpack.c.h.b16 %v1051
    %v1259 = vunpack.c.l.b16 %v1052
    %v1260 = vunpack.c.h.b16 %v1052
    %v1261 = vunpack.c.l.b16 %v1053
    %v1262 = vunpack.c.h.b16 %v1053
    %v1263 = vunpack.c.l.b16 %v1054
    %v1264 = vunpack.c.h.b16 %v1054
    %v1265 = vunpack.c.l.b16 %v1055
    %v1266 = vunpack.c.h.b16 %v1055
    %v1267 = vunpack.c.l.b16 %v1056
    %v1268 = vunpack.c.h.b16 %v1056
    %v1269 = vunpack.c.l.b16 %v1057
    %v1270 = vunpack.c.h.b16 %v1057
    %v1271 = vunpack.c.l.b16 %v1058
    %v1272 = vunpack.c.h.b16 %v1058
    %v1273 = vunpack.c.l.b16 %v1059
    %v1274 = vunpack.c.h.b16 %v1059
    %v1275 = vunpack.c.l.b16 %v1060
    %v1276 = vunpack.c.h.b16 %v1060
    %v1277 = vunpack.c.l.b16 %v1061
    %v1278 = vunpack.c.h.b16 %v1061
    %v1279 = vunpack.c.l.b16 %v1062
    %v1280 = vunpack.c.h.b16 %v1062
    %v1281 = vunpack.c.l.b16 %v1063
    %v1282 = vunpack.c.h.b16 %v1063
    %v1283 = vunpack.c.l.b16 %v1064
    %v1284 = vunpack.c.h.b16 %v1064
    %v1285 = vunpack.c.l.b16 %v1065
    %v1286 = vunpack.c.h.b16 %v1065
    %v1287 = vunpack.c.l.b16 %v1066
    %v1288 = vunpack.c.h.b16 %v1066
    %v1289 = vunpack.c.l.b16 %v1067
    %v1290 = vunpack.c.h.b16 %v1067
    %v1291 = vunpack.c.l.b16 %v1068
    %v1292 = vunpack.c.h.b16 %v1068
    %v1293 = vunpack.c.l.b16 %v1069
    %v1294 = vunpack.c.h.b16 %v1069
    %v1295 = vunpack.c.l.b16 %v1070
    %v1296 = vunpack.c.h.b16 %v1070
    %v1297 = vunpack.c.l.b16 %v1071
    %v1298 = vunpack.c.h.b16 %v1071
    %v1299 = vunpack.c.l.b16 %v1072
    %v1300 = vunpack.c.h.b16 %v1072
    %v1301 = vunpack.c.l.b16 %v1073
    %v1302 = vunpack.c.h.b16 %v1073
    %v1303 = vunpack.c.l.b16 %v1074
    %v1304 = vunpack.c.h.b16 %v1074
    %v1305 = vunpack.c.l.b16 %v1075
    %v1306 = vunpack.c.h.b16 %v1075
    %v1307 = vunpack.c.l.b16 %v1076
    %v1308 = vunpack.c.h.b16 %v1076
    %v1309 = vunpack.c.l.b16 %v1077
    %v1310 = vunpack.c.h.b16 %v1077
    %v1311 = vunpack.c.l.b16 %v1078
    %v1312 = vunpack.c.h.b16 %v1078
    %v1313 = vunpack.c.l.b16 %v1079
    %v1314 = vunpack.c.h.b16 %v1079
    %v1315 = vunpack.c.l.b16 %v1080
    %v1316 = vunpack.c.h.b16 %v1080
    %v1317 = vunpack.c.l.b16 %v1081
    %v1318 = vunpack.c.h.b16 %v1081
    %v1319 = vunpack.c.l.b16 %v1082
    %v1320 = vunpack.c.h.b16 %v1082
    %v1321 = vunpack.c.l.b16 %v1083
    %v1322 = vunpack.c.h.b16 %v1083
    %v1323 = vunpack.c.l.b16 %v1084
    %v1324 = vunpack.c.h.b16 %v1084
    %v1325 = vunpack.c.l.b16 %v1085
    %v1326 = vunpack.c.h.b16 %v1085
    %v1327 = vunpack.c.l.b16 %v1086
    %v1328 = vunpack.c.h.b16 %v1086
    %v1329 = vunpack.c.l.b16 %v1087
    %v1330 = vunpack.c.h.b16 %v1087
    %v1331 = vunpack.c.l.b16 %v1088
    %v1332 = vunpack.c.h.b16 %v1088
    %v1333 = vunpack.c.l.b16 %v1089
    %v1334 = vunpack.c.h.b16 %v1089
    %v1335 = vunpack.c.l.b16 %v1090
    %v1336 = vunpack.c.h.b16 %v1090
    %v1337 = vunpack.c.l.b16 %v1091
    %v1338 = vunpack.c.h.b16 %v1091
    %v1339 = vunpack.c.l.b16 %v1092
    %v1340 = vunpack.c.h.b16 %v1092
    %v1341 = vunpack.c.l.b16 %v1093
    %v1342 = vunpack.c.h.b16 %v1093
    %v1343 = vunpack.c.l.b16 %v1094
    %v1344 = vunpack.c.h.b16 %v1094
    %v1345 = vunpack.c.l.b16 %v1095
    %v1346 = vunpack.c.h.b16 %v1095
    %v1347 = vunpack.c.l.b16 %v1096
    %v1348 = vunpack.c.h.b16 %v1096
    %v1349 = vunpack.c.l.b16 %v1097
    %v1350 = vunpack.c.h.b16 %v1097
    %v1351 = vunpack.c.l.b16 %v1098
    %v1352 = vunpack.c.h.b16 %v1098
    %v1353 = vunpack.c.l.b16 %v1099
    %v1354 = vunpack.c.h.b16 %v1099
    %v1355 = vunpack.c.l.b16 %v1100
    %v1356 = vunpack.c.h.b16 %v1100
    %v1357 = vunpack.c.l.b16 %v1101
    %v1358 = vunpack.c.h.b16 %v1101
    %v1359 = vunpack.c.l.b16 %v1102
    %v1360 = vunpack.c.h.b16 %v1102
    %v1361 = vunpack.c.l.b16 %v1103
    %v1362 = vunpack.c.h.b16 %v1103
    %v1363 = vunpack.c.l.b16 %v1104
    %v1364 = vunpack.c.h.b16 %v1104
    %v1365 = vunpack.c.l.b16 %v1105
    %v1366 = vunpack.c.h.b16 %v1105
    %v1367 = vunpack.c.l.b16 %v1106
    %v1368 = vunpack.c.h.b16 %v1106
    %v1369 = vunpack.c.l.b16 %v1107
    %v1370 = vunpack.c.h.b16 %v1107
    %v1371 = vunpack.c.l.b16 %v1108
    %v1372 = vunpack.c.h.b16 %v1108
    %v1373 = vunpack.c.l.b16 %v1109
    %v1374 = vunpack.c.h.b16 %v1109
    %v1375 = vunpack.c.l.b16 %v1110
    %v1376 = vunpack.c.h.b16 %v1110
    %v1377 = vunpack.c.l.b16 %v1111
    %v1378 = vunpack.c.h.b16 %v1111
    %v1379 = vunpack.c.l.b16 %v1112
    %v1380 = vunpack.c.h.b16 %v1112
    %v1381 = vunpack.c.l.b16 %v1113
    %v1382 = vunpack.c.h.b16 %v1113
    %v1383 = vunpack.c.l.b16 %v1114
    %v1384 = vunpack.c.h.b16 %v1114
    %v1385 = vunpack.c.l.b16 %v1115
    %v1386 = vunpack.c.h.b16 %v1115
    %v1387 = vunpack.c.l.b16 %v1116
    %v1388 = vunpack.c.h.b16 %v1116
    %v1389 = vunpack.c.l.b16 %v1117
    %v1390 = vunpack.c.h.b16 %v1117
    %v1391 = vunpack.c.l.b16 %v1118
    %v1392 = vunpack.c.h.b16 %v1118
    %v1393 = vunpack.c.l.b16 %v1119
    %v1394 = vunpack.c.h.b16 %v1119
    %v1395 = vunpack.c.l.b16 %v1120
    %v1396 = vunpack.c.h.b16 %v1120
    %v1397 = vunpack.c.l.b16 %v1121
    %v1398 = vunpack.c.h.b16 %v1121
    %v1399 = vunpack.c.l.b16 %v1122
    %v1400 = vunpack.c.h.b16 %v1122
    %v1401 = vunpack.c.l.b16 %v1123
    %v1402 = vunpack.c.h.b16 %v1123
    %v1403 = vunpack.c.l.b16 %v1124
    %v1404 = vunpack.c.h.b16 %v1124
    %v1405 = vunpack.c.l.b16 %v1125
    %v1406 = vunpack.c.h.b16 %v1125
    %v1407 = vunpack.c.l.b16 %v1126
    %v1408 = vunpack.c.h.b16 %v1126
    %v1409 = vunpack.c.l.b16 %v1127
    %v1410 = vunpack.c.h.b16 %v1127
    %v1411 = vunpack.c.l.b16 %v1128
    %v1412 = vunpack.c.h.b16 %v1128
    %v1413 = vunpack.c.l.b16 %v1129
    %v1414 = vunpack.c.h.b16 %v1129
    %v1415 = vunpack.c.l.b16 %v1130
    %v1416 = vunpack.c.h.b16 %v1130
    %v1417 = vunpack.c.l.b16 %v1131
    %v1418 = vunpack.c.h.b16 %v1131
    %v1419 = vunpack.c.l.b16 %v1132
    %v1420 = vunpack.c.h.b16 %v1132
    %v1421 = vunpack.c.l.b16 %v1133
    %v1422 = vunpack.c.h.b16 %v1133
    %v1423 = vunpack.c.l.b16 %v1134
    %v1424 = vunpack.c.h.b16 %v1134
    %v1425 = vunpack.c.l.b16 %v1135
    %v1426 = vunpack.c.h.b16 %v1135
    %v1427 = vunpack.c.l.b16 %v1136
    %v1428 = vunpack.c.h.b16 %v1136
    %v1429 = vunpack.c.l.b16 %v1137
    %v1430 = vunpack.c.h.b16 %v1137
    %v1431 = vunpack.c.l.b16 %v1138
    %v1432 = vunpack.c.h.b16 %v1138
    %v1433 = vpack.c.b16 %v1239, %v1237
    %v1434 = vpack.c.b16 %v1240, %v1238
    %v1435 = vpack.c.b16 %v1243, %v1241
    %v1436 = vpack.c.b16 %v1244, %v1242
    %v1437 = vpack.c.b16 %v1247, %v1245
    %v1438 = vpack.c.b16 %v1248, %v1246
    %v1439 = vpack.c.b16 %v1251, %v1249
    %v1440 = vpack.c.b16 %v1252, %v1250
    %v1441 = vpack.c.b16 %v1255, %v1253
    %v1442 = vpack.c.b16 %v1256, %v1254
    %v1443 = vpack.c.b16 %v1259, %v1257
    %v1444 = vpack.c.b16 %v1260, %v1258
    %v1445 = vpack.c.b16 %v1263, %v1261
    %v1446 = vpack.c.b16 %v1264, %v1262
    %v1447 = vpack.c.b16 %v1267, %v1265
    %v1448 = vpack.c.b16 %v1268, %v1266
    %v1449 = vpack.c.b16 %v1271, %v1269
    %v1450 = vpack.c.b16 %v1272, %v1270
    %v1451 = vpack.c.b16 %v1275, %v1273
    %v1452 = vpack.c.b16 %v1276, %v1274
    %v1453 = vpack.c.b16 %v1279, %v1277
    %v1454 = vpack.c.b16 %v1280, %v1278
    %v1455 = vpack.c.b16 %v1283, %v1281
    %v1456 = vpack.c.b16 %v1284, %v1282
    %v1457 = vpack.c.b16 %v1287, %v1285
    %v1458 = vpack.c.b16 %v1288, %v1286
    %v1459 = vpack.c.b16 %v1291, %v1289
    %v1460 = vpack.c.b16 %v1292, %v1290
    %v1461 = vpack.c.b16 %v1295, %v1293
    %v1462 = vpack.c.b16 %v1296, %v1294
    %v1463 = vpack.c.b16 %v1299, %v1297
    %v1464 = vpack.c.b16 %v1300, %v1298
    %v1465 = vpack.c.b16 %v1303, %v1301
    %v1466 = vpack.c.b16 %v1304, %v1302
    %v1467 = vpack.c.b16 %v1307, %v1305
    %v1468 = vpack.c.b16 %v1308, %v1306
    %v1469 = vpack.c.b16 %v1311, %v1309
    %v1470 = vpack.c.b16 %v1312, %v1310
    %v1471 = vpack.c.b16 %v1315, %v1313
    %v1472 = vpack.c.b16 %v1316, %v1314
    %v1473 = vpack.c.b16 %v1319, %v1317
    %v1474 = vpack.c.b16 %v1320, %v1318
    %v1475 = vpack.c.b16 %v1323, %v1321
    %v1476 = vpack.c.b16 %v1324, %v1322
    %v1477 = vpack.c.b16 %v1327, %v1325
    %v1478 = vpack.c.b16 %v1328, %v1326
    %v1479 = vpack.c.b16 %v1331, %v1329
    %v1480 = vpack.c.b16 %v1332, %v1330
    %v1481 = vpack.c.b16 %v1335, %v1333
    %v1482 = vpack.c.b16 %v1336, %v1334
    %v1483 = vpack.c.b16 %v1339, %v1337
    %v1484 = vpack.c.b16 %v1340, %v1338
    %v1485 = vpack.c.b16 %v1343, %v1341
    %v1486 = vpack.c.b16 %v1344, %v1342
    %v1487 = vpack.c.b16 %v1347, %v1345
    %v1488 = vpack.c.b16 %v1348, %v1346
    %v1489 = vpack.c.b16 %v1351, %v1349
    %v1490 = vpack.c.b16 %v1352, %v1350
    %v1491 = vpack.c.b16 %v1355, %v1353
    %v1492 = vpack.c.b16 %v1356, %v1354
    %v1493 = vpack.c.b16 %v1359, %v1357
    %v1494 = vpack.c.b16 %v1360, %v1358
    %v1495 = vpack.c.b16 %v1363, %v1361
    %v1496 = vpack.c.b16 %v1364, %v1362
    %v1497 = vpack.c.b16 %v1367, %v1365
    %v1498 = vpack.c.b16 %v1368, %v1366
    %v1499 = vpack.c.b16 %v1371, %v1369
    %v1500 = vpack.c.b16 %v1372, %v1370
    %v1501 = vpack.c.b16 %v1375, %v1373
    %v1502 = vpack.c.b16 %v1376, %v1374
    %v1503 = vpack.c.b16 %v1379, %v1377
    %v1504 = vpack.c.b16 %v1380, %v1378
    %v1505 = vpack.c.b16 %v1383, %v1381
    %v1506 = vpack.c.b16 %v1384, %v1382
    %v1507 = vpack.c.b16 %v1387, %v1385
    %v1508 = vpack.c.b16 %v1388, %v1386
    %v1509 = vpack.c.b16 %v1391, %v1389
    %v1510 = vpack.c.b16 %v1392, %v1390
    %v1511 = vpack.c.b16 %v1395, %v1393
    %v1512 = vpack.c.b16 %v1396, %v1394
    %v1513 = vpack.c.b16 %v1399, %v1397
    %v1514 = vpack.c.b16 %v1400, %v1398
    %v1515 = vpack.c.b16 %v1403, %v1401
    %v1516 = vpack.c.b16 %v1404, %v1402
    %v1517 = vpack.c.b16 %v1407, %v1405
    %v1518 = vpack.c.b16 %v1408, %v1406
    %v1519 = vpack.c.b16 %v1411, %v1409
    %v1520 = vpack.c.b16 %v1412, %v1410
    %v1521 = vpack.c.b16 %v1415, %v1413
    %v1522 = vpack.c.b16 %v1416, %v1414
    %v1523 = vpack.c.b16 %v1419, %v1417
    %v1524 = vpack.c.b16 %v1420, %v1418
    %v1525 = vpack.c.b16 %v1423, %v1421
    %v1526 = vpack.c.b16 %v1424, %v1422
    %v1527 = vpack.c.b16 %v1427, %v1425
    %v1528 = vpack.c.b16 %v1428, %v1426
    %v1529 = vpack.c.b16 %v1431, %v1429
    %v1530 = vpack.c.b16 %v1432, %v1430
    %v1630 = vsel %vm804, %v1039, 0
    %1632 = vmatprep.subr.bf16.mxu0 %v1434
    %1633 = vmatpush1.bf16.msra.mxu0 %v1433
    %1634 = vmatprep.subr.bf16.mxu0 %v1436
    %1635 = vmatpush1.bf16.msra.mxu0 %v1435
    %1636 = vmatprep.subr.bf16.mxu0 %v1438
    %1637 = vmatpush1.bf16.msra.mxu0 %v1437
    %1638 = vmatprep.subr.bf16.mxu0 %v1440
    %1639 = vmatpush1.bf16.msra.mxu0 %v1439
    %1640 = vmatprep.subr.bf16.mxu0 %v1442
    %1641 = vmatpush1.bf16.msra.mxu0 %v1441
    %1642 = vmatprep.subr.bf16.mxu0 %v1444
    %1643 = vmatpush1.bf16.msra.mxu0 %v1443
    %1644 = vmatprep.subr.bf16.mxu0 %v1446
    %1645 = vmatpush1.bf16.msra.mxu0 %v1445
    %1646 = vmatprep.subr.bf16.mxu0 %v1448
    %1647 = vmatpush1.bf16.msra.mxu0 %v1447
    %1648 = vmatprep.subr.bf16.mxu0 %v1450
    %1649 = vmatpush1.bf16.msra.mxu0 %v1449
    %1650 = vmatprep.subr.bf16.mxu0 %v1452
    %1651 = vmatpush1.bf16.msra.mxu0 %v1451
    %1652 = vmatprep.subr.bf16.mxu0 %v1454
    %1653 = vmatpush1.bf16.msra.mxu0 %v1453
    %1654 = vmatprep.subr.bf16.mxu0 %v1456
    %1655 = vmatpush1.bf16.msra.mxu0 %v1455
    %1656 = vmatprep.subr.bf16.mxu0 %v1458
    %1657 = vmatpush1.bf16.msra.mxu0 %v1457
    %1658 = vmatprep.subr.bf16.mxu0 %v1460
    %1659 = vmatpush1.bf16.msra.mxu0 %v1459
    %1660 = vmatprep.subr.bf16.mxu0 %v1462
    %1661 = vmatpush1.bf16.msra.mxu0 %v1461
    %1662 = vmatprep.subr.bf16.mxu0 %v1464
    %1663 = vmatpush1.bf16.msra.mxu0 %v1463
    %1664 = vmatprep.mubr.bf16.mxu0 %v1034
    %1665 = vmatmul.mubr.bf16.gmra.mrb[0].mxu0 %v1033
    %v1666 = vpop.f32.mrb[0].mxu0
    %v1667 = vadd.f32 0.0, %v1666
    %v1668 = vpop.f32.mrb[0].mxu0
    %v1669 = vadd.f32 0.0, %v1668
    %v1670 = vpop.f32.mrb[0].mxu0
    %v1671 = vpop.f32.mrb[0].mxu0
    %1672 = vdwg.mxu0
    %1673 = vmatprep.subr.bf16.mxu0 %v1466
    %1674 = vmatpush1.bf16.msra.mxu0 %v1465
    %1675 = vmatprep.subr.bf16.mxu0 %v1468
    %1676 = vmatpush1.bf16.msra.mxu0 %v1467
    %1677 = vmatprep.subr.bf16.mxu0 %v1470
    %1678 = vmatpush1.bf16.msra.mxu0 %v1469
    %1679 = vmatprep.subr.bf16.mxu0 %v1472
    %1680 = vmatpush1.bf16.msra.mxu0 %v1471
    %1681 = vmatprep.subr.bf16.mxu0 %v1474
    %1682 = vmatpush1.bf16.msra.mxu0 %v1473
    %1683 = vmatprep.subr.bf16.mxu0 %v1476
    %1684 = vmatpush1.bf16.msra.mxu0 %v1475
    %1685 = vmatprep.subr.bf16.mxu0 %v1478
    %1686 = vmatpush1.bf16.msra.mxu0 %v1477
    %1687 = vmatprep.subr.bf16.mxu0 %v1480
    %1688 = vmatpush1.bf16.msra.mxu0 %v1479
    %1689 = vmatprep.subr.bf16.mxu0 %v1482
    %1690 = vmatpush1.bf16.msra.mxu0 %v1481
    %1691 = vmatprep.subr.bf16.mxu0 %v1484
    %1692 = vmatpush1.bf16.msra.mxu0 %v1483
    %1693 = vmatprep.subr.bf16.mxu0 %v1486
    %1694 = vmatpush1.bf16.msra.mxu0 %v1485
    %1695 = vmatprep.subr.bf16.mxu0 %v1488
    %1696 = vmatpush1.bf16.msra.mxu0 %v1487
    %1697 = vmatprep.subr.bf16.mxu0 %v1490
    %1698 = vmatpush1.bf16.msra.mxu0 %v1489
    %1699 = vmatprep.subr.bf16.mxu0 %v1492
    %1700 = vmatpush1.bf16.msra.mxu0 %v1491
    %1701 = vmatprep.subr.bf16.mxu0 %v1494
    %1702 = vmatpush1.bf16.msra.mxu0 %v1493
    %1703 = vmatprep.subr.bf16.mxu0 %v1496
    %1704 = vmatpush1.bf16.msra.mxu0 %v1495
    %1705 = vmatprep.mubr.bf16.mxu0 %v1036
    %1706 = vmatmul.mubr.bf16.gmra.mrb[0].mxu0 %v1035
    %v1707 = vpop.f32.mrb[0].mxu0
    %v1708 = vadd.f32 %v1667, %v1707
    %v1709 = vpop.f32.mrb[0].mxu0
    %v1710 = vadd.f32 %v1669, %v1709
    %v1711 = vpop.f32.mrb[0].mxu0
    %v1712 = vpop.f32.mrb[0].mxu0
    %1713 = vdwg.mxu0
    %1714 = vmatprep.subr.bf16.mxu0 %v1498
    %1715 = vmatpush1.bf16.msra.mxu0 %v1497
    %1716 = vmatprep.subr.bf16.mxu0 %v1500
    %1717 = vmatpush1.bf16.msra.mxu0 %v1499
    %1718 = vmatprep.subr.bf16.mxu0 %v1502
    %1719 = vmatpush1.bf16.msra.mxu0 %v1501
    %1720 = vmatprep.subr.bf16.mxu0 %v1504
    %1721 = vmatpush1.bf16.msra.mxu0 %v1503
    %1722 = vmatprep.subr.bf16.mxu0 %v1506
    %1723 = vmatpush1.bf16.msra.mxu0 %v1505
    %1724 = vmatprep.subr.bf16.mxu0 %v1508
    %1725 = vmatpush1.bf16.msra.mxu0 %v1507
    %1726 = vmatprep.subr.bf16.mxu0 %v1510
    %1727 = vmatpush1.bf16.msra.mxu0 %v1509
    %1728 = vmatprep.subr.bf16.mxu0 %v1512
    %1729 = vmatpush1.bf16.msra.mxu0 %v1511
    %1730 = vmatprep.subr.bf16.mxu0 %v1514
    %1731 = vmatpush1.bf16.msra.mxu0 %v1513
    %1732 = vmatprep.subr.bf16.mxu0 %v1516
    %1733 = vmatpush1.bf16.msra.mxu0 %v1515
    %1734 = vmatprep.subr.bf16.mxu0 %v1518
    %1735 = vmatpush1.bf16.msra.mxu0 %v1517
    %1736 = vmatprep.subr.bf16.mxu0 %v1520
    %1737 = vmatpush1.bf16.msra.mxu0 %v1519
    %1738 = vmatprep.subr.bf16.mxu0 %v1522
    %1739 = vmatpush1.bf16.msra.mxu0 %v1521
    %1740 = vmatprep.subr.bf16.mxu0 %v1524
    %1741 = vmatpush1.bf16.msra.mxu0 %v1523
    %1742 = vmatprep.subr.bf16.mxu0 %v1526
    %1743 = vmatpush1.bf16.msra.mxu0 %v1525
    %1744 = vmatprep.subr.bf16.mxu0 %v1528
    %1745 = vmatpush1.bf16.msra.mxu0 %v1527
    %1746 = vmatprep.mubr.bf16.mxu0 %v1038
    %1747 = vmatmul.mubr.bf16.gmra.mrb[0].mxu0 %v1037
    %v1748 = vpop.f32.mrb[0].mxu0
    %v1749 = vadd.f32 %v1708, %v1748
    %v1750 = vpop.f32.mrb[0].mxu0
    %v1751 = vadd.f32 %v1710, %v1750
    %v1752 = vpop.f32.mrb[0].mxu0
    %v1753 = vpop.f32.mrb[0].mxu0
    %1754 = vdwg.mxu0
    %1755 = vmatprep.subr.bf16.mxu0 %v1530
    %1756 = vmatpush1.bf16.msra.mxu0 %v1529
    %1757 = vmatprep.subr.bf16.mxu0 0
    %1758 = vmatpush1.bf16.msra.mxu0 0
    %1759 = vmatprep.subr.bf16.mxu0 0
    %1760 = vmatpush1.bf16.msra.mxu0 0
    %1761 = vmatprep.subr.bf16.mxu0 0
    %1762 = vmatpush1.bf16.msra.mxu0 0
    %1763 = vmatprep.subr.bf16.mxu0 0
    %1764 = vmatpush1.bf16.msra.mxu0 0
    %1765 = vmatprep.subr.bf16.mxu0 0
    %1766 = vmatpush1.bf16.msra.mxu0 0
    %1767 = vmatprep.subr.bf16.mxu0 0
    %1768 = vmatpush1.bf16.msra.mxu0 0
    %1769 = vmatprep.subr.bf16.mxu0 0
    %1770 = vmatpush1.bf16.msra.mxu0 0
    %1771 = vmatprep.subr.bf16.mxu0 0
    %1772 = vmatpush1.bf16.msra.mxu0 0
    %1773 = vmatprep.subr.bf16.mxu0 0
    %1774 = vmatpush1.bf16.msra.mxu0 0
    %1775 = vmatprep.subr.bf16.mxu0 0
    %1776 = vmatpush1.bf16.msra.mxu0 0
    %1777 = vmatprep.subr.bf16.mxu0 0
    %1778 = vmatpush1.bf16.msra.mxu0 0
    %1779 = vmatprep.subr.bf16.mxu0 0
    %1780 = vmatpush1.bf16.msra.mxu0 0
    %1781 = vmatprep.subr.bf16.mxu0 0
    %1782 = vmatpush1.bf16.msra.mxu0 0
    %1783 = vmatprep.subr.bf16.mxu0 0
    %1784 = vmatpush1.bf16.msra.mxu0 0
    %1785 = vmatprep.subr.bf16.mxu0 0
    %1786 = vmatpush1.bf16.msra.mxu0 0
    %1787 = vmatprep.mubr.bf16.mxu0 0
    %1788 = vmatmul.mubr.bf16.gmra.mrb[0].mxu0 %v1630
    %v1789 = vpop.f32.mrb[0].mxu0
    %v1790 = vadd.f32 %v1749, %v1789
    %v1791 = vpop.f32.mrb[0].mxu0
    %v1792 = vadd.f32 %v1751, %v1791
    %v1793 = vpop.f32.mrb[0].mxu0
    %v1794 = vpop.f32.mrb[0].mxu0
    %1795 = vdwg.mxu0
    %v1796 = vadd.f32 %v983, %v1790
    %v1797 = vadd.f32 %v984, %v1792
    %v1798 = vmul.f32 %v985, %v989
    %v1799 = vmul.f32 %v986, %v990
    %v1800 = vsub.f32 %v1798, %v164
    %v1801 = vsub.f32 %v1799, %v165
    %v1804 = vcombine.high %v1800, %v1800
    %v1806 = vunpack.c.l.s4 1983009808
    %v1807 = vunpack.c.0.s8 %v1806
    %v1808 = vlaneseq
    %v1809 = vshrl.u32 %v1808, 7
    %v1810 = vsub.s32 %v1807, %v1809
    %v1811 = vrot.slane %v1800, %v1810
    %v1813 = vunpack.c.l.s4 1983009808
    %v1814 = vunpack.c.0.s8 %v1813
    %v1815 = vlaneseq
    %v1816 = vshrl.u32 %v1815, 7
    %v1817 = vsub.s32 %v1814, %v1816
    %v1818 = vrot.slane %v1804, %v1817
    %v1819 = vcombine.high %v1811, %v1811
    %v1820 = vcombine.high %v1818, %v1818
    %v1821 = vcombine.high %v1801, %v1801
    %v1823 = vunpack.c.l.s4 1983009808
    %v1824 = vunpack.c.0.s8 %v1823
    %v1825 = vlaneseq
    %v1826 = vshrl.u32 %v1825, 7
    %v1827 = vsub.s32 %v1824, %v1826
    %v1828 = vrot.slane %v1801, %v1827
    %v1830 = vunpack.c.l.s4 1983009808
    %v1831 = vunpack.c.0.s8 %v1830
    %v1832 = vlaneseq
    %v1833 = vshrl.u32 %v1832, 7
    %v1834 = vsub.s32 %v1831, %v1833
    %v1835 = vrot.slane %v1821, %v1834
    %v1836 = vcombine.high %v1828, %v1828
    %v1844 = vpack.c.bf16 %v1811, %v1811
    %v1845 = vpack.c.bf16 %v1819, %v1819
    %v1846 = vpack.c.bf16 %v1818, %v1818
    %v1847 = vpack.c.bf16 %v1820, %v1820
    %v1848 = vpack.c.bf16 %v1828, %v1828
    %v1849 = vpack.c.bf16 %v1836, %v1836
    %v1850 = vpack.c.bf16 %v1835, %v1835
    %s1851 = scalar_lea.vmem [#allocation2], 1568
    %v1852 = vld [vmem:[%s1851] sm:$0xff]
    %v1853 = vld [vmem:[%s1851 + $0x8] sm:$0xff]
    %v1854 = vld [vmem:[%s1851 + $0x10] sm:$0xff]
    %v1855 = vld [vmem:[%s1851 + $0x18] sm:$0xff]
    %v1856 = vld [vmem:[%s1851 + $0x20] sm:$0xff]
    %v1857 = vld [vmem:[%s1851 + $0x28] sm:$0xff]
    %v1858 = vld [vmem:[%s1851 + $0x30] sm:$0xff]
    %v1859 = vld [vmem:[%s1851 + $0x38] sm:$0xff]
    %v1860 = vld [vmem:[%s1851 + $0x40] sm:$0xff]
    %v1861 = vld [vmem:[%s1851 + $0x48] sm:$0xff]
    %v1862 = vld [vmem:[%s1851 + $0x50] sm:$0xff]
    %v1863 = vld [vmem:[%s1851 + $0x58] sm:$0xff]
    %v1864 = vld [vmem:[%s1851 + $0x60] sm:$0xff]
    %v1865 = vld [vmem:[%s1851 + $0x68] sm:$0xff]
    %v1866 = vld [vmem:[%s1851 + $0x70] sm:$0xff]
    %v1867 = vld [vmem:[%s1851 + $0x78] sm:$0xff]
    %v1868 = vld [vmem:[%s1851 + $0x80] sm:$0xff]
    %v1869 = vld [vmem:[%s1851 + $0x88] sm:$0xff]
    %v1870 = vld [vmem:[%s1851 + $0x90] sm:$0xff]
    %v1871 = vld [vmem:[%s1851 + $0x98] sm:$0xff]
    %v1872 = vld [vmem:[%s1851 + $0xa0] sm:$0xff]
    %v1873 = vld [vmem:[%s1851 + $0xa8] sm:$0xff]
    %v1874 = vld [vmem:[%s1851 + $0xb0] sm:$0xff]
    %v1875 = vld [vmem:[%s1851 + $0xb8] sm:$0xff]
    %v1876 = vld [vmem:[%s1851 + $0xc0] sm:$0xff]
    %v1877 = vld [vmem:[%s1851 + $0xc8] sm:$0xff]
    %v1878 = vld [vmem:[%s1851 + $0xd0] sm:$0xff]
    %v1879 = vld [vmem:[%s1851 + $0xd8] sm:$0xff]
    %v1880 = vld [vmem:[%s1851 + $0xe0] sm:$0xff]
    %v1881 = vld [vmem:[%s1851 + $0xe8] sm:$0xff]
    %v1882 = vld [vmem:[%s1851 + $0xf0] sm:$0xff]
    %v1883 = vld [vmem:[%s1851 + $0xf8] sm:$0xff]
    %v1884 = vld [vmem:[%s1851 + $0x100] sm:$0xff]
    %v1885 = vld [vmem:[%s1851 + $0x108] sm:$0xff]
    %v1886 = vld [vmem:[%s1851 + $0x110] sm:$0xff]
    %v1887 = vld [vmem:[%s1851 + $0x118] sm:$0xff]
    %v1888 = vld [vmem:[%s1851 + $0x120] sm:$0xff]
    %v1889 = vld [vmem:[%s1851 + $0x128] sm:$0xff]
    %v1890 = vld [vmem:[%s1851 + $0x130] sm:$0xff]
    %v1891 = vld [vmem:[%s1851 + $0x138] sm:$0xff]
    %v1892 = vld [vmem:[%s1851 + $0x140] sm:$0xff]
    %v1893 = vld [vmem:[%s1851 + $0x148] sm:$0xff]
    %v1894 = vld [vmem:[%s1851 + $0x150] sm:$0xff]
    %v1895 = vld [vmem:[%s1851 + $0x158] sm:$0xff]
    %v1896 = vld [vmem:[%s1851 + $0x160] sm:$0xff]
    %v1897 = vld [vmem:[%s1851 + $0x168] sm:$0xff]
    %v1898 = vld [vmem:[%s1851 + $0x170] sm:$0xff]
    %v1899 = vld [vmem:[%s1851 + $0x178] sm:$0xff]
    %v1900 = vld [vmem:[%s1851 + $0x180] sm:$0xff]
    %v1901 = vld [vmem:[%s1851 + $0x188] sm:$0xff]
    %v1902 = vld [vmem:[%s1851 + $0x190] sm:$0xff]
    %v1903 = vld [vmem:[%s1851 + $0x198] sm:$0xff]
    %v1904 = vld [vmem:[%s1851 + $0x1a0] sm:$0xff]
    %v1905 = vld [vmem:[%s1851 + $0x1a8] sm:$0xff]
    %v1906 = vld [vmem:[%s1851 + $0x1b0] sm:$0xff]
    %v1907 = vld [vmem:[%s1851 + $0x1b8] sm:$0xff]
    %v1908 = vld [vmem:[%s1851 + $0x1c0] sm:$0xff]
    %v1909 = vld [vmem:[%s1851 + $0x1c8] sm:$0xff]
    %v1910 = vld [vmem:[%s1851 + $0x1d0] sm:$0xff]
    %v1911 = vld [vmem:[%s1851 + $0x1d8] sm:$0xff]
    %v1912 = vld [vmem:[%s1851 + $0x1e0] sm:$0xff]
    %v1913 = vld [vmem:[%s1851 + $0x1e8] sm:$0xff]
    %v1914 = vld [vmem:[%s1851 + $0x1f0] sm:$0xff]
    %v1915 = vld [vmem:[%s1851 + $0x1f8] sm:$0xff]
    %v1916 = vld [vmem:[%s1851 + $0x200] sm:$0xff]
    %v1917 = vld [vmem:[%s1851 + $0x208] sm:$0xff]
    %v1918 = vld [vmem:[%s1851 + $0x210] sm:$0xff]
    %v1919 = vld [vmem:[%s1851 + $0x218] sm:$0xff]
    %v1920 = vld [vmem:[%s1851 + $0x220] sm:$0xff]
    %v1921 = vld [vmem:[%s1851 + $0x228] sm:$0xff]
    %v1922 = vld [vmem:[%s1851 + $0x230] sm:$0xff]
    %v1923 = vld [vmem:[%s1851 + $0x238] sm:$0xff]
    %v1924 = vld [vmem:[%s1851 + $0x240] sm:$0xff]
    %v1925 = vld [vmem:[%s1851 + $0x248] sm:$0xff]
    %v1926 = vld [vmem:[%s1851 + $0x250] sm:$0xff]
    %v1927 = vld [vmem:[%s1851 + $0x258] sm:$0xff]
    %v1928 = vld [vmem:[%s1851 + $0x260] sm:$0xff]
    %v1929 = vld [vmem:[%s1851 + $0x268] sm:$0xff]
    %v1930 = vld [vmem:[%s1851 + $0x270] sm:$0xff]
    %v1931 = vld [vmem:[%s1851 + $0x278] sm:$0xff]
    %v1932 = vld [vmem:[%s1851 + $0x280] sm:$0xff]
    %v1933 = vld [vmem:[%s1851 + $0x288] sm:$0xff]
    %v1934 = vld [vmem:[%s1851 + $0x290] sm:$0xff]
    %v1935 = vld [vmem:[%s1851 + $0x298] sm:$0xff]
    %v1936 = vld [vmem:[%s1851 + $0x2a0] sm:$0xff]
    %v1937 = vld [vmem:[%s1851 + $0x2a8] sm:$0xff]
    %v1938 = vld [vmem:[%s1851 + $0x2b0] sm:$0xff]
    %v1939 = vld [vmem:[%s1851 + $0x2b8] sm:$0xff]
    %v1940 = vld [vmem:[%s1851 + $0x2c0] sm:$0xff]
    %v1941 = vld [vmem:[%s1851 + $0x2c8] sm:$0xff]
    %v1942 = vld [vmem:[%s1851 + $0x2d0] sm:$0xff]
    %v1943 = vld [vmem:[%s1851 + $0x2d8] sm:$0xff]
    %v1944 = vld [vmem:[%s1851 + $0x2e0] sm:$0xff]
    %v1945 = vld [vmem:[%s1851 + $0x2e8] sm:$0xff]
    %v1946 = vld [vmem:[%s1851 + $0x2f0] sm:$0xff]
    %v1947 = vld [vmem:[%s1851 + $0x2f8] sm:$0xff]
    %v1948 = vld [vmem:[%s1851 + $0x300] sm:$0xff]
    %v1949 = vld [vmem:[%s1851 + $0x308] sm:$0xff]
    %v2048 = vunpack.c.l.b16 %v1852
    %v2049 = vunpack.c.h.b16 %v1852
    %v2050 = vunpack.c.l.b16 %v1853
    %v2051 = vunpack.c.h.b16 %v1853
    %v2052 = vunpack.c.l.b16 %v1854
    %v2053 = vunpack.c.h.b16 %v1854
    %v2054 = vunpack.c.l.b16 %v1855
    %v2055 = vunpack.c.h.b16 %v1855
    %v2056 = vunpack.c.l.b16 %v1856
    %v2057 = vunpack.c.h.b16 %v1856
    %v2058 = vunpack.c.l.b16 %v1857
    %v2059 = vunpack.c.h.b16 %v1857
    %v2060 = vunpack.c.l.b16 %v1858
    %v2061 = vunpack.c.h.b16 %v1858
    %v2062 = vunpack.c.l.b16 %v1859
    %v2063 = vunpack.c.h.b16 %v1859
    %v2064 = vunpack.c.l.b16 %v1860
    %v2065 = vunpack.c.h.b16 %v1860
    %v2066 = vunpack.c.l.b16 %v1861
    %v2067 = vunpack.c.h.b16 %v1861
    %v2068 = vunpack.c.l.b16 %v1862
    %v2069 = vunpack.c.h.b16 %v1862
    %v2070 = vunpack.c.l.b16 %v1863
    %v2071 = vunpack.c.h.b16 %v1863
    %v2072 = vunpack.c.l.b16 %v1864
    %v2073 = vunpack.c.h.b16 %v1864
    %v2074 = vunpack.c.l.b16 %v1865
    %v2075 = vunpack.c.h.b16 %v1865
    %v2076 = vunpack.c.l.b16 %v1866
    %v2077 = vunpack.c.h.b16 %v1866
    %v2078 = vunpack.c.l.b16 %v1867
    %v2079 = vunpack.c.h.b16 %v1867
    %v2080 = vunpack.c.l.b16 %v1868
    %v2081 = vunpack.c.h.b16 %v1868
    %v2082 = vunpack.c.l.b16 %v1869
    %v2083 = vunpack.c.h.b16 %v1869
    %v2084 = vunpack.c.l.b16 %v1870
    %v2085 = vunpack.c.h.b16 %v1870
    %v2086 = vunpack.c.l.b16 %v1871
    %v2087 = vunpack.c.h.b16 %v1871
    %v2088 = vunpack.c.l.b16 %v1872
    %v2089 = vunpack.c.h.b16 %v1872
    %v2090 = vunpack.c.l.b16 %v1873
    %v2091 = vunpack.c.h.b16 %v1873
    %v2092 = vunpack.c.l.b16 %v1874
    %v2093 = vunpack.c.h.b16 %v1874
    %v2094 = vunpack.c.l.b16 %v1875
    %v2095 = vunpack.c.h.b16 %v1875
    %v2096 = vunpack.c.l.b16 %v1876
    %v2097 = vunpack.c.h.b16 %v1876
    %v2098 = vunpack.c.l.b16 %v1877
    %v2099 = vunpack.c.h.b16 %v1877
    %v2100 = vunpack.c.l.b16 %v1878
    %v2101 = vunpack.c.h.b16 %v1878
    %v2102 = vunpack.c.l.b16 %v1879
    %v2103 = vunpack.c.h.b16 %v1879
    %v2104 = vunpack.c.l.b16 %v1880
    %v2105 = vunpack.c.h.b16 %v1880
    %v2106 = vunpack.c.l.b16 %v1881
    %v2107 = vunpack.c.h.b16 %v1881
    %v2108 = vunpack.c.l.b16 %v1882
    %v2109 = vunpack.c.h.b16 %v1882
    %v2110 = vunpack.c.l.b16 %v1883
    %v2111 = vunpack.c.h.b16 %v1883
    %v2112 = vunpack.c.l.b16 %v1884
    %v2113 = vunpack.c.h.b16 %v1884
    %v2114 = vunpack.c.l.b16 %v1885
    %v2115 = vunpack.c.h.b16 %v1885
    %v2116 = vunpack.c.l.b16 %v1886
    %v2117 = vunpack.c.h.b16 %v1886
    %v2118 = vunpack.c.l.b16 %v1887
    %v2119 = vunpack.c.h.b16 %v1887
    %v2120 = vunpack.c.l.b16 %v1888
    %v2121 = vunpack.c.h.b16 %v1888
    %v2122 = vunpack.c.l.b16 %v1889
    %v2123 = vunpack.c.h.b16 %v1889
    %v2124 = vunpack.c.l.b16 %v1890
    %v2125 = vunpack.c.h.b16 %v1890
    %v2126 = vunpack.c.l.b16 %v1891
    %v2127 = vunpack.c.h.b16 %v1891
    %v2128 = vunpack.c.l.b16 %v1892
    %v2129 = vunpack.c.h.b16 %v1892
    %v2130 = vunpack.c.l.b16 %v1893
    %v2131 = vunpack.c.h.b16 %v1893
    %v2132 = vunpack.c.l.b16 %v1894
    %v2133 = vunpack.c.h.b16 %v1894
    %v2134 = vunpack.c.l.b16 %v1895
    %v2135 = vunpack.c.h.b16 %v1895
    %v2136 = vunpack.c.l.b16 %v1896
    %v2137 = vunpack.c.h.b16 %v1896
    %v2138 = vunpack.c.l.b16 %v1897
    %v2139 = vunpack.c.h.b16 %v1897
    %v2140 = vunpack.c.l.b16 %v1898
    %v2141 = vunpack.c.h.b16 %v1898
    %v2142 = vunpack.c.l.b16 %v1899
    %v2143 = vunpack.c.h.b16 %v1899
    %v2144 = vunpack.c.l.b16 %v1900
    %v2145 = vunpack.c.h.b16 %v1900
    %v2146 = vunpack.c.l.b16 %v1901
    %v2147 = vunpack.c.h.b16 %v1901
    %v2148 = vunpack.c.l.b16 %v1902
    %v2149 = vunpack.c.h.b16 %v1902
    %v2150 = vunpack.c.l.b16 %v1903
    %v2151 = vunpack.c.h.b16 %v1903
    %v2152 = vunpack.c.l.b16 %v1904
    %v2153 = vunpack.c.h.b16 %v1904
    %v2154 = vunpack.c.l.b16 %v1905
    %v2155 = vunpack.c.h.b16 %v1905
    %v2156 = vunpack.c.l.b16 %v1906
    %v2157 = vunpack.c.h.b16 %v1906
    %v2158 = vunpack.c.l.b16 %v1907
    %v2159 = vunpack.c.h.b16 %v1907
    %v2160 = vunpack.c.l.b16 %v1908
    %v2161 = vunpack.c.h.b16 %v1908
    %v2162 = vunpack.c.l.b16 %v1909
    %v2163 = vunpack.c.h.b16 %v1909
    %v2164 = vunpack.c.l.b16 %v1910
    %v2165 = vunpack.c.h.b16 %v1910
    %v2166 = vunpack.c.l.b16 %v1911
    %v2167 = vunpack.c.h.b16 %v1911
    %v2168 = vunpack.c.l.b16 %v1912
    %v2169 = vunpack.c.h.b16 %v1912
    %v2170 = vunpack.c.l.b16 %v1913
    %v2171 = vunpack.c.h.b16 %v1913
    %v2172 = vunpack.c.l.b16 %v1914
    %v2173 = vunpack.c.h.b16 %v1914
    %v2174 = vunpack.c.l.b16 %v1915
    %v2175 = vunpack.c.h.b16 %v1915
    %v2176 = vunpack.c.l.b16 %v1916
    %v2177 = vunpack.c.h.b16 %v1916
    %v2178 = vunpack.c.l.b16 %v1917
    %v2179 = vunpack.c.h.b16 %v1917
    %v2180 = vunpack.c.l.b16 %v1918
    %v2181 = vunpack.c.h.b16 %v1918
    %v2182 = vunpack.c.l.b16 %v1919
    %v2183 = vunpack.c.h.b16 %v1919
    %v2184 = vunpack.c.l.b16 %v1920
    %v2185 = vunpack.c.h.b16 %v1920
    %v2186 = vunpack.c.l.b16 %v1921
    %v2187 = vunpack.c.h.b16 %v1921
    %v2188 = vunpack.c.l.b16 %v1922
    %v2189 = vunpack.c.h.b16 %v1922
    %v2190 = vunpack.c.l.b16 %v1923
    %v2191 = vunpack.c.h.b16 %v1923
    %v2192 = vunpack.c.l.b16 %v1924
    %v2193 = vunpack.c.h.b16 %v1924
    %v2194 = vunpack.c.l.b16 %v1925
    %v2195 = vunpack.c.h.b16 %v1925
    %v2196 = vunpack.c.l.b16 %v1926
    %v2197 = vunpack.c.h.b16 %v1926
    %v2198 = vunpack.c.l.b16 %v1927
    %v2199 = vunpack.c.h.b16 %v1927
    %v2200 = vunpack.c.l.b16 %v1928
    %v2201 = vunpack.c.h.b16 %v1928
    %v2202 = vunpack.c.l.b16 %v1929
    %v2203 = vunpack.c.h.b16 %v1929
    %v2204 = vunpack.c.l.b16 %v1930
    %v2205 = vunpack.c.h.b16 %v1930
    %v2206 = vunpack.c.l.b16 %v1931
    %v2207 = vunpack.c.h.b16 %v1931
    %v2208 = vunpack.c.l.b16 %v1932
    %v2209 = vunpack.c.h.b16 %v1932
    %v2210 = vunpack.c.l.b16 %v1933
    %v2211 = vunpack.c.h.b16 %v1933
    %v2212 = vunpack.c.l.b16 %v1934
    %v2213 = vunpack.c.h.b16 %v1934
    %v2214 = vunpack.c.l.b16 %v1935
    %v2215 = vunpack.c.h.b16 %v1935
    %v2216 = vunpack.c.l.b16 %v1936
    %v2217 = vunpack.c.h.b16 %v1936
    %v2218 = vunpack.c.l.b16 %v1937
    %v2219 = vunpack.c.h.b16 %v1937
    %v2220 = vunpack.c.l.b16 %v1938
    %v2221 = vunpack.c.h.b16 %v1938
    %v2222 = vunpack.c.l.b16 %v1939
    %v2223 = vunpack.c.h.b16 %v1939
    %v2224 = vunpack.c.l.b16 %v1940
    %v2225 = vunpack.c.h.b16 %v1940
    %v2226 = vunpack.c.l.b16 %v1941
    %v2227 = vunpack.c.h.b16 %v1941
    %v2228 = vunpack.c.l.b16 %v1942
    %v2229 = vunpack.c.h.b16 %v1942
    %v2230 = vunpack.c.l.b16 %v1943
    %v2231 = vunpack.c.h.b16 %v1943
    %v2232 = vunpack.c.l.b16 %v1944
    %v2233 = vunpack.c.h.b16 %v1944
    %v2234 = vunpack.c.l.b16 %v1945
    %v2235 = vunpack.c.h.b16 %v1945
    %v2236 = vunpack.c.l.b16 %v1946
    %v2237 = vunpack.c.h.b16 %v1946
    %v2238 = vunpack.c.l.b16 %v1947
    %v2239 = vunpack.c.h.b16 %v1947
    %v2240 = vunpack.c.l.b16 %v1948
    %v2241 = vunpack.c.h.b16 %v1948
    %v2242 = vunpack.c.l.b16 %v1949
    %v2243 = vunpack.c.h.b16 %v1949
    %v2244 = vpack.c.b16 %v2050, %v2048
    %v2245 = vpack.c.b16 %v2051, %v2049
    %v2246 = vpack.c.b16 %v2054, %v2052
    %v2247 = vpack.c.b16 %v2055, %v2053
    %v2248 = vpack.c.b16 %v2058, %v2056
    %v2249 = vpack.c.b16 %v2059, %v2057
    %v2250 = vpack.c.b16 %v2062, %v2060
    %v2251 = vpack.c.b16 %v2063, %v2061
    %v2252 = vpack.c.b16 %v2066, %v2064
    %v2253 = vpack.c.b16 %v2067, %v2065
    %v2254 = vpack.c.b16 %v2070, %v2068
    %v2255 = vpack.c.b16 %v2071, %v2069
    %v2256 = vpack.c.b16 %v2074, %v2072
    %v2257 = vpack.c.b16 %v2075, %v2073
    %v2258 = vpack.c.b16 %v2078, %v2076
    %v2259 = vpack.c.b16 %v2079, %v2077
    %v2260 = vpack.c.b16 %v2082, %v2080
    %v2261 = vpack.c.b16 %v2083, %v2081
    %v2262 = vpack.c.b16 %v2086, %v2084
    %v2263 = vpack.c.b16 %v2087, %v2085
    %v2264 = vpack.c.b16 %v2090, %v2088
    %v2265 = vpack.c.b16 %v2091, %v2089
    %v2266 = vpack.c.b16 %v2094, %v2092
    %v2267 = vpack.c.b16 %v2095, %v2093
    %v2268 = vpack.c.b16 %v2098, %v2096
    %v2269 = vpack.c.b16 %v2099, %v2097
    %v2270 = vpack.c.b16 %v2102, %v2100
    %v2271 = vpack.c.b16 %v2103, %v2101
    %v2272 = vpack.c.b16 %v2106, %v2104
    %v2273 = vpack.c.b16 %v2107, %v2105
    %v2274 = vpack.c.b16 %v2110, %v2108
    %v2275 = vpack.c.b16 %v2111, %v2109
    %v2276 = vpack.c.b16 %v2114, %v2112
    %v2277 = vpack.c.b16 %v2115, %v2113
    %v2278 = vpack.c.b16 %v2118, %v2116
    %v2279 = vpack.c.b16 %v2119, %v2117
    %v2280 = vpack.c.b16 %v2122, %v2120
    %v2281 = vpack.c.b16 %v2123, %v2121
    %v2282 = vpack.c.b16 %v2126, %v2124
    %v2283 = vpack.c.b16 %v2127, %v2125
    %v2284 = vpack.c.b16 %v2130, %v2128
    %v2285 = vpack.c.b16 %v2131, %v2129
    %v2286 = vpack.c.b16 %v2134, %v2132
    %v2287 = vpack.c.b16 %v2135, %v2133
    %v2288 = vpack.c.b16 %v2138, %v2136
    %v2289 = vpack.c.b16 %v2139, %v2137
    %v2290 = vpack.c.b16 %v2142, %v2140
    %v2291 = vpack.c.b16 %v2143, %v2141
    %v2292 = vpack.c.b16 %v2146, %v2144
    %v2293 = vpack.c.b16 %v2147, %v2145
    %v2294 = vpack.c.b16 %v2150, %v2148
    %v2295 = vpack.c.b16 %v2151, %v2149
    %v2296 = vpack.c.b16 %v2154, %v2152
    %v2297 = vpack.c.b16 %v2155, %v2153
    %v2298 = vpack.c.b16 %v2158, %v2156
    %v2299 = vpack.c.b16 %v2159, %v2157
    %v2300 = vpack.c.b16 %v2162, %v2160
    %v2301 = vpack.c.b16 %v2163, %v2161
    %v2302 = vpack.c.b16 %v2166, %v2164
    %v2303 = vpack.c.b16 %v2167, %v2165
    %v2304 = vpack.c.b16 %v2170, %v2168
    %v2305 = vpack.c.b16 %v2171, %v2169
    %v2306 = vpack.c.b16 %v2174, %v2172
    %v2307 = vpack.c.b16 %v2175, %v2173
    %v2308 = vpack.c.b16 %v2178, %v2176
    %v2309 = vpack.c.b16 %v2179, %v2177
    %v2310 = vpack.c.b16 %v2182, %v2180
    %v2311 = vpack.c.b16 %v2183, %v2181
    %v2312 = vpack.c.b16 %v2186, %v2184
    %v2313 = vpack.c.b16 %v2187, %v2185
    %v2314 = vpack.c.b16 %v2190, %v2188
    %v2315 = vpack.c.b16 %v2191, %v2189
    %v2316 = vpack.c.b16 %v2194, %v2192
    %v2317 = vpack.c.b16 %v2195, %v2193
    %v2318 = vpack.c.b16 %v2198, %v2196
    %v2319 = vpack.c.b16 %v2199, %v2197
    %v2320 = vpack.c.b16 %v2202, %v2200
    %v2321 = vpack.c.b16 %v2203, %v2201
    %v2322 = vpack.c.b16 %v2206, %v2204
    %v2323 = vpack.c.b16 %v2207, %v2205
    %v2324 = vpack.c.b16 %v2210, %v2208
    %v2325 = vpack.c.b16 %v2211, %v2209
    %v2326 = vpack.c.b16 %v2214, %v2212
    %v2327 = vpack.c.b16 %v2215, %v2213
    %v2328 = vpack.c.b16 %v2218, %v2216
    %v2329 = vpack.c.b16 %v2219, %v2217
    %v2330 = vpack.c.b16 %v2222, %v2220
    %v2331 = vpack.c.b16 %v2223, %v2221
    %v2332 = vpack.c.b16 %v2226, %v2224
    %v2333 = vpack.c.b16 %v2227, %v2225
    %v2334 = vpack.c.b16 %v2230, %v2228
    %v2335 = vpack.c.b16 %v2231, %v2229
    %v2336 = vpack.c.b16 %v2234, %v2232
    %v2337 = vpack.c.b16 %v2235, %v2233
    %v2338 = vpack.c.b16 %v2238, %v2236
    %v2339 = vpack.c.b16 %v2239, %v2237
    %v2340 = vpack.c.b16 %v2242, %v2240
    %v2341 = vpack.c.b16 %v2243, %v2241
    %v2441 = vsel %vm804, %v1850, 0
    %2443 = vmatprep.subr.bf16.mxu0 %v2245
    %2444 = vmatpush1.bf16.msra.mxu0 %v2244
    %2445 = vmatprep.subr.bf16.mxu0 %v2247
    %2446 = vmatpush1.bf16.msra.mxu0 %v2246
    %2447 = vmatprep.subr.bf16.mxu0 %v2249
    %2448 = vmatpush1.bf16.msra.mxu0 %v2248
    %2449 = vmatprep.subr.bf16.mxu0 %v2251
    %2450 = vmatpush1.bf16.msra.mxu0 %v2250
    %2451 = vmatprep.subr.bf16.mxu0 %v2253
    %2452 = vmatpush1.bf16.msra.mxu0 %v2252
    %2453 = vmatprep.subr.bf16.mxu0 %v2255
    %2454 = vmatpush1.bf16.msra.mxu0 %v2254
    %2455 = vmatprep.subr.bf16.mxu0 %v2257
    %2456 = vmatpush1.bf16.msra.mxu0 %v2256
    %2457 = vmatprep.subr.bf16.mxu0 %v2259
    %2458 = vmatpush1.bf16.msra.mxu0 %v2258
    %2459 = vmatprep.subr.bf16.mxu0 %v2261
    %2460 = vmatpush1.bf16.msra.mxu0 %v2260
    %2461 = vmatprep.subr.bf16.mxu0 %v2263
    %2462 = vmatpush1.bf16.msra.mxu0 %v2262
    %2463 = vmatprep.subr.bf16.mxu0 %v2265
    %2464 = vmatpush1.bf16.msra.mxu0 %v2264
    %2465 = vmatprep.subr.bf16.mxu0 %v2267
    %2466 = vmatpush1.bf16.msra.mxu0 %v2266
    %2467 = vmatprep.subr.bf16.mxu0 %v2269
    %2468 = vmatpush1.bf16.msra.mxu0 %v2268
    %2469 = vmatprep.subr.bf16.mxu0 %v2271
    %2470 = vmatpush1.bf16.msra.mxu0 %v2270
    %2471 = vmatprep.subr.bf16.mxu0 %v2273
    %2472 = vmatpush1.bf16.msra.mxu0 %v2272
    %2473 = vmatprep.subr.bf16.mxu0 %v2275
    %2474 = vmatpush1.bf16.msra.mxu0 %v2274
    %2475 = vmatprep.mubr.bf16.mxu0 %v1845
    %2476 = vmatmul.mubr.bf16.gmra.mrb[0].mxu0 %v1844
    %v2477 = vpop.f32.mrb[0].mxu0
    %v2478 = vadd.f32 0.0, %v2477
    %v2479 = vpop.f32.mrb[0].mxu0
    %v2480 = vadd.f32 0.0, %v2479
    %v2481 = vpop.f32.mrb[0].mxu0
    %v2482 = vpop.f32.mrb[0].mxu0
    %2483 = vdwg.mxu0
    %2484 = vmatprep.subr.bf16.mxu0 %v2277
    %2485 = vmatpush1.bf16.msra.mxu0 %v2276
    %2486 = vmatprep.subr.bf16.mxu0 %v2279
    %2487 = vmatpush1.bf16.msra.mxu0 %v2278
    %2488 = vmatprep.subr.bf16.mxu0 %v2281
    %2489 = vmatpush1.bf16.msra.mxu0 %v2280
    %2490 = vmatprep.subr.bf16.mxu0 %v2283
    %2491 = vmatpush1.bf16.msra.mxu0 %v2282
    %2492 = vmatprep.subr.bf16.mxu0 %v2285
    %2493 = vmatpush1.bf16.msra.mxu0 %v2284
    %2494 = vmatprep.subr.bf16.mxu0 %v2287
    %2495 = vmatpush1.bf16.msra.mxu0 %v2286
    %2496 = vmatprep.subr.bf16.mxu0 %v2289
    %2497 = vmatpush1.bf16.msra.mxu0 %v2288
    %2498 = vmatprep.subr.bf16.mxu0 %v2291
    %2499 = vmatpush1.bf16.msra.mxu0 %v2290
    %2500 = vmatprep.subr.bf16.mxu0 %v2293
    %2501 = vmatpush1.bf16.msra.mxu0 %v2292
    %2502 = vmatprep.subr.bf16.mxu0 %v2295
    %2503 = vmatpush1.bf16.msra.mxu0 %v2294
    %2504 = vmatprep.subr.bf16.mxu0 %v2297
    %2505 = vmatpush1.bf16.msra.mxu0 %v2296
    %2506 = vmatprep.subr.bf16.mxu0 %v2299
    %2507 = vmatpush1.bf16.msra.mxu0 %v2298
    %2508 = vmatprep.subr.bf16.mxu0 %v2301
    %2509 = vmatpush1.bf16.msra.mxu0 %v2300
    %2510 = vmatprep.subr.bf16.mxu0 %v2303
    %2511 = vmatpush1.bf16.msra.mxu0 %v2302
    %2512 = vmatprep.subr.bf16.mxu0 %v2305
    %2513 = vmatpush1.bf16.msra.mxu0 %v2304
    %2514 = vmatprep.subr.bf16.mxu0 %v2307
    %2515 = vmatpush1.bf16.msra.mxu0 %v2306
    %2516 = vmatprep.mubr.bf16.mxu0 %v1847
    %2517 = vmatmul.mubr.bf16.gmra.mrb[0].mxu0 %v1846
    %v2518 = vpop.f32.mrb[0].mxu0
    %v2519 = vadd.f32 %v2478, %v2518
    %v2520 = vpop.f32.mrb[0].mxu0
    %v2521 = vadd.f32 %v2480, %v2520
    %v2522 = vpop.f32.mrb[0].mxu0
    %v2523 = vpop.f32.mrb[0].mxu0
    %2524 = vdwg.mxu0
    %2525 = vmatprep.subr.bf16.mxu0 %v2309
    %2526 = vmatpush1.bf16.msra.mxu0 %v2308
    %2527 = vmatprep.subr.bf16.mxu0 %v2311
    %2528 = vmatpush1.bf16.msra.mxu0 %v2310
    %2529 = vmatprep.subr.bf16.mxu0 %v2313
    %2530 = vmatpush1.bf16.msra.mxu0 %v2312
    %2531 = vmatprep.subr.bf16.mxu0 %v2315
    %2532 = vmatpush1.bf16.msra.mxu0 %v2314
    %2533 = vmatprep.subr.bf16.mxu0 %v2317
    %2534 = vmatpush1.bf16.msra.mxu0 %v2316
    %2535 = vmatprep.subr.bf16.mxu0 %v2319
    %2536 = vmatpush1.bf16.msra.mxu0 %v2318
    %2537 = vmatprep.subr.bf16.mxu0 %v2321
    %2538 = vmatpush1.bf16.msra.mxu0 %v2320
    %2539 = vmatprep.subr.bf16.mxu0 %v2323
    %2540 = vmatpush1.bf16.msra.mxu0 %v2322
    %2541 = vmatprep.subr.bf16.mxu0 %v2325
    %2542 = vmatpush1.bf16.msra.mxu0 %v2324
    %2543 = vmatprep.subr.bf16.mxu0 %v2327
    %2544 = vmatpush1.bf16.msra.mxu0 %v2326
    %2545 = vmatprep.subr.bf16.mxu0 %v2329
    %2546 = vmatpush1.bf16.msra.mxu0 %v2328
    %2547 = vmatprep.subr.bf16.mxu0 %v2331
    %2548 = vmatpush1.bf16.msra.mxu0 %v2330
    %2549 = vmatprep.subr.bf16.mxu0 %v2333
    %2550 = vmatpush1.bf16.msra.mxu0 %v2332
    %2551 = vmatprep.subr.bf16.mxu0 %v2335
    %2552 = vmatpush1.bf16.msra.mxu0 %v2334
    %2553 = vmatprep.subr.bf16.mxu0 %v2337
    %2554 = vmatpush1.bf16.msra.mxu0 %v2336
    %2555 = vmatprep.subr.bf16.mxu0 %v2339
    %2556 = vmatpush1.bf16.msra.mxu0 %v2338
    %2557 = vmatprep.mubr.bf16.mxu0 %v1849
    %2558 = vmatmul.mubr.bf16.gmra.mrb[0].mxu0 %v1848
    %v2559 = vpop.f32.mrb[0].mxu0
    %v2560 = vadd.f32 %v2519, %v2559
    %v2561 = vpop.f32.mrb[0].mxu0
    %v2562 = vadd.f32 %v2521, %v2561
    %v2563 = vpop.f32.mrb[0].mxu0
    %v2564 = vpop.f32.mrb[0].mxu0
    %2565 = vdwg.mxu0
    %2566 = vmatprep.subr.bf16.mxu0 %v2341
    %2567 = vmatpush1.bf16.msra.mxu0 %v2340
    %2568 = vmatprep.subr.bf16.mxu0 0
    %2569 = vmatpush1.bf16.msra.mxu0 0
    %2570 = vmatprep.subr.bf16.mxu0 0
    %2571 = vmatpush1.bf16.msra.mxu0 0
    %2572 = vmatprep.subr.bf16.mxu0 0
    %2573 = vmatpush1.bf16.msra.mxu0 0
    %2574 = vmatprep.subr.bf16.mxu0 0
    %2575 = vmatpush1.bf16.msra.mxu0 0
    %2576 = vmatprep.subr.bf16.mxu0 0
    %2577 = vmatpush1.bf16.msra.mxu0 0
    %2578 = vmatprep.subr.bf16.mxu0 0
    %2579 = vmatpush1.bf16.msra.mxu0 0
    %2580 = vmatprep.subr.bf16.mxu0 0
    %2581 = vmatpush1.bf16.msra.mxu0 0
    %2582 = vmatprep.subr.bf16.mxu0 0
    %2583 = vmatpush1.bf16.msra.mxu0 0
    %2584 = vmatprep.subr.bf16.mxu0 0
    %2585 = vmatpush1.bf16.msra.mxu0 0
    %2586 = vmatprep.subr.bf16.mxu0 0
    %2587 = vmatpush1.bf16.msra.mxu0 0
    %2588 = vmatprep.subr.bf16.mxu0 0
    %2589 = vmatpush1.bf16.msra.mxu0 0
    %2590 = vmatprep.subr.bf16.mxu0 0
    %2591 = vmatpush1.bf16.msra.mxu0 0
    %2592 = vmatprep.subr.bf16.mxu0 0
    %2593 = vmatpush1.bf16.msra.mxu0 0
    %2594 = vmatprep.subr.bf16.mxu0 0
    %2595 = vmatpush1.bf16.msra.mxu0 0
    %2596 = vmatprep.subr.bf16.mxu0 0
    %2597 = vmatpush1.bf16.msra.mxu0 0
    %2598 = vmatprep.mubr.bf16.mxu0 0
    %2599 = vmatmul.mubr.bf16.gmra.mrb[0].mxu0 %v2441
    %v2600 = vpop.f32.mrb[0].mxu0
    %v2601 = vadd.f32 %v2560, %v2600
    %v2602 = vpop.f32.mrb[0].mxu0
    %v2603 = vadd.f32 %v2562, %v2602
    %v2604 = vpop.f32.mrb[0].mxu0
    %v2605 = vpop.f32.mrb[0].mxu0
    %2606 = vdwg.mxu0
    %v2607 = vadd.f32 %v1796, %v2601
    %v2608 = vadd.f32 %v1797, %v2603
    %v2609 = vmul.f32 %v985, %v1800
    %v2610 = vmul.f32 %v986, %v1801
    %v2611 = vsub.f32 %v2609, %v989
    %v2612 = vsub.f32 %v2610, %v990
    %v2615 = vcombine.high %v2611, %v2611
    %v2617 = vunpack.c.l.s4 1983009808
    %v2618 = vunpack.c.0.s8 %v2617
    %v2619 = vlaneseq
    %v2620 = vshrl.u32 %v2619, 7
    %v2621 = vsub.s32 %v2618, %v2620
    %v2622 = vrot.slane %v2611, %v2621
    %v2624 = vunpack.c.l.s4 1983009808
    %v2625 = vunpack.c.0.s8 %v2624
    %v2626 = vlaneseq
    %v2627 = vshrl.u32 %v2626, 7
    %v2628 = vsub.s32 %v2625, %v2627
    %v2629 = vrot.slane %v2615, %v2628
    %v2630 = vcombine.high %v2622, %v2622
    %v2631 = vcombine.high %v2629, %v2629
    %v2632 = vcombine.high %v2612, %v2612
    %v2634 = vunpack.c.l.s4 1983009808
    %v2635 = vunpack.c.0.s8 %v2634
    %v2636 = vlaneseq
    %v2637 = vshrl.u32 %v2636, 7
    %v2638 = vsub.s32 %v2635, %v2637
    %v2639 = vrot.slane %v2612, %v2638
    %v2641 = vunpack.c.l.s4 1983009808
    %v2642 = vunpack.c.0.s8 %v2641
    %v2643 = vlaneseq
    %v2644 = vshrl.u32 %v2643, 7
    %v2645 = vsub.s32 %v2642, %v2644
    %v2646 = vrot.slane %v2632, %v2645
    %v2647 = vcombine.high %v2639, %v2639
    %v2655 = vpack.c.bf16 %v2622, %v2622
    %v2656 = vpack.c.bf16 %v2630, %v2630
    %v2657 = vpack.c.bf16 %v2629, %v2629
    %v2658 = vpack.c.bf16 %v2631, %v2631
    %v2659 = vpack.c.bf16 %v2639, %v2639
    %v2660 = vpack.c.bf16 %v2647, %v2647
    %v2661 = vpack.c.bf16 %v2646, %v2646
    %s2662 = scalar_lea.vmem [#allocation2], 2352
    %v2663 = vld [vmem:[%s2662] sm:$0xff]
    %v2664 = vld [vmem:[%s2662 + $0x8] sm:$0xff]
    %v2665 = vld [vmem:[%s2662 + $0x10] sm:$0xff]
    %v2666 = vld [vmem:[%s2662 + $0x18] sm:$0xff]
    %v2667 = vld [vmem:[%s2662 + $0x20] sm:$0xff]
    %v2668 = vld [vmem:[%s2662 + $0x28] sm:$0xff]
    %v2669 = vld [vmem:[%s2662 + $0x30] sm:$0xff]
    %v2670 = vld [vmem:[%s2662 + $0x38] sm:$0xff]
    %v2671 = vld [vmem:[%s2662 + $0x40] sm:$0xff]
    %v2672 = vld [vmem:[%s2662 + $0x48] sm:$0xff]
    %v2673 = vld [vmem:[%s2662 + $0x50] sm:$0xff]
    %v2674 = vld [vmem:[%s2662 + $0x58] sm:$0xff]
    %v2675 = vld [vmem:[%s2662 + $0x60] sm:$0xff]
    %v2676 = vld [vmem:[%s2662 + $0x68] sm:$0xff]
    %v2677 = vld [vmem:[%s2662 + $0x70] sm:$0xff]
    %v2678 = vld [vmem:[%s2662 + $0x78] sm:$0xff]
    %v2679 = vld [vmem:[%s2662 + $0x80] sm:$0xff]
    %v2680 = vld [vmem:[%s2662 + $0x88] sm:$0xff]
    %v2681 = vld [vmem:[%s2662 + $0x90] sm:$0xff]
    %v2682 = vld [vmem:[%s2662 + $0x98] sm:$0xff]
    %v2683 = vld [vmem:[%s2662 + $0xa0] sm:$0xff]
    %v2684 = vld [vmem:[%s2662 + $0xa8] sm:$0xff]
    %v2685 = vld [vmem:[%s2662 + $0xb0] sm:$0xff]
    %v2686 = vld [vmem:[%s2662 + $0xb8] sm:$0xff]
    %v2687 = vld [vmem:[%s2662 + $0xc0] sm:$0xff]
    %v2688 = vld [vmem:[%s2662 + $0xc8] sm:$0xff]
    %v2689 = vld [vmem:[%s2662 + $0xd0] sm:$0xff]
    %v2690 = vld [vmem:[%s2662 + $0xd8] sm:$0xff]
    %v2691 = vld [vmem:[%s2662 + $0xe0] sm:$0xff]
    %v2692 = vld [vmem:[%s2662 + $0xe8] sm:$0xff]
    %v2693 = vld [vmem:[%s2662 + $0xf0] sm:$0xff]
    %v2694 = vld [vmem:[%s2662 + $0xf8] sm:$0xff]
    %v2695 = vld [vmem:[%s2662 + $0x100] sm:$0xff]
    %v2696 = vld [vmem:[%s2662 + $0x108] sm:$0xff]
    %v2697 = vld [vmem:[%s2662 + $0x110] sm:$0xff]
    %v2698 = vld [vmem:[%s2662 + $0x118] sm:$0xff]
    %v2699 = vld [vmem:[%s2662 + $0x120] sm:$0xff]
    %v2700 = vld [vmem:[%s2662 + $0x128] sm:$0xff]
    %v2701 = vld [vmem:[%s2662 + $0x130] sm:$0xff]
    %v2702 = vld [vmem:[%s2662 + $0x138] sm:$0xff]
    %v2703 = vld [vmem:[%s2662 + $0x140] sm:$0xff]
    %v2704 = vld [vmem:[%s2662 + $0x148] sm:$0xff]
    %v2705 = vld [vmem:[%s2662 + $0x150] sm:$0xff]
    %v2706 = vld [vmem:[%s2662 + $0x158] sm:$0xff]
    %v2707 = vld [vmem:[%s2662 + $0x160] sm:$0xff]
    %v2708 = vld [vmem:[%s2662 + $0x168] sm:$0xff]
    %v2709 = vld [vmem:[%s2662 + $0x170] sm:$0xff]
    %v2710 = vld [vmem:[%s2662 + $0x178] sm:$0xff]
    %v2711 = vld [vmem:[%s2662 + $0x180] sm:$0xff]
    %v2712 = vld [vmem:[%s2662 + $0x188] sm:$0xff]
    %v2713 = vld [vmem:[%s2662 + $0x190] sm:$0xff]
    %v2714 = vld [vmem:[%s2662 + $0x198] sm:$0xff]
    %v2715 = vld [vmem:[%s2662 + $0x1a0] sm:$0xff]
    %v2716 = vld [vmem:[%s2662 + $0x1a8] sm:$0xff]
    %v2717 = vld [vmem:[%s2662 + $0x1b0] sm:$0xff]
    %v2718 = vld [vmem:[%s2662 + $0x1b8] sm:$0xff]
    %v2719 = vld [vmem:[%s2662 + $0x1c0] sm:$0xff]
    %v2720 = vld [vmem:[%s2662 + $0x1c8] sm:$0xff]
    %v2721 = vld [vmem:[%s2662 + $0x1d0] sm:$0xff]
    %v2722 = vld [vmem:[%s2662 + $0x1d8] sm:$0xff]
    %v2723 = vld [vmem:[%s2662 + $0x1e0] sm:$0xff]
    %v2724 = vld [vmem:[%s2662 + $0x1e8] sm:$0xff]
    %v2725 = vld [vmem:[%s2662 + $0x1f0] sm:$0xff]
    %v2726 = vld [vmem:[%s2662 + $0x1f8] sm:$0xff]
    %v2727 = vld [vmem:[%s2662 + $0x200] sm:$0xff]
    %v2728 = vld [vmem:[%s2662 + $0x208] sm:$0xff]
    %v2729 = vld [vmem:[%s2662 + $0x210] sm:$0xff]
    %v2730 = vld [vmem:[%s2662 + $0x218] sm:$0xff]
    %v2731 = vld [vmem:[%s2662 + $0x220] sm:$0xff]
    %v2732 = vld [vmem:[%s2662 + $0x228] sm:$0xff]
    %v2733 = vld [vmem:[%s2662 + $0x230] sm:$0xff]
    %v2734 = vld [vmem:[%s2662 + $0x238] sm:$0xff]
    %v2735 = vld [vmem:[%s2662 + $0x240] sm:$0xff]
    %v2736 = vld [vmem:[%s2662 + $0x248] sm:$0xff]
    %v2737 = vld [vmem:[%s2662 + $0x250] sm:$0xff]
    %v2738 = vld [vmem:[%s2662 + $0x258] sm:$0xff]
    %v2739 = vld [vmem:[%s2662 + $0x260] sm:$0xff]
    %v2740 = vld [vmem:[%s2662 + $0x268] sm:$0xff]
    %v2741 = vld [vmem:[%s2662 + $0x270] sm:$0xff]
    %v2742 = vld [vmem:[%s2662 + $0x278] sm:$0xff]
    %v2743 = vld [vmem:[%s2662 + $0x280] sm:$0xff]
    %v2744 = vld [vmem:[%s2662 + $0x288] sm:$0xff]
    %v2745 = vld [vmem:[%s2662 + $0x290] sm:$0xff]
    %v2746 = vld [vmem:[%s2662 + $0x298] sm:$0xff]
    %v2747 = vld [vmem:[%s2662 + $0x2a0] sm:$0xff]
    %v2748 = vld [vmem:[%s2662 + $0x2a8] sm:$0xff]
    %v2749 = vld [vmem:[%s2662 + $0x2b0] sm:$0xff]
    %v2750 = vld [vmem:[%s2662 + $0x2b8] sm:$0xff]
    %v2751 = vld [vmem:[%s2662 + $0x2c0] sm:$0xff]
    %v2752 = vld [vmem:[%s2662 + $0x2c8] sm:$0xff]
    %v2753 = vld [vmem:[%s2662 + $0x2d0] sm:$0xff]
    %v2754 = vld [vmem:[%s2662 + $0x2d8] sm:$0xff]
    %v2755 = vld [vmem:[%s2662 + $0x2e0] sm:$0xff]
    %v2756 = vld [vmem:[%s2662 + $0x2e8] sm:$0xff]
    %v2757 = vld [vmem:[%s2662 + $0x2f0] sm:$0xff]
    %v2758 = vld [vmem:[%s2662 + $0x2f8] sm:$0xff]
    %v2759 = vld [vmem:[%s2662 + $0x300] sm:$0xff]
    %v2760 = vld [vmem:[%s2662 + $0x308] sm:$0xff]
    %v2859 = vunpack.c.l.b16 %v2663
    %v2860 = vunpack.c.h.b16 %v2663
    %v2861 = vunpack.c.l.b16 %v2664
    %v2862 = vunpack.c.h.b16 %v2664
    %v2863 = vunpack.c.l.b16 %v2665
    %v2864 = vunpack.c.h.b16 %v2665
    %v2865 = vunpack.c.l.b16 %v2666
    %v2866 = vunpack.c.h.b16 %v2666
    %v2867 = vunpack.c.l.b16 %v2667
    %v2868 = vunpack.c.h.b16 %v2667
    %v2869 = vunpack.c.l.b16 %v2668
    %v2870 = vunpack.c.h.b16 %v2668
    %v2871 = vunpack.c.l.b16 %v2669
    %v2872 = vunpack.c.h.b16 %v2669
    %v2873 = vunpack.c.l.b16 %v2670
    %v2874 = vunpack.c.h.b16 %v2670
    %v2875 = vunpack.c.l.b16 %v2671
    %v2876 = vunpack.c.h.b16 %v2671
    %v2877 = vunpack.c.l.b16 %v2672
    %v2878 = vunpack.c.h.b16 %v2672
    %v2879 = vunpack.c.l.b16 %v2673
    %v2880 = vunpack.c.h.b16 %v2673
    %v2881 = vunpack.c.l.b16 %v2674
    %v2882 = vunpack.c.h.b16 %v2674
    %v2883 = vunpack.c.l.b16 %v2675
    %v2884 = vunpack.c.h.b16 %v2675
    %v2885 = vunpack.c.l.b16 %v2676
    %v2886 = vunpack.c.h.b16 %v2676
    %v2887 = vunpack.c.l.b16 %v2677
    %v2888 = vunpack.c.h.b16 %v2677
    %v2889 = vunpack.c.l.b16 %v2678
    %v2890 = vunpack.c.h.b16 %v2678
    %v2891 = vunpack.c.l.b16 %v2679
    %v2892 = vunpack.c.h.b16 %v2679
    %v2893 = vunpack.c.l.b16 %v2680
    %v2894 = vunpack.c.h.b16 %v2680
    %v2895 = vunpack.c.l.b16 %v2681
    %v2896 = vunpack.c.h.b16 %v2681
    %v2897 = vunpack.c.l.b16 %v2682
    %v2898 = vunpack.c.h.b16 %v2682
    %v2899 = vunpack.c.l.b16 %v2683
    %v2900 = vunpack.c.h.b16 %v2683
    %v2901 = vunpack.c.l.b16 %v2684
    %v2902 = vunpack.c.h.b16 %v2684
    %v2903 = vunpack.c.l.b16 %v2685
    %v2904 = vunpack.c.h.b16 %v2685
    %v2905 = vunpack.c.l.b16 %v2686
    %v2906 = vunpack.c.h.b16 %v2686
    %v2907 = vunpack.c.l.b16 %v2687
    %v2908 = vunpack.c.h.b16 %v2687
    %v2909 = vunpack.c.l.b16 %v2688
    %v2910 = vunpack.c.h.b16 %v2688
    %v2911 = vunpack.c.l.b16 %v2689
    %v2912 = vunpack.c.h.b16 %v2689
    %v2913 = vunpack.c.l.b16 %v2690
    %v2914 = vunpack.c.h.b16 %v2690
    %v2915 = vunpack.c.l.b16 %v2691
    %v2916 = vunpack.c.h.b16 %v2691
    %v2917 = vunpack.c.l.b16 %v2692
    %v2918 = vunpack.c.h.b16 %v2692
    %v2919 = vunpack.c.l.b16 %v2693
    %v2920 = vunpack.c.h.b16 %v2693
    %v2921 = vunpack.c.l.b16 %v2694
    %v2922 = vunpack.c.h.b16 %v2694
    %v2923 = vunpack.c.l.b16 %v2695
    %v2924 = vunpack.c.h.b16 %v2695
    %v2925 = vunpack.c.l.b16 %v2696
    %v2926 = vunpack.c.h.b16 %v2696
    %v2927 = vunpack.c.l.b16 %v2697
    %v2928 = vunpack.c.h.b16 %v2697
    %v2929 = vunpack.c.l.b16 %v2698
    %v2930 = vunpack.c.h.b16 %v2698
    %v2931 = vunpack.c.l.b16 %v2699
    %v2932 = vunpack.c.h.b16 %v2699
    %v2933 = vunpack.c.l.b16 %v2700
    %v2934 = vunpack.c.h.b16 %v2700
    %v2935 = vunpack.c.l.b16 %v2701
    %v2936 = vunpack.c.h.b16 %v2701
    %v2937 = vunpack.c.l.b16 %v2702
    %v2938 = vunpack.c.h.b16 %v2702
    %v2939 = vunpack.c.l.b16 %v2703
    %v2940 = vunpack.c.h.b16 %v2703
    %v2941 = vunpack.c.l.b16 %v2704
    %v2942 = vunpack.c.h.b16 %v2704
    %v2943 = vunpack.c.l.b16 %v2705
    %v2944 = vunpack.c.h.b16 %v2705
    %v2945 = vunpack.c.l.b16 %v2706
    %v2946 = vunpack.c.h.b16 %v2706
    %v2947 = vunpack.c.l.b16 %v2707
    %v2948 = vunpack.c.h.b16 %v2707
    %v2949 = vunpack.c.l.b16 %v2708
    %v2950 = vunpack.c.h.b16 %v2708
    %v2951 = vunpack.c.l.b16 %v2709
    %v2952 = vunpack.c.h.b16 %v2709
    %v2953 = vunpack.c.l.b16 %v2710
    %v2954 = vunpack.c.h.b16 %v2710
    %v2955 = vunpack.c.l.b16 %v2711
    %v2956 = vunpack.c.h.b16 %v2711
    %v2957 = vunpack.c.l.b16 %v2712
    %v2958 = vunpack.c.h.b16 %v2712
    %v2959 = vunpack.c.l.b16 %v2713
    %v2960 = vunpack.c.h.b16 %v2713
    %v2961 = vunpack.c.l.b16 %v2714
    %v2962 = vunpack.c.h.b16 %v2714
    %v2963 = vunpack.c.l.b16 %v2715
    %v2964 = vunpack.c.h.b16 %v2715
    %v2965 = vunpack.c.l.b16 %v2716
    %v2966 = vunpack.c.h.b16 %v2716
    %v2967 = vunpack.c.l.b16 %v2717
    %v2968 = vunpack.c.h.b16 %v2717
    %v2969 = vunpack.c.l.b16 %v2718
    %v2970 = vunpack.c.h.b16 %v2718
    %v2971 = vunpack.c.l.b16 %v2719
    %v2972 = vunpack.c.h.b16 %v2719
    %v2973 = vunpack.c.l.b16 %v2720
    %v2974 = vunpack.c.h.b16 %v2720
    %v2975 = vunpack.c.l.b16 %v2721
    %v2976 = vunpack.c.h.b16 %v2721
    %v2977 = vunpack.c.l.b16 %v2722
    %v2978 = vunpack.c.h.b16 %v2722
    %v2979 = vunpack.c.l.b16 %v2723
    %v2980 = vunpack.c.h.b16 %v2723
    %v2981 = vunpack.c.l.b16 %v2724
    %v2982 = vunpack.c.h.b16 %v2724
    %v2983 = vunpack.c.l.b16 %v2725
    %v2984 = vunpack.c.h.b16 %v2725
    %v2985 = vunpack.c.l.b16 %v2726
    %v2986 = vunpack.c.h.b16 %v2726
    %v2987 = vunpack.c.l.b16 %v2727
    %v2988 = vunpack.c.h.b16 %v2727
    %v2989 = vunpack.c.l.b16 %v2728
    %v2990 = vunpack.c.h.b16 %v2728
    %v2991 = vunpack.c.l.b16 %v2729
    %v2992 = vunpack.c.h.b16 %v2729
    %v2993 = vunpack.c.l.b16 %v2730
    %v2994 = vunpack.c.h.b16 %v2730
    %v2995 = vunpack.c.l.b16 %v2731
    %v2996 = vunpack.c.h.b16 %v2731
    %v2997 = vunpack.c.l.b16 %v2732
    %v2998 = vunpack.c.h.b16 %v2732
    %v2999 = vunpack.c.l.b16 %v2733
    %v3000 = vunpack.c.h.b16 %v2733
    %v3001 = vunpack.c.l.b16 %v2734
    %v3002 = vunpack.c.h.b16 %v2734
    %v3003 = vunpack.c.l.b16 %v2735
    %v3004 = vunpack.c.h.b16 %v2735
    %v3005 = vunpack.c.l.b16 %v2736
    %v3006 = vunpack.c.h.b16 %v2736
    %v3007 = vunpack.c.l.b16 %v2737
    %v3008 = vunpack.c.h.b16 %v2737
    %v3009 = vunpack.c.l.b16 %v2738
    %v3010 = vunpack.c.h.b16 %v2738
    %v3011 = vunpack.c.l.b16 %v2739
    %v3012 = vunpack.c.h.b16 %v2739
    %v3013 = vunpack.c.l.b16 %v2740
    %v3014 = vunpack.c.h.b16 %v2740
    %v3015 = vunpack.c.l.b16 %v2741
    %v3016 = vunpack.c.h.b16 %v2741
    %v3017 = vunpack.c.l.b16 %v2742
    %v3018 = vunpack.c.h.b16 %v2742
    %v3019 = vunpack.c.l.b16 %v2743
    %v3020 = vunpack.c.h.b16 %v2743
    %v3021 = vunpack.c.l.b16 %v2744
    %v3022 = vunpack.c.h.b16 %v2744
    %v3023 = vunpack.c.l.b16 %v2745
    %v3024 = vunpack.c.h.b16 %v2745
    %v3025 = vunpack.c.l.b16 %v2746
    %v3026 = vunpack.c.h.b16 %v2746
    %v3027 = vunpack.c.l.b16 %v2747
    %v3028 = vunpack.c.h.b16 %v2747
    %v3029 = vunpack.c.l.b16 %v2748
    %v3030 = vunpack.c.h.b16 %v2748
    %v3031 = vunpack.c.l.b16 %v2749
    %v3032 = vunpack.c.h.b16 %v2749
    %v3033 = vunpack.c.l.b16 %v2750
    %v3034 = vunpack.c.h.b16 %v2750
    %v3035 = vunpack.c.l.b16 %v2751
    %v3036 = vunpack.c.h.b16 %v2751
    %v3037 = vunpack.c.l.b16 %v2752
    %v3038 = vunpack.c.h.b16 %v2752
    %v3039 = vunpack.c.l.b16 %v2753
    %v3040 = vunpack.c.h.b16 %v2753
    %v3041 = vunpack.c.l.b16 %v2754
    %v3042 = vunpack.c.h.b16 %v2754
    %v3043 = vunpack.c.l.b16 %v2755
    %v3044 = vunpack.c.h.b16 %v2755
    %v3045 = vunpack.c.l.b16 %v2756
    %v3046 = vunpack.c.h.b16 %v2756
    %v3047 = vunpack.c.l.b16 %v2757
    %v3048 = vunpack.c.h.b16 %v2757
    %v3049 = vunpack.c.l.b16 %v2758
    %v3050 = vunpack.c.h.b16 %v2758
    %v3051 = vunpack.c.l.b16 %v2759
    %v3052 = vunpack.c.h.b16 %v2759
    %v3053 = vunpack.c.l.b16 %v2760
    %v3054 = vunpack.c.h.b16 %v2760
    %v3055 = vpack.c.b16 %v2861, %v2859
    %v3056 = vpack.c.b16 %v2862, %v2860
    %v3057 = vpack.c.b16 %v2865, %v2863
    %v3058 = vpack.c.b16 %v2866, %v2864
    %v3059 = vpack.c.b16 %v2869, %v2867
    %v3060 = vpack.c.b16 %v2870, %v2868
    %v3061 = vpack.c.b16 %v2873, %v2871
    %v3062 = vpack.c.b16 %v2874, %v2872
    %v3063 = vpack.c.b16 %v2877, %v2875
    %v3064 = vpack.c.b16 %v2878, %v2876
    %v3065 = vpack.c.b16 %v2881, %v2879
    %v3066 = vpack.c.b16 %v2882, %v2880
    %v3067 = vpack.c.b16 %v2885, %v2883
    %v3068 = vpack.c.b16 %v2886, %v2884
    %v3069 = vpack.c.b16 %v2889, %v2887
    %v3070 = vpack.c.b16 %v2890, %v2888
    %v3071 = vpack.c.b16 %v2893, %v2891
    %v3072 = vpack.c.b16 %v2894, %v2892
    %v3073 = vpack.c.b16 %v2897, %v2895
    %v3074 = vpack.c.b16 %v2898, %v2896
    %v3075 = vpack.c.b16 %v2901, %v2899
    %v3076 = vpack.c.b16 %v2902, %v2900
    %v3077 = vpack.c.b16 %v2905, %v2903
    %v3078 = vpack.c.b16 %v2906, %v2904
    %v3079 = vpack.c.b16 %v2909, %v2907
    %v3080 = vpack.c.b16 %v2910, %v2908
    %v3081 = vpack.c.b16 %v2913, %v2911
    %v3082 = vpack.c.b16 %v2914, %v2912
    %v3083 = vpack.c.b16 %v2917, %v2915
    %v3084 = vpack.c.b16 %v2918, %v2916
    %v3085 = vpack.c.b16 %v2921, %v2919
    %v3086 = vpack.c.b16 %v2922, %v2920
    %v3087 = vpack.c.b16 %v2925, %v2923
    %v3088 = vpack.c.b16 %v2926, %v2924
    %v3089 = vpack.c.b16 %v2929, %v2927
    %v3090 = vpack.c.b16 %v2930, %v2928
    %v3091 = vpack.c.b16 %v2933, %v2931
    %v3092 = vpack.c.b16 %v2934, %v2932
    %v3093 = vpack.c.b16 %v2937, %v2935
    %v3094 = vpack.c.b16 %v2938, %v2936
    %v3095 = vpack.c.b16 %v2941, %v2939
    %v3096 = vpack.c.b16 %v2942, %v2940
    %v3097 = vpack.c.b16 %v2945, %v2943
    %v3098 = vpack.c.b16 %v2946, %v2944
    %v3099 = vpack.c.b16 %v2949, %v2947
    %v3100 = vpack.c.b16 %v2950, %v2948
    %v3101 = vpack.c.b16 %v2953, %v2951
    %v3102 = vpack.c.b16 %v2954, %v2952
    %v3103 = vpack.c.b16 %v2957, %v2955
    %v3104 = vpack.c.b16 %v2958, %v2956
    %v3105 = vpack.c.b16 %v2961, %v2959
    %v3106 = vpack.c.b16 %v2962, %v2960
    %v3107 = vpack.c.b16 %v2965, %v2963
    %v3108 = vpack.c.b16 %v2966, %v2964
    %v3109 = vpack.c.b16 %v2969, %v2967
    %v3110 = vpack.c.b16 %v2970, %v2968
    %v3111 = vpack.c.b16 %v2973, %v2971
    %v3112 = vpack.c.b16 %v2974, %v2972
    %v3113 = vpack.c.b16 %v2977, %v2975
    %v3114 = vpack.c.b16 %v2978, %v2976
    %v3115 = vpack.c.b16 %v2981, %v2979
    %v3116 = vpack.c.b16 %v2982, %v2980
    %v3117 = vpack.c.b16 %v2985, %v2983
    %v3118 = vpack.c.b16 %v2986, %v2984
    %v3119 = vpack.c.b16 %v2989, %v2987
    %v3120 = vpack.c.b16 %v2990, %v2988
    %v3121 = vpack.c.b16 %v2993, %v2991
    %v3122 = vpack.c.b16 %v2994, %v2992
    %v3123 = vpack.c.b16 %v2997, %v2995
    %v3124 = vpack.c.b16 %v2998, %v2996
    %v3125 = vpack.c.b16 %v3001, %v2999
    %v3126 = vpack.c.b16 %v3002, %v3000
    %v3127 = vpack.c.b16 %v3005, %v3003
    %v3128 = vpack.c.b16 %v3006, %v3004
    %v3129 = vpack.c.b16 %v3009, %v3007
    %v3130 = vpack.c.b16 %v3010, %v3008
    %v3131 = vpack.c.b16 %v3013, %v3011
    %v3132 = vpack.c.b16 %v3014, %v3012
    %v3133 = vpack.c.b16 %v3017, %v3015
    %v3134 = vpack.c.b16 %v3018, %v3016
    %v3135 = vpack.c.b16 %v3021, %v3019
    %v3136 = vpack.c.b16 %v3022, %v3020
    %v3137 = vpack.c.b16 %v3025, %v3023
    %v3138 = vpack.c.b16 %v3026, %v3024
    %v3139 = vpack.c.b16 %v3029, %v3027
    %v3140 = vpack.c.b16 %v3030, %v3028
    %v3141 = vpack.c.b16 %v3033, %v3031
    %v3142 = vpack.c.b16 %v3034, %v3032
    %v3143 = vpack.c.b16 %v3037, %v3035
    %v3144 = vpack.c.b16 %v3038, %v3036
    %v3145 = vpack.c.b16 %v3041, %v3039
    %v3146 = vpack.c.b16 %v3042, %v3040
    %v3147 = vpack.c.b16 %v3045, %v3043
    %v3148 = vpack.c.b16 %v3046, %v3044
    %v3149 = vpack.c.b16 %v3049, %v3047
    %v3150 = vpack.c.b16 %v3050, %v3048
    %v3151 = vpack.c.b16 %v3053, %v3051
    %v3152 = vpack.c.b16 %v3054, %v3052
    %v3252 = vsel %vm804, %v2661, 0
    %3254 = vmatprep.subr.bf16.mxu0 %v3056
    %3255 = vmatpush1.bf16.msra.mxu0 %v3055
    %3256 = vmatprep.subr.bf16.mxu0 %v3058
    %3257 = vmatpush1.bf16.msra.mxu0 %v3057
    %3258 = vmatprep.subr.bf16.mxu0 %v3060
    %3259 = vmatpush1.bf16.msra.mxu0 %v3059
    %3260 = vmatprep.subr.bf16.mxu0 %v3062
    %3261 = vmatpush1.bf16.msra.mxu0 %v3061
    %3262 = vmatprep.subr.bf16.mxu0 %v3064
    %3263 = vmatpush1.bf16.msra.mxu0 %v3063
    %3264 = vmatprep.subr.bf16.mxu0 %v3066
    %3265 = vmatpush1.bf16.msra.mxu0 %v3065
    %3266 = vmatprep.subr.bf16.mxu0 %v3068
    %3267 = vmatpush1.bf16.msra.mxu0 %v3067
    %3268 = vmatprep.subr.bf16.mxu0 %v3070
    %3269 = vmatpush1.bf16.msra.mxu0 %v3069
    %3270 = vmatprep.subr.bf16.mxu0 %v3072
    %3271 = vmatpush1.bf16.msra.mxu0 %v3071
    %3272 = vmatprep.subr.bf16.mxu0 %v3074
    %3273 = vmatpush1.bf16.msra.mxu0 %v3073
    %3274 = vmatprep.subr.bf16.mxu0 %v3076
    %3275 = vmatpush1.bf16.msra.mxu0 %v3075
    %3276 = vmatprep.subr.bf16.mxu0 %v3078
    %3277 = vmatpush1.bf16.msra.mxu0 %v3077
    %3278 = vmatprep.subr.bf16.mxu0 %v3080
    %3279 = vmatpush1.bf16.msra.mxu0 %v3079
    %3280 = vmatprep.subr.bf16.mxu0 %v3082
    %3281 = vmatpush1.bf16.msra.mxu0 %v3081
    %3282 = vmatprep.subr.bf16.mxu0 %v3084
    %3283 = vmatpush1.bf16.msra.mxu0 %v3083
    %3284 = vmatprep.subr.bf16.mxu0 %v3086
    %3285 = vmatpush1.bf16.msra.mxu0 %v3085
    %3286 = vmatprep.mubr.bf16.mxu0 %v2656
    %3287 = vmatmul.mubr.bf16.gmra.mrb[0].mxu0 %v2655
    %v3288 = vpop.f32.mrb[0].mxu0
    %v3289 = vadd.f32 0.0, %v3288
    %v3290 = vpop.f32.mrb[0].mxu0
    %v3291 = vadd.f32 0.0, %v3290
    %v3292 = vpop.f32.mrb[0].mxu0
    %v3293 = vpop.f32.mrb[0].mxu0
    %3294 = vdwg.mxu0
    %3295 = vmatprep.subr.bf16.mxu0 %v3088
    %3296 = vmatpush1.bf16.msra.mxu0 %v3087
    %3297 = vmatprep.subr.bf16.mxu0 %v3090
    %3298 = vmatpush1.bf16.msra.mxu0 %v3089
    %3299 = vmatprep.subr.bf16.mxu0 %v3092
    %3300 = vmatpush1.bf16.msra.mxu0 %v3091
    %3301 = vmatprep.subr.bf16.mxu0 %v3094
    %3302 = vmatpush1.bf16.msra.mxu0 %v3093
    %3303 = vmatprep.subr.bf16.mxu0 %v3096
    %3304 = vmatpush1.bf16.msra.mxu0 %v3095
    %3305 = vmatprep.subr.bf16.mxu0 %v3098
    %3306 = vmatpush1.bf16.msra.mxu0 %v3097
    %3307 = vmatprep.subr.bf16.mxu0 %v3100
    %3308 = vmatpush1.bf16.msra.mxu0 %v3099
    %3309 = vmatprep.subr.bf16.mxu0 %v3102
    %3310 = vmatpush1.bf16.msra.mxu0 %v3101
    %3311 = vmatprep.subr.bf16.mxu0 %v3104
    %3312 = vmatpush1.bf16.msra.mxu0 %v3103
    %3313 = vmatprep.subr.bf16.mxu0 %v3106
    %3314 = vmatpush1.bf16.msra.mxu0 %v3105
    %3315 = vmatprep.subr.bf16.mxu0 %v3108
    %3316 = vmatpush1.bf16.msra.mxu0 %v3107
    %3317 = vmatprep.subr.bf16.mxu0 %v3110
    %3318 = vmatpush1.bf16.msra.mxu0 %v3109
    %3319 = vmatprep.subr.bf16.mxu0 %v3112
    %3320 = vmatpush1.bf16.msra.mxu0 %v3111
    %3321 = vmatprep.subr.bf16.mxu0 %v3114
    %3322 = vmatpush1.bf16.msra.mxu0 %v3113
    %3323 = vmatprep.subr.bf16.mxu0 %v3116
    %3324 = vmatpush1.bf16.msra.mxu0 %v3115
    %3325 = vmatprep.subr.bf16.mxu0 %v3118
    %3326 = vmatpush1.bf16.msra.mxu0 %v3117
    %3327 = vmatprep.mubr.bf16.mxu0 %v2658
    %3328 = vmatmul.mubr.bf16.gmra.mrb[0].mxu0 %v2657
    %v3329 = vpop.f32.mrb[0].mxu0
    %v3330 = vadd.f32 %v3289, %v3329
    %v3331 = vpop.f32.mrb[0].mxu0
    %v3332 = vadd.f32 %v3291, %v3331
    %v3333 = vpop.f32.mrb[0].mxu0
    %v3334 = vpop.f32.mrb[0].mxu0
    %3335 = vdwg.mxu0
    %3336 = vmatprep.subr.bf16.mxu0 %v3120
    %3337 = vmatpush1.bf16.msra.mxu0 %v3119
    %3338 = vmatprep.subr.bf16.mxu0 %v3122
    %3339 = vmatpush1.bf16.msra.mxu0 %v3121
    %3340 = vmatprep.subr.bf16.mxu0 %v3124
    %3341 = vmatpush1.bf16.msra.mxu0 %v3123
    %3342 = vmatprep.subr.bf16.mxu0 %v3126
    %3343 = vmatpush1.bf16.msra.mxu0 %v3125
    %3344 = vmatprep.subr.bf16.mxu0 %v3128
    %3345 = vmatpush1.bf16.msra.mxu0 %v3127
    %3346 = vmatprep.subr.bf16.mxu0 %v3130
    %3347 = vmatpush1.bf16.msra.mxu0 %v3129
    %3348 = vmatprep.subr.bf16.mxu0 %v3132
    %3349 = vmatpush1.bf16.msra.mxu0 %v3131
    %3350 = vmatprep.subr.bf16.mxu0 %v3134
    %3351 = vmatpush1.bf16.msra.mxu0 %v3133
    %3352 = vmatprep.subr.bf16.mxu0 %v3136
    %3353 = vmatpush1.bf16.msra.mxu0 %v3135
    %3354 = vmatprep.subr.bf16.mxu0 %v3138
    %3355 = vmatpush1.bf16.msra.mxu0 %v3137
    %3356 = vmatprep.subr.bf16.mxu0 %v3140
    %3357 = vmatpush1.bf16.msra.mxu0 %v3139
    %3358 = vmatprep.subr.bf16.mxu0 %v3142
    %3359 = vmatpush1.bf16.msra.mxu0 %v3141
    %3360 = vmatprep.subr.bf16.mxu0 %v3144
    %3361 = vmatpush1.bf16.msra.mxu0 %v3143
    %3362 = vmatprep.subr.bf16.mxu0 %v3146
    %3363 = vmatpush1.bf16.msra.mxu0 %v3145
    %3364 = vmatprep.subr.bf16.mxu0 %v3148
    %3365 = vmatpush1.bf16.msra.mxu0 %v3147
    %3366 = vmatprep.subr.bf16.mxu0 %v3150
    %3367 = vmatpush1.bf16.msra.mxu0 %v3149
    %3368 = vmatprep.mubr.bf16.mxu0 %v2660
    %3369 = vmatmul.mubr.bf16.gmra.mrb[0].mxu0 %v2659
    %v3370 = vpop.f32.mrb[0].mxu0
    %v3371 = vadd.f32 %v3330, %v3370
    %v3372 = vpop.f32.mrb[0].mxu0
    %v3373 = vadd.f32 %v3332, %v3372
    %v3374 = vpop.f32.mrb[0].mxu0
    %v3375 = vpop.f32.mrb[0].mxu0
    %3376 = vdwg.mxu0
    %3377 = vmatprep.subr.bf16.mxu0 %v3152
    %3378 = vmatpush1.bf16.msra.mxu0 %v3151
    %3379 = vmatprep.subr.bf16.mxu0 0
    %3380 = vmatpush1.bf16.msra.mxu0 0
    %3381 = vmatprep.subr.bf16.mxu0 0
    %3382 = vmatpush1.bf16.msra.mxu0 0
    %3383 = vmatprep.subr.bf16.mxu0 0
    %3384 = vmatpush1.bf16.msra.mxu0 0
    %3385 = vmatprep.subr.bf16.mxu0 0
    %3386 = vmatpush1.bf16.msra.mxu0 0
    %3387 = vmatprep.subr.bf16.mxu0 0
    %3388 = vmatpush1.bf16.msra.mxu0 0
    %3389 = vmatprep.subr.bf16.mxu0 0
    %3390 = vmatpush1.bf16.msra.mxu0 0
    %3391 = vmatprep.subr.bf16.mxu0 0
    %3392 = vmatpush1.bf16.msra.mxu0 0
    %3393 = vmatprep.subr.bf16.mxu0 0
    %3394 = vmatpush1.bf16.msra.mxu0 0
    %3395 = vmatprep.subr.bf16.mxu0 0
    %3396 = vmatpush1.bf16.msra.mxu0 0
    %3397 = vmatprep.subr.bf16.mxu0 0
    %3398 = vmatpush1.bf16.msra.mxu0 0
    %3399 = vmatprep.subr.bf16.mxu0 0
    %3400 = vmatpush1.bf16.msra.mxu0 0
    %3401 = vmatprep.subr.bf16.mxu0 0
    %3402 = vmatpush1.bf16.msra.mxu0 0
    %3403 = vmatprep.subr.bf16.mxu0 0
    %3404 = vmatpush1.bf16.msra.mxu0 0
    %3405 = vmatprep.subr.bf16.mxu0 0
    %3406 = vmatpush1.bf16.msra.mxu0 0
    %3407 = vmatprep.subr.bf16.mxu0 0
    %3408 = vmatpush1.bf16.msra.mxu0 0
    %3409 = vmatprep.mubr.bf16.mxu0 0
    %3410 = vmatmul.mubr.bf16.gmra.mrb[0].mxu0 %v3252
    %v3411 = vpop.f32.mrb[0].mxu0
    %v3412 = vadd.f32 %v3371, %v3411
    %v3413 = vpop.f32.mrb[0].mxu0
    %v3414 = vadd.f32 %v3373, %v3413
    %v3415 = vpop.f32.mrb[0].mxu0
    %v3416 = vpop.f32.mrb[0].mxu0
    %3417 = vdwg.mxu0
    %v3418 = vadd.f32 %v2607, %v3412
    %v3419 = vadd.f32 %v2608, %v3414
    %vm3420 = vcmask 1041408
    %v3421 = vsel %vm3420, %v3418, 0.0
    %v3422 = vsel %vm3420, %v3419, 0.0
    %v3423 = vadd.f32 %v3421, %v3422
    %3424 = vadd.xlane.f32.xlu0 %v3423
    %v3425 = vpop.xlane.xlu0 %3424
    %v3426 = vmul.f32 %v3425, 0.00390625
    %v3427 = vmul.f32 %v3418, %v3418
    %v3428 = vmul.f32 %v3419, %v3419
    %v3429 = vsel %vm3420, %v3427, 0.0
    %v3430 = vsel %vm3420, %v3428, 0.0
    %v3431 = vadd.f32 %v3429, %v3430
    %3432 = vadd.xlane.f32.xlu0 %v3431
    %v3433 = vpop.xlane.xlu0 %3432
    %v3434 = vmul.f32 %v3433, 0.00390625
    %v3435 = vmul.f32 %v3426, %v3426
    %v3436 = vsub.f32 %v3434, %v3435
    %v3437 = vsub.f32 %v3418, %v3426
    %v3438 = vsub.f32 %v3419, %v3426
    %v3439 = vadd.f32 %v3436, 1e-05
    %v3440 = vrsqrt.pop %v3439
    %v3441 = vmul.f32 %v3437, %v3440
    %v3442 = vmul.f32 %v3438, %v3440
    %v3443 = vld [vmem:[#allocation7] sm:$0x3]
    %v3445 = vlaneseq
    %v3446 = vshrl.u32 %v3445, 7
    %v3447 = vsub.s32 0, %v3446
    %v3448 = vrot.slane %v3443, %v3447
    %v3449 = vlaneseq
    %v3450 = vshrl.u32 %v3449, 7
    %v3451 = vsub.s32 1, %v3450
    %v3452 = vrot.slane %v3443, %v3451
    %v3455 = vmul.f32 %v3441, %v3448
    %v3456 = vmul.f32 %v3442, %v3452
    %v3457 = vld [vmem:[#allocation8] sm:$0x3]
    %v3459 = vlaneseq
    %v3460 = vshrl.u32 %v3459, 7
    %v3461 = vsub.s32 0, %v3460
    %v3462 = vrot.slane %v3457, %v3461
    %v3463 = vlaneseq
    %v3464 = vshrl.u32 %v3463, 7
    %v3465 = vsub.s32 1, %v3464
    %v3466 = vrot.slane %v3457, %v3465
    %v3469 = vadd.f32 %v3455, %v3462
    %v3470 = vadd.f32 %v3456, %v3466
    %v3471 = vtanh.pop %v3469
    %v3472 = vtanh.pop %v3470
    %v3473 = vld [vmem:[#allocation11] sm:$0x3]
    %v3474 = vpack.c.bf16 %v3471, %v3471
    %v3475 = vpack.c.bf16 %v3472, %v3472
    %v3476 = vld [vmem:[#allocation10] sm:$0xff]
    %v3477 = vld [vmem:[#allocation10 + $0x8] sm:$0xff]
    %v3478 = vld [vmem:[#allocation10 + $0x10] sm:$0xff]
    %v3479 = vld [vmem:[#allocation10 + $0x18] sm:$0xff]
    %v3480 = vld [vmem:[#allocation10 + $0x20] sm:$0xff]
    %v3481 = vld [vmem:[#allocation10 + $0x28] sm:$0xff]
    %v3482 = vld [vmem:[#allocation10 + $0x30] sm:$0xff]
    %v3483 = vld [vmem:[#allocation10 + $0x38] sm:$0xff]
    %v3484 = vld [vmem:[#allocation10 + $0x40] sm:$0xff]
    %v3485 = vld [vmem:[#allocation10 + $0x48] sm:$0xff]
    %v3486 = vld [vmem:[#allocation10 + $0x50] sm:$0xff]
    %v3487 = vld [vmem:[#allocation10 + $0x58] sm:$0xff]
    %v3488 = vld [vmem:[#allocation10 + $0x60] sm:$0xff]
    %v3489 = vld [vmem:[#allocation10 + $0x68] sm:$0xff]
    %v3490 = vld [vmem:[#allocation10 + $0x70] sm:$0xff]
    %v3491 = vld [vmem:[#allocation10 + $0x78] sm:$0xff]
    %v3492 = vld [vmem:[#allocation10 + $0x80] sm:$0xff]
    %v3493 = vld [vmem:[#allocation10 + $0x88] sm:$0xff]
    %v3494 = vld [vmem:[#allocation10 + $0x90] sm:$0xff]
    %v3495 = vld [vmem:[#allocation10 + $0x98] sm:$0xff]
    %v3496 = vld [vmem:[#allocation10 + $0xa0] sm:$0xff]
    %v3497 = vld [vmem:[#allocation10 + $0xa8] sm:$0xff]
    %v3498 = vld [vmem:[#allocation10 + $0xb0] sm:$0xff]
    %v3499 = vld [vmem:[#allocation10 + $0xb8] sm:$0xff]
    %v3500 = vld [vmem:[#allocation10 + $0xc0] sm:$0xff]
    %v3501 = vld [vmem:[#allocation10 + $0xc8] sm:$0xff]
    %v3502 = vld [vmem:[#allocation10 + $0xd0] sm:$0xff]
    %v3503 = vld [vmem:[#allocation10 + $0xd8] sm:$0xff]
    %v3504 = vld [vmem:[#allocation10 + $0xe0] sm:$0xff]
    %v3505 = vld [vmem:[#allocation10 + $0xe8] sm:$0xff]
    %v3506 = vld [vmem:[#allocation10 + $0xf0] sm:$0xff]
    %v3507 = vld [vmem:[#allocation10 + $0xf8] sm:$0xff]
    %v3540 = vunpack.c.l.b16 %v3476
    %v3541 = vunpack.c.h.b16 %v3476
    %v3542 = vunpack.c.l.b16 %v3477
    %v3543 = vunpack.c.h.b16 %v3477
    %v3544 = vunpack.c.l.b16 %v3478
    %v3545 = vunpack.c.h.b16 %v3478
    %v3546 = vunpack.c.l.b16 %v3479
    %v3547 = vunpack.c.h.b16 %v3479
    %v3548 = vunpack.c.l.b16 %v3480
    %v3549 = vunpack.c.h.b16 %v3480
    %v3550 = vunpack.c.l.b16 %v3481
    %v3551 = vunpack.c.h.b16 %v3481
    %v3552 = vunpack.c.l.b16 %v3482
    %v3553 = vunpack.c.h.b16 %v3482
    %v3554 = vunpack.c.l.b16 %v3483
    %v3555 = vunpack.c.h.b16 %v3483
    %v3556 = vunpack.c.l.b16 %v3484
    %v3557 = vunpack.c.h.b16 %v3484
    %v3558 = vunpack.c.l.b16 %v3485
    %v3559 = vunpack.c.h.b16 %v3485
    %v3560 = vunpack.c.l.b16 %v3486
    %v3561 = vunpack.c.h.b16 %v3486
    %v3562 = vunpack.c.l.b16 %v3487
    %v3563 = vunpack.c.h.b16 %v3487
    %v3564 = vunpack.c.l.b16 %v3488
    %v3565 = vunpack.c.h.b16 %v3488
    %v3566 = vunpack.c.l.b16 %v3489
    %v3567 = vunpack.c.h.b16 %v3489
    %v3568 = vunpack.c.l.b16 %v3490
    %v3569 = vunpack.c.h.b16 %v3490
    %v3570 = vunpack.c.l.b16 %v3491
    %v3571 = vunpack.c.h.b16 %v3491
    %v3572 = vunpack.c.l.b16 %v3492
    %v3573 = vunpack.c.h.b16 %v3492
    %v3574 = vunpack.c.l.b16 %v3493
    %v3575 = vunpack.c.h.b16 %v3493
    %v3576 = vunpack.c.l.b16 %v3494
    %v3577 = vunpack.c.h.b16 %v3494
    %v3578 = vunpack.c.l.b16 %v3495
    %v3579 = vunpack.c.h.b16 %v3495
    %v3580 = vunpack.c.l.b16 %v3496
    %v3581 = vunpack.c.h.b16 %v3496
    %v3582 = vunpack.c.l.b16 %v3497
    %v3583 = vunpack.c.h.b16 %v3497
    %v3584 = vunpack.c.l.b16 %v3498
    %v3585 = vunpack.c.h.b16 %v3498
    %v3586 = vunpack.c.l.b16 %v3499
    %v3587 = vunpack.c.h.b16 %v3499
    %v3588 = vunpack.c.l.b16 %v3500
    %v3589 = vunpack.c.h.b16 %v3500
    %v3590 = vunpack.c.l.b16 %v3501
    %v3591 = vunpack.c.h.b16 %v3501
    %v3592 = vunpack.c.l.b16 %v3502
    %v3593 = vunpack.c.h.b16 %v3502
    %v3594 = vunpack.c.l.b16 %v3503
    %v3595 = vunpack.c.h.b16 %v3503
    %v3596 = vunpack.c.l.b16 %v3504
    %v3597 = vunpack.c.h.b16 %v3504
    %v3598 = vunpack.c.l.b16 %v3505
    %v3599 = vunpack.c.h.b16 %v3505
    %v3600 = vunpack.c.l.b16 %v3506
    %v3601 = vunpack.c.h.b16 %v3506
    %v3602 = vunpack.c.l.b16 %v3507
    %v3603 = vunpack.c.h.b16 %v3507
    %v3604 = vpack.c.b16 %v3542, %v3540
    %v3605 = vpack.c.b16 %v3543, %v3541
    %v3606 = vpack.c.b16 %v3546, %v3544
    %v3607 = vpack.c.b16 %v3547, %v3545
    %v3608 = vpack.c.b16 %v3550, %v3548
    %v3609 = vpack.c.b16 %v3551, %v3549
    %v3610 = vpack.c.b16 %v3554, %v3552
    %v3611 = vpack.c.b16 %v3555, %v3553
    %v3612 = vpack.c.b16 %v3558, %v3556
    %v3613 = vpack.c.b16 %v3559, %v3557
    %v3614 = vpack.c.b16 %v3562, %v3560
    %v3615 = vpack.c.b16 %v3563, %v3561
    %v3616 = vpack.c.b16 %v3566, %v3564
    %v3617 = vpack.c.b16 %v3567, %v3565
    %v3618 = vpack.c.b16 %v3570, %v3568
    %v3619 = vpack.c.b16 %v3571, %v3569
    %v3620 = vpack.c.b16 %v3574, %v3572
    %v3621 = vpack.c.b16 %v3575, %v3573
    %v3622 = vpack.c.b16 %v3578, %v3576
    %v3623 = vpack.c.b16 %v3579, %v3577
    %v3624 = vpack.c.b16 %v3582, %v3580
    %v3625 = vpack.c.b16 %v3583, %v3581
    %v3626 = vpack.c.b16 %v3586, %v3584
    %v3627 = vpack.c.b16 %v3587, %v3585
    %v3628 = vpack.c.b16 %v3590, %v3588
    %v3629 = vpack.c.b16 %v3591, %v3589
    %v3630 = vpack.c.b16 %v3594, %v3592
    %v3631 = vpack.c.b16 %v3595, %v3593
    %v3632 = vpack.c.b16 %v3598, %v3596
    %v3633 = vpack.c.b16 %v3599, %v3597
    %v3634 = vpack.c.b16 %v3602, %v3600
    %v3635 = vpack.c.b16 %v3603, %v3601
    %3668 = vmatprep.subr.bf16.mxu0 %v3605
    %3669 = vmatpush1.bf16.msra.mxu0 %v3604
    %3670 = vmatprep.subr.bf16.mxu0 %v3607
    %3671 = vmatpush1.bf16.msra.mxu0 %v3606
    %3672 = vmatprep.subr.bf16.mxu0 %v3609
    %3673 = vmatpush1.bf16.msra.mxu0 %v3608
    %3674 = vmatprep.subr.bf16.mxu0 %v3611
    %3675 = vmatpush1.bf16.msra.mxu0 %v3610
    %3676 = vmatprep.subr.bf16.mxu0 %v3613
    %3677 = vmatpush1.bf16.msra.mxu0 %v3612
    %3678 = vmatprep.subr.bf16.mxu0 %v3615
    %3679 = vmatpush1.bf16.msra.mxu0 %v3614
    %3680 = vmatprep.subr.bf16.mxu0 %v3617
    %3681 = vmatpush1.bf16.msra.mxu0 %v3616
    %3682 = vmatprep.subr.bf16.mxu0 %v3619
    %3683 = vmatpush1.bf16.msra.mxu0 %v3618
    %3684 = vmatprep.subr.bf16.mxu0 %v3621
    %3685 = vmatpush1.bf16.msra.mxu0 %v3620
    %3686 = vmatprep.subr.bf16.mxu0 %v3623
    %3687 = vmatpush1.bf16.msra.mxu0 %v3622
    %3688 = vmatprep.subr.bf16.mxu0 %v3625
    %3689 = vmatpush1.bf16.msra.mxu0 %v3624
    %3690 = vmatprep.subr.bf16.mxu0 %v3627
    %3691 = vmatpush1.bf16.msra.mxu0 %v3626
    %3692 = vmatprep.subr.bf16.mxu0 %v3629
    %3693 = vmatpush1.bf16.msra.mxu0 %v3628
    %3694 = vmatprep.subr.bf16.mxu0 %v3631
    %3695 = vmatpush1.bf16.msra.mxu0 %v3630
    %3696 = vmatprep.subr.bf16.mxu0 %v3633
    %3697 = vmatpush1.bf16.msra.mxu0 %v3632
    %3698 = vmatprep.subr.bf16.mxu0 %v3635
    %3699 = vmatpush1.bf16.msra.mxu0 %v3634
    %3700 = vmatprep.mubr.bf16.mxu0 %v3475
    %3701 = vmatmul.mubr.bf16.gmra.mrb[0].mxu0 %v3474
    %v3702 = vpop.f32.mrb[0].mxu0
    %v3703 = vadd.f32 0.0, %v3702
    %v3704 = vpop.f32.mrb[0].mxu0
    %v3705 = vadd.f32 0.0, %v3704
    %v3706 = vpop.f32.mrb[0].mxu0
    %v3707 = vpop.f32.mrb[0].mxu0
    %3708 = vdwg.mxu0
    %v3710 = vlaneseq
    %v3711 = vshrl.u32 %v3710, 7
    %v3712 = vsub.s32 0, %v3711
    %v3713 = vrot.slane %v3473, %v3712
    %v3714 = vlaneseq
    %v3715 = vshrl.u32 %v3714, 7
    %v3716 = vsub.s32 1, %v3715
    %v3717 = vrot.slane %v3473, %v3716
    %v3720 = vadd.f32 %v3713, %v3703
    %v3721 = vadd.f32 %v3717, %v3705
    %v3722 = vmul.f32 %v3471, 2.0
    %v3723 = vmul.f32 %v3472, 2.0
    %v3724 = vmul.f32 %v3722, %v3471
    %v3725 = vmul.f32 %v3723, %v3472
    %v3726 = vsub.f32 %v3724, 1.0
    %v3727 = vsub.f32 %v3725, 1.0
    %v3728 = vpack.c.bf16 %v3726, %v3726
    %v3729 = vpack.c.bf16 %v3727, %v3727
    %s3730 = scalar_lea.vmem [#allocation10], 256
    %v3731 = vld [vmem:[%s3730] sm:$0xff]
    %v3732 = vld [vmem:[%s3730 + $0x8] sm:$0xff]
    %v3733 = vld [vmem:[%s3730 + $0x10] sm:$0xff]
    %v3734 = vld [vmem:[%s3730 + $0x18] sm:$0xff]
    %v3735 = vld [vmem:[%s3730 + $0x20] sm:$0xff]
    %v3736 = vld [vmem:[%s3730 + $0x28] sm:$0xff]
    %v3737 = vld [vmem:[%s3730 + $0x30] sm:$0xff]
    %v3738 = vld [vmem:[%s3730 + $0x38] sm:$0xff]
    %v3739 = vld [vmem:[%s3730 + $0x40] sm:$0xff]
    %v3740 = vld [vmem:[%s3730 + $0x48] sm:$0xff]
    %v3741 = vld [vmem:[%s3730 + $0x50] sm:$0xff]
    %v3742 = vld [vmem:[%s3730 + $0x58] sm:$0xff]
    %v3743 = vld [vmem:[%s3730 + $0x60] sm:$0xff]
    %v3744 = vld [vmem:[%s3730 + $0x68] sm:$0xff]
    %v3745 = vld [vmem:[%s3730 + $0x70] sm:$0xff]
    %v3746 = vld [vmem:[%s3730 + $0x78] sm:$0xff]
    %v3747 = vld [vmem:[%s3730 + $0x80] sm:$0xff]
    %v3748 = vld [vmem:[%s3730 + $0x88] sm:$0xff]
    %v3749 = vld [vmem:[%s3730 + $0x90] sm:$0xff]
    %v3750 = vld [vmem:[%s3730 + $0x98] sm:$0xff]
    %v3751 = vld [vmem:[%s3730 + $0xa0] sm:$0xff]
    %v3752 = vld [vmem:[%s3730 + $0xa8] sm:$0xff]
    %v3753 = vld [vmem:[%s3730 + $0xb0] sm:$0xff]
    %v3754 = vld [vmem:[%s3730 + $0xb8] sm:$0xff]
    %v3755 = vld [vmem:[%s3730 + $0xc0] sm:$0xff]
    %v3756 = vld [vmem:[%s3730 + $0xc8] sm:$0xff]
    %v3757 = vld [vmem:[%s3730 + $0xd0] sm:$0xff]
    %v3758 = vld [vmem:[%s3730 + $0xd8] sm:$0xff]
    %v3759 = vld [vmem:[%s3730 + $0xe0] sm:$0xff]
    %v3760 = vld [vmem:[%s3730 + $0xe8] sm:$0xff]
    %v3761 = vld [vmem:[%s3730 + $0xf0] sm:$0xff]
    %v3762 = vld [vmem:[%s3730 + $0xf8] sm:$0xff]
    %v3795 = vunpack.c.l.b16 %v3731
    %v3796 = vunpack.c.h.b16 %v3731
    %v3797 = vunpack.c.l.b16 %v3732
    %v3798 = vunpack.c.h.b16 %v3732
    %v3799 = vunpack.c.l.b16 %v3733
    %v3800 = vunpack.c.h.b16 %v3733
    %v3801 = vunpack.c.l.b16 %v3734
    %v3802 = vunpack.c.h.b16 %v3734
    %v3803 = vunpack.c.l.b16 %v3735
    %v3804 = vunpack.c.h.b16 %v3735
    %v3805 = vunpack.c.l.b16 %v3736
    %v3806 = vunpack.c.h.b16 %v3736
    %v3807 = vunpack.c.l.b16 %v3737
    %v3808 = vunpack.c.h.b16 %v3737
    %v3809 = vunpack.c.l.b16 %v3738
    %v3810 = vunpack.c.h.b16 %v3738
    %v3811 = vunpack.c.l.b16 %v3739
    %v3812 = vunpack.c.h.b16 %v3739
    %v3813 = vunpack.c.l.b16 %v3740
    %v3814 = vunpack.c.h.b16 %v3740
    %v3815 = vunpack.c.l.b16 %v3741
    %v3816 = vunpack.c.h.b16 %v3741
    %v3817 = vunpack.c.l.b16 %v3742
    %v3818 = vunpack.c.h.b16 %v3742
    %v3819 = vunpack.c.l.b16 %v3743
    %v3820 = vunpack.c.h.b16 %v3743
    %v3821 = vunpack.c.l.b16 %v3744
    %v3822 = vunpack.c.h.b16 %v3744
    %v3823 = vunpack.c.l.b16 %v3745
    %v3824 = vunpack.c.h.b16 %v3745
    %v3825 = vunpack.c.l.b16 %v3746
    %v3826 = vunpack.c.h.b16 %v3746
    %v3827 = vunpack.c.l.b16 %v3747
    %v3828 = vunpack.c.h.b16 %v3747
    %v3829 = vunpack.c.l.b16 %v3748
    %v3830 = vunpack.c.h.b16 %v3748
    %v3831 = vunpack.c.l.b16 %v3749
    %v3832 = vunpack.c.h.b16 %v3749
    %v3833 = vunpack.c.l.b16 %v3750
    %v3834 = vunpack.c.h.b16 %v3750
    %v3835 = vunpack.c.l.b16 %v3751
    %v3836 = vunpack.c.h.b16 %v3751
    %v3837 = vunpack.c.l.b16 %v3752
    %v3838 = vunpack.c.h.b16 %v3752
    %v3839 = vunpack.c.l.b16 %v3753
    %v3840 = vunpack.c.h.b16 %v3753
    %v3841 = vunpack.c.l.b16 %v3754
    %v3842 = vunpack.c.h.b16 %v3754
    %v3843 = vunpack.c.l.b16 %v3755
    %v3844 = vunpack.c.h.b16 %v3755
    %v3845 = vunpack.c.l.b16 %v3756
    %v3846 = vunpack.c.h.b16 %v3756
    %v3847 = vunpack.c.l.b16 %v3757
    %v3848 = vunpack.c.h.b16 %v3757
    %v3849 = vunpack.c.l.b16 %v3758
    %v3850 = vunpack.c.h.b16 %v3758
    %v3851 = vunpack.c.l.b16 %v3759
    %v3852 = vunpack.c.h.b16 %v3759
    %v3853 = vunpack.c.l.b16 %v3760
    %v3854 = vunpack.c.h.b16 %v3760
    %v3855 = vunpack.c.l.b16 %v3761
    %v3856 = vunpack.c.h.b16 %v3761
    %v3857 = vunpack.c.l.b16 %v3762
    %v3858 = vunpack.c.h.b16 %v3762
    %v3859 = vpack.c.b16 %v3797, %v3795
    %v3860 = vpack.c.b16 %v3798, %v3796
    %v3861 = vpack.c.b16 %v3801, %v3799
    %v3862 = vpack.c.b16 %v3802, %v3800
    %v3863 = vpack.c.b16 %v3805, %v3803
    %v3864 = vpack.c.b16 %v3806, %v3804
    %v3865 = vpack.c.b16 %v3809, %v3807
    %v3866 = vpack.c.b16 %v3810, %v3808
    %v3867 = vpack.c.b16 %v3813, %v3811
    %v3868 = vpack.c.b16 %v3814, %v3812
    %v3869 = vpack.c.b16 %v3817, %v3815
    %v3870 = vpack.c.b16 %v3818, %v3816
    %v3871 = vpack.c.b16 %v3821, %v3819
    %v3872 = vpack.c.b16 %v3822, %v3820
    %v3873 = vpack.c.b16 %v3825, %v3823
    %v3874 = vpack.c.b16 %v3826, %v3824
    %v3875 = vpack.c.b16 %v3829, %v3827
    %v3876 = vpack.c.b16 %v3830, %v3828
    %v3877 = vpack.c.b16 %v3833, %v3831
    %v3878 = vpack.c.b16 %v3834, %v3832
    %v3879 = vpack.c.b16 %v3837, %v3835
    %v3880 = vpack.c.b16 %v3838, %v3836
    %v3881 = vpack.c.b16 %v3841, %v3839
    %v3882 = vpack.c.b16 %v3842, %v3840
    %v3883 = vpack.c.b16 %v3845, %v3843
    %v3884 = vpack.c.b16 %v3846, %v3844
    %v3885 = vpack.c.b16 %v3849, %v3847
    %v3886 = vpack.c.b16 %v3850, %v3848
    %v3887 = vpack.c.b16 %v3853, %v3851
    %v3888 = vpack.c.b16 %v3854, %v3852
    %v3889 = vpack.c.b16 %v3857, %v3855
    %v3890 = vpack.c.b16 %v3858, %v3856
    %3923 = vmatprep.subr.bf16.mxu0 %v3860
    %3924 = vmatpush1.bf16.msra.mxu0 %v3859
    %3925 = vmatprep.subr.bf16.mxu0 %v3862
    %3926 = vmatpush1.bf16.msra.mxu0 %v3861
    %3927 = vmatprep.subr.bf16.mxu0 %v3864
    %3928 = vmatpush1.bf16.msra.mxu0 %v3863
    %3929 = vmatprep.subr.bf16.mxu0 %v3866
    %3930 = vmatpush1.bf16.msra.mxu0 %v3865
    %3931 = vmatprep.subr.bf16.mxu0 %v3868
    %3932 = vmatpush1.bf16.msra.mxu0 %v3867
    %3933 = vmatprep.subr.bf16.mxu0 %v3870
    %3934 = vmatpush1.bf16.msra.mxu0 %v3869
    %3935 = vmatprep.subr.bf16.mxu0 %v3872
    %3936 = vmatpush1.bf16.msra.mxu0 %v3871
    %3937 = vmatprep.subr.bf16.mxu0 %v3874
    %3938 = vmatpush1.bf16.msra.mxu0 %v3873
    %3939 = vmatprep.subr.bf16.mxu0 %v3876
    %3940 = vmatpush1.bf16.msra.mxu0 %v3875
    %3941 = vmatprep.subr.bf16.mxu0 %v3878
    %3942 = vmatpush1.bf16.msra.mxu0 %v3877
    %3943 = vmatprep.subr.bf16.mxu0 %v3880
    %3944 = vmatpush1.bf16.msra.mxu0 %v3879
    %3945 = vmatprep.subr.bf16.mxu0 %v3882
    %3946 = vmatpush1.bf16.msra.mxu0 %v3881
    %3947 = vmatprep.subr.bf16.mxu0 %v3884
    %3948 = vmatpush1.bf16.msra.mxu0 %v3883
    %3949 = vmatprep.subr.bf16.mxu0 %v3886
    %3950 = vmatpush1.bf16.msra.mxu0 %v3885
    %3951 = vmatprep.subr.bf16.mxu0 %v3888
    %3952 = vmatpush1.bf16.msra.mxu0 %v3887
    %3953 = vmatprep.subr.bf16.mxu0 %v3890
    %3954 = vmatpush1.bf16.msra.mxu0 %v3889
    %3955 = vmatprep.mubr.bf16.mxu0 %v3729
    %3956 = vmatmul.mubr.bf16.gmra.mrb[0].mxu0 %v3728
    %v3957 = vpop.f32.mrb[0].mxu0
    %v3958 = vadd.f32 0.0, %v3957
    %v3959 = vpop.f32.mrb[0].mxu0
    %v3960 = vadd.f32 0.0, %v3959
    %v3961 = vpop.f32.mrb[0].mxu0
    %v3962 = vpop.f32.mrb[0].mxu0
    %3963 = vdwg.mxu0
    %v3964 = vadd.f32 %v3720, %v3958
    %v3965 = vadd.f32 %v3721, %v3960
    %v3966 = vmul.f32 %v3722, %v3726
    %v3967 = vmul.f32 %v3723, %v3727
    %v3968 = vsub.f32 %v3966, %v3471
    %v3969 = vsub.f32 %v3967, %v3472
    %v3970 = vpack.c.bf16 %v3968, %v3968
    %v3971 = vpack.c.bf16 %v3969, %v3969
    %s3972 = scalar_lea.vmem [#allocation10], 512
    %v3973 = vld [vmem:[%s3972] sm:$0xff]
    %v3974 = vld [vmem:[%s3972 + $0x8] sm:$0xff]
    %v3975 = vld [vmem:[%s3972 + $0x10] sm:$0xff]
    %v3976 = vld [vmem:[%s3972 + $0x18] sm:$0xff]
    %v3977 = vld [vmem:[%s3972 + $0x20] sm:$0xff]
    %v3978 = vld [vmem:[%s3972 + $0x28] sm:$0xff]
    %v3979 = vld [vmem:[%s3972 + $0x30] sm:$0xff]
    %v3980 = vld [vmem:[%s3972 + $0x38] sm:$0xff]
    %v3981 = vld [vmem:[%s3972 + $0x40] sm:$0xff]
    %v3982 = vld [vmem:[%s3972 + $0x48] sm:$0xff]
    %v3983 = vld [vmem:[%s3972 + $0x50] sm:$0xff]
    %v3984 = vld [vmem:[%s3972 + $0x58] sm:$0xff]
    %v3985 = vld [vmem:[%s3972 + $0x60] sm:$0xff]
    %v3986 = vld [vmem:[%s3972 + $0x68] sm:$0xff]
    %v3987 = vld [vmem:[%s3972 + $0x70] sm:$0xff]
    %v3988 = vld [vmem:[%s3972 + $0x78] sm:$0xff]
    %v3989 = vld [vmem:[%s3972 + $0x80] sm:$0xff]
    %v3990 = vld [vmem:[%s3972 + $0x88] sm:$0xff]
    %v3991 = vld [vmem:[%s3972 + $0x90] sm:$0xff]
    %v3992 = vld [vmem:[%s3972 + $0x98] sm:$0xff]
    %v3993 = vld [vmem:[%s3972 + $0xa0] sm:$0xff]
    %v3994 = vld [vmem:[%s3972 + $0xa8] sm:$0xff]
    %v3995 = vld [vmem:[%s3972 + $0xb0] sm:$0xff]
    %v3996 = vld [vmem:[%s3972 + $0xb8] sm:$0xff]
    %v3997 = vld [vmem:[%s3972 + $0xc0] sm:$0xff]
    %v3998 = vld [vmem:[%s3972 + $0xc8] sm:$0xff]
    %v3999 = vld [vmem:[%s3972 + $0xd0] sm:$0xff]
    %v4000 = vld [vmem:[%s3972 + $0xd8] sm:$0xff]
    %v4001 = vld [vmem:[%s3972 + $0xe0] sm:$0xff]
    %v4002 = vld [vmem:[%s3972 + $0xe8] sm:$0xff]
    %v4003 = vld [vmem:[%s3972 + $0xf0] sm:$0xff]
    %v4004 = vld [vmem:[%s3972 + $0xf8] sm:$0xff]
    %v4037 = vunpack.c.l.b16 %v3973
    %v4038 = vunpack.c.h.b16 %v3973
    %v4039 = vunpack.c.l.b16 %v3974
    %v4040 = vunpack.c.h.b16 %v3974
    %v4041 = vunpack.c.l.b16 %v3975
    %v4042 = vunpack.c.h.b16 %v3975
    %v4043 = vunpack.c.l.b16 %v3976
    %v4044 = vunpack.c.h.b16 %v3976
    %v4045 = vunpack.c.l.b16 %v3977
    %v4046 = vunpack.c.h.b16 %v3977
    %v4047 = vunpack.c.l.b16 %v3978
    %v4048 = vunpack.c.h.b16 %v3978
    %v4049 = vunpack.c.l.b16 %v3979
    %v4050 = vunpack.c.h.b16 %v3979
    %v4051 = vunpack.c.l.b16 %v3980
    %v4052 = vunpack.c.h.b16 %v3980
    %v4053 = vunpack.c.l.b16 %v3981
    %v4054 = vunpack.c.h.b16 %v3981
    %v4055 = vunpack.c.l.b16 %v3982
    %v4056 = vunpack.c.h.b16 %v3982
    %v4057 = vunpack.c.l.b16 %v3983
    %v4058 = vunpack.c.h.b16 %v3983
    %v4059 = vunpack.c.l.b16 %v3984
    %v4060 = vunpack.c.h.b16 %v3984
    %v4061 = vunpack.c.l.b16 %v3985
    %v4062 = vunpack.c.h.b16 %v3985
    %v4063 = vunpack.c.l.b16 %v3986
    %v4064 = vunpack.c.h.b16 %v3986
    %v4065 = vunpack.c.l.b16 %v3987
    %v4066 = vunpack.c.h.b16 %v3987
    %v4067 = vunpack.c.l.b16 %v3988
    %v4068 = vunpack.c.h.b16 %v3988
    %v4069 = vunpack.c.l.b16 %v3989
    %v4070 = vunpack.c.h.b16 %v3989
    %v4071 = vunpack.c.l.b16 %v3990
    %v4072 = vunpack.c.h.b16 %v3990
    %v4073 = vunpack.c.l.b16 %v3991
    %v4074 = vunpack.c.h.b16 %v3991
    %v4075 = vunpack.c.l.b16 %v3992
    %v4076 = vunpack.c.h.b16 %v3992
    %v4077 = vunpack.c.l.b16 %v3993
    %v4078 = vunpack.c.h.b16 %v3993
    %v4079 = vunpack.c.l.b16 %v3994
    %v4080 = vunpack.c.h.b16 %v3994
    %v4081 = vunpack.c.l.b16 %v3995
    %v4082 = vunpack.c.h.b16 %v3995
    %v4083 = vunpack.c.l.b16 %v3996
    %v4084 = vunpack.c.h.b16 %v3996
    %v4085 = vunpack.c.l.b16 %v3997
    %v4086 = vunpack.c.h.b16 %v3997
    %v4087 = vunpack.c.l.b16 %v3998
    %v4088 = vunpack.c.h.b16 %v3998
    %v4089 = vunpack.c.l.b16 %v3999
    %v4090 = vunpack.c.h.b16 %v3999
    %v4091 = vunpack.c.l.b16 %v4000
    %v4092 = vunpack.c.h.b16 %v4000
    %v4093 = vunpack.c.l.b16 %v4001
    %v4094 = vunpack.c.h.b16 %v4001
    %v4095 = vunpack.c.l.b16 %v4002
    %v4096 = vunpack.c.h.b16 %v4002
    %v4097 = vunpack.c.l.b16 %v4003
    %v4098 = vunpack.c.h.b16 %v4003
    %v4099 = vunpack.c.l.b16 %v4004
    %v4100 = vunpack.c.h.b16 %v4004
    %v4101 = vpack.c.b16 %v4039, %v4037
    %v4102 = vpack.c.b16 %v4040, %v4038
    %v4103 = vpack.c.b16 %v4043, %v4041
    %v4104 = vpack.c.b16 %v4044, %v4042
    %v4105 = vpack.c.b16 %v4047, %v4045
    %v4106 = vpack.c.b16 %v4048, %v4046
    %v4107 = vpack.c.b16 %v4051, %v4049
    %v4108 = vpack.c.b16 %v4052, %v4050
    %v4109 = vpack.c.b16 %v4055, %v4053
    %v4110 = vpack.c.b16 %v4056, %v4054
    %v4111 = vpack.c.b16 %v4059, %v4057
    %v4112 = vpack.c.b16 %v4060, %v4058
    %v4113 = vpack.c.b16 %v4063, %v4061
    %v4114 = vpack.c.b16 %v4064, %v4062
    %v4115 = vpack.c.b16 %v4067, %v4065
    %v4116 = vpack.c.b16 %v4068, %v4066
    %v4117 = vpack.c.b16 %v4071, %v4069
    %v4118 = vpack.c.b16 %v4072, %v4070
    %v4119 = vpack.c.b16 %v4075, %v4073
    %v4120 = vpack.c.b16 %v4076, %v4074
    %v4121 = vpack.c.b16 %v4079, %v4077
    %v4122 = vpack.c.b16 %v4080, %v4078
    %v4123 = vpack.c.b16 %v4083, %v4081
    %v4124 = vpack.c.b16 %v4084, %v4082
    %v4125 = vpack.c.b16 %v4087, %v4085
    %v4126 = vpack.c.b16 %v4088, %v4086
    %v4127 = vpack.c.b16 %v4091, %v4089
    %v4128 = vpack.c.b16 %v4092, %v4090
    %v4129 = vpack.c.b16 %v4095, %v4093
    %v4130 = vpack.c.b16 %v4096, %v4094
    %v4131 = vpack.c.b16 %v4099, %v4097
    %v4132 = vpack.c.b16 %v4100, %v4098
    %4165 = vmatprep.subr.bf16.mxu0 %v4102
    %4166 = vmatpush1.bf16.msra.mxu0 %v4101
    %4167 = vmatprep.subr.bf16.mxu0 %v4104
    %4168 = vmatpush1.bf16.msra.mxu0 %v4103
    %4169 = vmatprep.subr.bf16.mxu0 %v4106
    %4170 = vmatpush1.bf16.msra.mxu0 %v4105
    %4171 = vmatprep.subr.bf16.mxu0 %v4108
    %4172 = vmatpush1.bf16.msra.mxu0 %v4107
    %4173 = vmatprep.subr.bf16.mxu0 %v4110
    %4174 = vmatpush1.bf16.msra.mxu0 %v4109
    %4175 = vmatprep.subr.bf16.mxu0 %v4112
    %4176 = vmatpush1.bf16.msra.mxu0 %v4111
    %4177 = vmatprep.subr.bf16.mxu0 %v4114
    %4178 = vmatpush1.bf16.msra.mxu0 %v4113
    %4179 = vmatprep.subr.bf16.mxu0 %v4116
    %4180 = vmatpush1.bf16.msra.mxu0 %v4115
    %4181 = vmatprep.subr.bf16.mxu0 %v4118
    %4182 = vmatpush1.bf16.msra.mxu0 %v4117
    %4183 = vmatprep.subr.bf16.mxu0 %v4120
    %4184 = vmatpush1.bf16.msra.mxu0 %v4119
    %4185 = vmatprep.subr.bf16.mxu0 %v4122
    %4186 = vmatpush1.bf16.msra.mxu0 %v4121
    %4187 = vmatprep.subr.bf16.mxu0 %v4124
    %4188 = vmatpush1.bf16.msra.mxu0 %v4123
    %4189 = vmatprep.subr.bf16.mxu0 %v4126
    %4190 = vmatpush1.bf16.msra.mxu0 %v4125
    %4191 = vmatprep.subr.bf16.mxu0 %v4128
    %4192 = vmatpush1.bf16.msra.mxu0 %v4127
    %4193 = vmatprep.subr.bf16.mxu0 %v4130
    %4194 = vmatpush1.bf16.msra.mxu0 %v4129
    %4195 = vmatprep.subr.bf16.mxu0 %v4132
    %4196 = vmatpush1.bf16.msra.mxu0 %v4131
    %4197 = vmatprep.mubr.bf16.mxu0 %v3971
    %4198 = vmatmul.mubr.bf16.gmra.mrb[0].mxu0 %v3970
    %v4199 = vpop.f32.mrb[0].mxu0
    %v4200 = vadd.f32 0.0, %v4199
    %v4201 = vpop.f32.mrb[0].mxu0
    %v4202 = vadd.f32 0.0, %v4201
    %v4203 = vpop.f32.mrb[0].mxu0
    %v4204 = vpop.f32.mrb[0].mxu0
    %4205 = vdwg.mxu0
    %v4206 = vadd.f32 %v3964, %v4200
    %v4207 = vadd.f32 %v3965, %v4202
    %v4208 = vmul.f32 %v3722, %v3968
    %v4209 = vmul.f32 %v3723, %v3969
    %v4210 = vsub.f32 %v4208, %v3726
    %v4211 = vsub.f32 %v4209, %v3727
    %v4212 = vpack.c.bf16 %v4210, %v4210
    %v4213 = vpack.c.bf16 %v4211, %v4211
    %s4214 = scalar_lea.vmem [#allocation10], 768
    %v4215 = vld [vmem:[%s4214] sm:$0xff]
    %v4216 = vld [vmem:[%s4214 + $0x8] sm:$0xff]
    %v4217 = vld [vmem:[%s4214 + $0x10] sm:$0xff]
    %v4218 = vld [vmem:[%s4214 + $0x18] sm:$0xff]
    %v4219 = vld [vmem:[%s4214 + $0x20] sm:$0xff]
    %v4220 = vld [vmem:[%s4214 + $0x28] sm:$0xff]
    %v4221 = vld [vmem:[%s4214 + $0x30] sm:$0xff]
    %v4222 = vld [vmem:[%s4214 + $0x38] sm:$0xff]
    %v4223 = vld [vmem:[%s4214 + $0x40] sm:$0xff]
    %v4224 = vld [vmem:[%s4214 + $0x48] sm:$0xff]
    %v4225 = vld [vmem:[%s4214 + $0x50] sm:$0xff]
    %v4226 = vld [vmem:[%s4214 + $0x58] sm:$0xff]
    %v4227 = vld [vmem:[%s4214 + $0x60] sm:$0xff]
    %v4228 = vld [vmem:[%s4214 + $0x68] sm:$0xff]
    %v4229 = vld [vmem:[%s4214 + $0x70] sm:$0xff]
    %v4230 = vld [vmem:[%s4214 + $0x78] sm:$0xff]
    %v4231 = vld [vmem:[%s4214 + $0x80] sm:$0xff]
    %v4232 = vld [vmem:[%s4214 + $0x88] sm:$0xff]
    %v4233 = vld [vmem:[%s4214 + $0x90] sm:$0xff]
    %v4234 = vld [vmem:[%s4214 + $0x98] sm:$0xff]
    %v4235 = vld [vmem:[%s4214 + $0xa0] sm:$0xff]
    %v4236 = vld [vmem:[%s4214 + $0xa8] sm:$0xff]
    %v4237 = vld [vmem:[%s4214 + $0xb0] sm:$0xff]
    %v4238 = vld [vmem:[%s4214 + $0xb8] sm:$0xff]
    %v4239 = vld [vmem:[%s4214 + $0xc0] sm:$0xff]
    %v4240 = vld [vmem:[%s4214 + $0xc8] sm:$0xff]
    %v4241 = vld [vmem:[%s4214 + $0xd0] sm:$0xff]
    %v4242 = vld [vmem:[%s4214 + $0xd8] sm:$0xff]
    %v4243 = vld [vmem:[%s4214 + $0xe0] sm:$0xff]
    %v4244 = vld [vmem:[%s4214 + $0xe8] sm:$0xff]
    %v4245 = vld [vmem:[%s4214 + $0xf0] sm:$0xff]
    %v4246 = vld [vmem:[%s4214 + $0xf8] sm:$0xff]
    %v4279 = vunpack.c.l.b16 %v4215
    %v4280 = vunpack.c.h.b16 %v4215
    %v4281 = vunpack.c.l.b16 %v4216
    %v4282 = vunpack.c.h.b16 %v4216
    %v4283 = vunpack.c.l.b16 %v4217
    %v4284 = vunpack.c.h.b16 %v4217
    %v4285 = vunpack.c.l.b16 %v4218
    %v4286 = vunpack.c.h.b16 %v4218
    %v4287 = vunpack.c.l.b16 %v4219
    %v4288 = vunpack.c.h.b16 %v4219
    %v4289 = vunpack.c.l.b16 %v4220
    %v4290 = vunpack.c.h.b16 %v4220
    %v4291 = vunpack.c.l.b16 %v4221
    %v4292 = vunpack.c.h.b16 %v4221
    %v4293 = vunpack.c.l.b16 %v4222
    %v4294 = vunpack.c.h.b16 %v4222
    %v4295 = vunpack.c.l.b16 %v4223
    %v4296 = vunpack.c.h.b16 %v4223
    %v4297 = vunpack.c.l.b16 %v4224
    %v4298 = vunpack.c.h.b16 %v4224
    %v4299 = vunpack.c.l.b16 %v4225
    %v4300 = vunpack.c.h.b16 %v4225
    %v4301 = vunpack.c.l.b16 %v4226
    %v4302 = vunpack.c.h.b16 %v4226
    %v4303 = vunpack.c.l.b16 %v4227
    %v4304 = vunpack.c.h.b16 %v4227
    %v4305 = vunpack.c.l.b16 %v4228
    %v4306 = vunpack.c.h.b16 %v4228
    %v4307 = vunpack.c.l.b16 %v4229
    %v4308 = vunpack.c.h.b16 %v4229
    %v4309 = vunpack.c.l.b16 %v4230
    %v4310 = vunpack.c.h.b16 %v4230
    %v4311 = vunpack.c.l.b16 %v4231
    %v4312 = vunpack.c.h.b16 %v4231
    %v4313 = vunpack.c.l.b16 %v4232
    %v4314 = vunpack.c.h.b16 %v4232
    %v4315 = vunpack.c.l.b16 %v4233
    %v4316 = vunpack.c.h.b16 %v4233
    %v4317 = vunpack.c.l.b16 %v4234
    %v4318 = vunpack.c.h.b16 %v4234
    %v4319 = vunpack.c.l.b16 %v4235
    %v4320 = vunpack.c.h.b16 %v4235
    %v4321 = vunpack.c.l.b16 %v4236
    %v4322 = vunpack.c.h.b16 %v4236
    %v4323 = vunpack.c.l.b16 %v4237
    %v4324 = vunpack.c.h.b16 %v4237
    %v4325 = vunpack.c.l.b16 %v4238
    %v4326 = vunpack.c.h.b16 %v4238
    %v4327 = vunpack.c.l.b16 %v4239
    %v4328 = vunpack.c.h.b16 %v4239
    %v4329 = vunpack.c.l.b16 %v4240
    %v4330 = vunpack.c.h.b16 %v4240
    %v4331 = vunpack.c.l.b16 %v4241
    %v4332 = vunpack.c.h.b16 %v4241
    %v4333 = vunpack.c.l.b16 %v4242
    %v4334 = vunpack.c.h.b16 %v4242
    %v4335 = vunpack.c.l.b16 %v4243
    %v4336 = vunpack.c.h.b16 %v4243
    %v4337 = vunpack.c.l.b16 %v4244
    %v4338 = vunpack.c.h.b16 %v4244
    %v4339 = vunpack.c.l.b16 %v4245
    %v4340 = vunpack.c.h.b16 %v4245
    %v4341 = vunpack.c.l.b16 %v4246
    %v4342 = vunpack.c.h.b16 %v4246
    %v4343 = vpack.c.b16 %v4281, %v4279
    %v4344 = vpack.c.b16 %v4282, %v4280
    %v4345 = vpack.c.b16 %v4285, %v4283
    %v4346 = vpack.c.b16 %v4286, %v4284
    %v4347 = vpack.c.b16 %v4289, %v4287
    %v4348 = vpack.c.b16 %v4290, %v4288
    %v4349 = vpack.c.b16 %v4293, %v4291
    %v4350 = vpack.c.b16 %v4294, %v4292
    %v4351 = vpack.c.b16 %v4297, %v4295
    %v4352 = vpack.c.b16 %v4298, %v4296
    %v4353 = vpack.c.b16 %v4301, %v4299
    %v4354 = vpack.c.b16 %v4302, %v4300
    %v4355 = vpack.c.b16 %v4305, %v4303
    %v4356 = vpack.c.b16 %v4306, %v4304
    %v4357 = vpack.c.b16 %v4309, %v4307
    %v4358 = vpack.c.b16 %v4310, %v4308
    %v4359 = vpack.c.b16 %v4313, %v4311
    %v4360 = vpack.c.b16 %v4314, %v4312
    %v4361 = vpack.c.b16 %v4317, %v4315
    %v4362 = vpack.c.b16 %v4318, %v4316
    %v4363 = vpack.c.b16 %v4321, %v4319
    %v4364 = vpack.c.b16 %v4322, %v4320
    %v4365 = vpack.c.b16 %v4325, %v4323
    %v4366 = vpack.c.b16 %v4326, %v4324
    %v4367 = vpack.c.b16 %v4329, %v4327
    %v4368 = vpack.c.b16 %v4330, %v4328
    %v4369 = vpack.c.b16 %v4333, %v4331
    %v4370 = vpack.c.b16 %v4334, %v4332
    %v4371 = vpack.c.b16 %v4337, %v4335
    %v4372 = vpack.c.b16 %v4338, %v4336
    %v4373 = vpack.c.b16 %v4341, %v4339
    %v4374 = vpack.c.b16 %v4342, %v4340
    %4407 = vmatprep.subr.bf16.mxu0 %v4344
    %4408 = vmatpush1.bf16.msra.mxu0 %v4343
    %4409 = vmatprep.subr.bf16.mxu0 %v4346
    %4410 = vmatpush1.bf16.msra.mxu0 %v4345
    %4411 = vmatprep.subr.bf16.mxu0 %v4348
    %4412 = vmatpush1.bf16.msra.mxu0 %v4347
    %4413 = vmatprep.subr.bf16.mxu0 %v4350
    %4414 = vmatpush1.bf16.msra.mxu0 %v4349
    %4415 = vmatprep.subr.bf16.mxu0 %v4352
    %4416 = vmatpush1.bf16.msra.mxu0 %v4351
    %4417 = vmatprep.subr.bf16.mxu0 %v4354
    %4418 = vmatpush1.bf16.msra.mxu0 %v4353
    %4419 = vmatprep.subr.bf16.mxu0 %v4356
    %4420 = vmatpush1.bf16.msra.mxu0 %v4355
    %4421 = vmatprep.subr.bf16.mxu0 %v4358
    %4422 = vmatpush1.bf16.msra.mxu0 %v4357
    %4423 = vmatprep.subr.bf16.mxu0 %v4360
    %4424 = vmatpush1.bf16.msra.mxu0 %v4359
    %4425 = vmatprep.subr.bf16.mxu0 %v4362
    %4426 = vmatpush1.bf16.msra.mxu0 %v4361
    %4427 = vmatprep.subr.bf16.mxu0 %v4364
    %4428 = vmatpush1.bf16.msra.mxu0 %v4363
    %4429 = vmatprep.subr.bf16.mxu0 %v4366
    %4430 = vmatpush1.bf16.msra.mxu0 %v4365
    %4431 = vmatprep.subr.bf16.mxu0 %v4368
    %4432 = vmatpush1.bf16.msra.mxu0 %v4367
    %4433 = vmatprep.subr.bf16.mxu0 %v4370
    %4434 = vmatpush1.bf16.msra.mxu0 %v4369
    %4435 = vmatprep.subr.bf16.mxu0 %v4372
    %4436 = vmatpush1.bf16.msra.mxu0 %v4371
    %4437 = vmatprep.subr.bf16.mxu0 %v4374
    %4438 = vmatpush1.bf16.msra.mxu0 %v4373
    %4439 = vmatprep.mubr.bf16.mxu0 %v4213
    %4440 = vmatmul.mubr.bf16.gmra.mrb[0].mxu0 %v4212
    %v4441 = vpop.f32.mrb[0].mxu0
    %v4442 = vadd.f32 0.0, %v4441
    %v4443 = vpop.f32.mrb[0].mxu0
    %v4444 = vadd.f32 0.0, %v4443
    %v4445 = vpop.f32.mrb[0].mxu0
    %v4446 = vpop.f32.mrb[0].mxu0
    %4447 = vdwg.mxu0
    %v4448 = vadd.f32 %v4206, %v4442
    %v4449 = vadd.f32 %v4207, %v4444
    %v4450 = vsel %vm3420, %v4448, 0.0
    %v4451 = vsel %vm3420, %v4449, 0.0
    %v4452 = vadd.f32 %v4450, %v4451
    %4453 = vadd.xlane.f32.xlu0 %v4452
    %v4454 = vpop.xlane.xlu0 %4453
    %v4455 = vmul.f32 %v4454, 0.00390625
    %v4456 = vmul.f32 %v4448, %v4448
    %v4457 = vmul.f32 %v4449, %v4449
    %v4458 = vsel %vm3420, %v4456, 0.0
    %v4459 = vsel %vm3420, %v4457, 0.0
    %v4460 = vadd.f32 %v4458, %v4459
    %4461 = vadd.xlane.f32.xlu0 %v4460
    %v4462 = vpop.xlane.xlu0 %4461
    %v4463 = vmul.f32 %v4462, 0.00390625
    %v4464 = vmul.f32 %v4455, %v4455
    %v4465 = vsub.f32 %v4463, %v4464
    %v4466 = vsub.f32 %v4448, %v4455
    %v4467 = vsub.f32 %v4449, %v4455
    %v4468 = vadd.f32 %v4465, 1e-05
    %v4469 = vrsqrt.pop %v4468
    %v4470 = vmul.f32 %v4466, %v4469
    %v4471 = vmul.f32 %v4467, %v4469
    %v4472 = vld [vmem:[#allocation13] sm:$0x3]
    %v4474 = vlaneseq
    %v4475 = vshrl.u32 %v4474, 7
    %v4476 = vsub.s32 0, %v4475
    %v4477 = vrot.slane %v4472, %v4476
    %v4478 = vlaneseq
    %v4479 = vshrl.u32 %v4478, 7
    %v4480 = vsub.s32 1, %v4479
    %v4481 = vrot.slane %v4472, %v4480
    %v4484 = vmul.f32 %v4470, %v4477
    %v4485 = vmul.f32 %v4471, %v4481
    %v4486 = vld [vmem:[#allocation14] sm:$0x3]
    %v4488 = vlaneseq
    %v4489 = vshrl.u32 %v4488, 7
    %v4490 = vsub.s32 0, %v4489
    %v4491 = vrot.slane %v4486, %v4490
    %v4492 = vlaneseq
    %v4493 = vshrl.u32 %v4492, 7
    %v4494 = vsub.s32 1, %v4493
    %v4495 = vrot.slane %v4486, %v4494
    %v4498 = vadd.f32 %v4484, %v4491
    %v4499 = vadd.f32 %v4485, %v4495
    %v4500 = vtanh.pop %v4498
    %v4501 = vtanh.pop %v4499
    %v4502 = vld [vmem:[#allocation17] sm:$0x1]
    %v4503 = vpack.c.bf16 %v4500, %v4500
    %v4504 = vpack.c.bf16 %v4501, %v4501
    %v4505 = vld [vmem:[#allocation16] sm:$0xf]
    %v4506 = vld [vmem:[#allocation16 + $0x4] sm:$0xf]
    %v4507 = vld [vmem:[#allocation16 + $0x8] sm:$0xf]
    %v4508 = vld [vmem:[#allocation16 + $0xc] sm:$0xf]
    %v4509 = vld [vmem:[#allocation16 + $0x10] sm:$0xf]
    %v4510 = vld [vmem:[#allocation16 + $0x14] sm:$0xf]
    %v4511 = vld [vmem:[#allocation16 + $0x18] sm:$0xf]
    %v4512 = vld [vmem:[#allocation16 + $0x1c] sm:$0xf]
    %v4513 = vld [vmem:[#allocation16 + $0x20] sm:$0xf]
    %v4514 = vld [vmem:[#allocation16 + $0x24] sm:$0xf]
    %v4515 = vld [vmem:[#allocation16 + $0x28] sm:$0xf]
    %v4516 = vld [vmem:[#allocation16 + $0x2c] sm:$0xf]
    %v4517 = vld [vmem:[#allocation16 + $0x30] sm:$0xf]
    %v4518 = vld [vmem:[#allocation16 + $0x34] sm:$0xf]
    %v4519 = vld [vmem:[#allocation16 + $0x38] sm:$0xf]
    %v4520 = vld [vmem:[#allocation16 + $0x3c] sm:$0xf]
    %v4521 = vld [vmem:[#allocation16 + $0x40] sm:$0xf]
    %v4522 = vld [vmem:[#allocation16 + $0x44] sm:$0xf]
    %v4523 = vld [vmem:[#allocation16 + $0x48] sm:$0xf]
    %v4524 = vld [vmem:[#allocation16 + $0x4c] sm:$0xf]
    %v4525 = vld [vmem:[#allocation16 + $0x50] sm:$0xf]
    %v4526 = vld [vmem:[#allocation16 + $0x54] sm:$0xf]
    %v4527 = vld [vmem:[#allocation16 + $0x58] sm:$0xf]
    %v4528 = vld [vmem:[#allocation16 + $0x5c] sm:$0xf]
    %v4529 = vld [vmem:[#allocation16 + $0x60] sm:$0xf]
    %v4530 = vld [vmem:[#allocation16 + $0x64] sm:$0xf]
    %v4531 = vld [vmem:[#allocation16 + $0x68] sm:$0xf]
    %v4532 = vld [vmem:[#allocation16 + $0x6c] sm:$0xf]
    %v4533 = vld [vmem:[#allocation16 + $0x70] sm:$0xf]
    %v4534 = vld [vmem:[#allocation16 + $0x74] sm:$0xf]
    %v4535 = vld [vmem:[#allocation16 + $0x78] sm:$0xf]
    %v4536 = vld [vmem:[#allocation16 + $0x7c] sm:$0xf]
    %v4569 = vunpack.c.l.b16 %v4505
    %v4570 = vunpack.c.l.b16 %v4506
    %v4571 = vunpack.c.l.b16 %v4507
    %v4572 = vunpack.c.l.b16 %v4508
    %v4573 = vunpack.c.l.b16 %v4509
    %v4574 = vunpack.c.l.b16 %v4510
    %v4575 = vunpack.c.l.b16 %v4511
    %v4576 = vunpack.c.l.b16 %v4512
    %v4577 = vunpack.c.l.b16 %v4513
    %v4578 = vunpack.c.l.b16 %v4514
    %v4579 = vunpack.c.l.b16 %v4515
    %v4580 = vunpack.c.l.b16 %v4516
    %v4581 = vunpack.c.l.b16 %v4517
    %v4582 = vunpack.c.l.b16 %v4518
    %v4583 = vunpack.c.l.b16 %v4519
    %v4584 = vunpack.c.l.b16 %v4520
    %v4585 = vunpack.c.l.b16 %v4521
    %v4586 = vunpack.c.l.b16 %v4522
    %v4587 = vunpack.c.l.b16 %v4523
    %v4588 = vunpack.c.l.b16 %v4524
    %v4589 = vunpack.c.l.b16 %v4525
    %v4590 = vunpack.c.l.b16 %v4526
    %v4591 = vunpack.c.l.b16 %v4527
    %v4592 = vunpack.c.l.b16 %v4528
    %v4593 = vunpack.c.l.b16 %v4529
    %v4594 = vunpack.c.l.b16 %v4530
    %v4595 = vunpack.c.l.b16 %v4531
    %v4596 = vunpack.c.l.b16 %v4532
    %v4597 = vunpack.c.l.b16 %v4533
    %v4598 = vunpack.c.l.b16 %v4534
    %v4599 = vunpack.c.l.b16 %v4535
    %v4600 = vunpack.c.l.b16 %v4536
    %v4601 = vpack.c.b16 %v4570, %v4569
    %v4602 = vpack.c.b16 %v4572, %v4571
    %v4603 = vpack.c.b16 %v4574, %v4573
    %v4604 = vpack.c.b16 %v4576, %v4575
    %v4605 = vpack.c.b16 %v4578, %v4577
    %v4606 = vpack.c.b16 %v4580, %v4579
    %v4607 = vpack.c.b16 %v4582, %v4581
    %v4608 = vpack.c.b16 %v4584, %v4583
    %v4609 = vpack.c.b16 %v4586, %v4585
    %v4610 = vpack.c.b16 %v4588, %v4587
    %v4611 = vpack.c.b16 %v4590, %v4589
    %v4612 = vpack.c.b16 %v4592, %v4591
    %v4613 = vpack.c.b16 %v4594, %v4593
    %v4614 = vpack.c.b16 %v4596, %v4595
    %v4615 = vpack.c.b16 %v4598, %v4597
    %v4616 = vpack.c.b16 %v4600, %v4599
    %4633 = vmatprep.subr.bf16.mxu0 0
    %4634 = vmatpush1.bf16.msra.mxu0 %v4601
    %4635 = vmatprep.subr.bf16.mxu0 0
    %4636 = vmatpush1.bf16.msra.mxu0 %v4602
    %4637 = vmatprep.subr.bf16.mxu0 0
    %4638 = vmatpush1.bf16.msra.mxu0 %v4603
    %4639 = vmatprep.subr.bf16.mxu0 0
    %4640 = vmatpush1.bf16.msra.mxu0 %v4604
    %4641 = vmatprep.subr.bf16.mxu0 0
    %4642 = vmatpush1.bf16.msra.mxu0 %v4605
    %4643 = vmatprep.subr.bf16.mxu0 0
    %4644 = vmatpush1.bf16.msra.mxu0 %v4606
    %4645 = vmatprep.subr.bf16.mxu0 0
    %4646 = vmatpush1.bf16.msra.mxu0 %v4607
    %4647 = vmatprep.subr.bf16.mxu0 0
    %4648 = vmatpush1.bf16.msra.mxu0 %v4608
    %4649 = vmatprep.subr.bf16.mxu0 0
    %4650 = vmatpush1.bf16.msra.mxu0 %v4609
    %4651 = vmatprep.subr.bf16.mxu0 0
    %4652 = vmatpush1.bf16.msra.mxu0 %v4610
    %4653 = vmatprep.subr.bf16.mxu0 0
    %4654 = vmatpush1.bf16.msra.mxu0 %v4611
    %4655 = vmatprep.subr.bf16.mxu0 0
    %4656 = vmatpush1.bf16.msra.mxu0 %v4612
    %4657 = vmatprep.subr.bf16.mxu0 0
    %4658 = vmatpush1.bf16.msra.mxu0 %v4613
    %4659 = vmatprep.subr.bf16.mxu0 0
    %4660 = vmatpush1.bf16.msra.mxu0 %v4614
    %4661 = vmatprep.subr.bf16.mxu0 0
    %4662 = vmatpush1.bf16.msra.mxu0 %v4615
    %4663 = vmatprep.subr.bf16.mxu0 0
    %4664 = vmatpush1.bf16.msra.mxu0 %v4616
    %4665 = vmatprep.mubr.bf16.mxu0 %v4504
    %4666 = vmatmul.mubr.bf16.gmra.mrb[0].mxu0 %v4503
    %v4667 = vpop.f32.mrb[0].mxu0
    %v4668 = vadd.f32 0.0, %v4667
    %v4669 = vpop.f32.mrb[0].mxu0
    %v4670 = vpop.f32.mrb[0].mxu0
    %v4671 = vpop.f32.mrb[0].mxu0
    %4672 = vdwg.mxu0
    %v4674 = vlaneseq
    %v4675 = vshrl.u32 %v4674, 7
    %v4676 = vsub.s32 0, %v4675
    %v4677 = vrot.slane %v4502, %v4676
    %v4679 = vadd.f32 %v4677, %v4668
    %v4680 = vmul.f32 %v4500, 2.0
    %v4681 = vmul.f32 %v4501, 2.0
    %v4682 = vmul.f32 %v4680, %v4500
    %v4683 = vmul.f32 %v4681, %v4501
    %v4684 = vsub.f32 %v4682, 1.0
    %v4685 = vsub.f32 %v4683, 1.0
    %v4686 = vpack.c.bf16 %v4684, %v4684
    %v4687 = vpack.c.bf16 %v4685, %v4685
    %s4688 = scalar_lea.vmem [#allocation16], 128
    %v4689 = vld [vmem:[%s4688] sm:$0xf]
    %v4690 = vld [vmem:[%s4688 + $0x4] sm:$0xf]
    %v4691 = vld [vmem:[%s4688 + $0x8] sm:$0xf]
    %v4692 = vld [vmem:[%s4688 + $0xc] sm:$0xf]
    %v4693 = vld [vmem:[%s4688 + $0x10] sm:$0xf]
    %v4694 = vld [vmem:[%s4688 + $0x14] sm:$0xf]
    %v4695 = vld [vmem:[%s4688 + $0x18] sm:$0xf]
    %v4696 = vld [vmem:[%s4688 + $0x1c] sm:$0xf]
    %v4697 = vld [vmem:[%s4688 + $0x20] sm:$0xf]
    %v4698 = vld [vmem:[%s4688 + $0x24] sm:$0xf]
    %v4699 = vld [vmem:[%s4688 + $0x28] sm:$0xf]
    %v4700 = vld [vmem:[%s4688 + $0x2c] sm:$0xf]
    %v4701 = vld [vmem:[%s4688 + $0x30] sm:$0xf]
    %v4702 = vld [vmem:[%s4688 + $0x34] sm:$0xf]
    %v4703 = vld [vmem:[%s4688 + $0x38] sm:$0xf]
    %v4704 = vld [vmem:[%s4688 + $0x3c] sm:$0xf]
    %v4705 = vld [vmem:[%s4688 + $0x40] sm:$0xf]
    %v4706 = vld [vmem:[%s4688 + $0x44] sm:$0xf]
    %v4707 = vld [vmem:[%s4688 + $0x48] sm:$0xf]
    %v4708 = vld [vmem:[%s4688 + $0x4c] sm:$0xf]
    %v4709 = vld [vmem:[%s4688 + $0x50] sm:$0xf]
    %v4710 = vld [vmem:[%s4688 + $0x54] sm:$0xf]
    %v4711 = vld [vmem:[%s4688 + $0x58] sm:$0xf]
    %v4712 = vld [vmem:[%s4688 + $0x5c] sm:$0xf]
    %v4713 = vld [vmem:[%s4688 + $0x60] sm:$0xf]
    %v4714 = vld [vmem:[%s4688 + $0x64] sm:$0xf]
    %v4715 = vld [vmem:[%s4688 + $0x68] sm:$0xf]
    %v4716 = vld [vmem:[%s4688 + $0x6c] sm:$0xf]
    %v4717 = vld [vmem:[%s4688 + $0x70] sm:$0xf]
    %v4718 = vld [vmem:[%s4688 + $0x74] sm:$0xf]
    %v4719 = vld [vmem:[%s4688 + $0x78] sm:$0xf]
    %v4720 = vld [vmem:[%s4688 + $0x7c] sm:$0xf]
    %v4753 = vunpack.c.l.b16 %v4689
    %v4754 = vunpack.c.l.b16 %v4690
    %v4755 = vunpack.c.l.b16 %v4691
    %v4756 = vunpack.c.l.b16 %v4692
    %v4757 = vunpack.c.l.b16 %v4693
    %v4758 = vunpack.c.l.b16 %v4694
    %v4759 = vunpack.c.l.b16 %v4695
    %v4760 = vunpack.c.l.b16 %v4696
    %v4761 = vunpack.c.l.b16 %v4697
    %v4762 = vunpack.c.l.b16 %v4698
    %v4763 = vunpack.c.l.b16 %v4699
    %v4764 = vunpack.c.l.b16 %v4700
    %v4765 = vunpack.c.l.b16 %v4701
    %v4766 = vunpack.c.l.b16 %v4702
    %v4767 = vunpack.c.l.b16 %v4703
    %v4768 = vunpack.c.l.b16 %v4704
    %v4769 = vunpack.c.l.b16 %v4705
    %v4770 = vunpack.c.l.b16 %v4706
    %v4771 = vunpack.c.l.b16 %v4707
    %v4772 = vunpack.c.l.b16 %v4708
    %v4773 = vunpack.c.l.b16 %v4709
    %v4774 = vunpack.c.l.b16 %v4710
    %v4775 = vunpack.c.l.b16 %v4711
    %v4776 = vunpack.c.l.b16 %v4712
    %v4777 = vunpack.c.l.b16 %v4713
    %v4778 = vunpack.c.l.b16 %v4714
    %v4779 = vunpack.c.l.b16 %v4715
    %v4780 = vunpack.c.l.b16 %v4716
    %v4781 = vunpack.c.l.b16 %v4717
    %v4782 = vunpack.c.l.b16 %v4718
    %v4783 = vunpack.c.l.b16 %v4719
    %v4784 = vunpack.c.l.b16 %v4720
    %v4785 = vpack.c.b16 %v4754, %v4753
    %v4786 = vpack.c.b16 %v4756, %v4755
    %v4787 = vpack.c.b16 %v4758, %v4757
    %v4788 = vpack.c.b16 %v4760, %v4759
    %v4789 = vpack.c.b16 %v4762, %v4761
    %v4790 = vpack.c.b16 %v4764, %v4763
    %v4791 = vpack.c.b16 %v4766, %v4765
    %v4792 = vpack.c.b16 %v4768, %v4767
    %v4793 = vpack.c.b16 %v4770, %v4769
    %v4794 = vpack.c.b16 %v4772, %v4771
    %v4795 = vpack.c.b16 %v4774, %v4773
    %v4796 = vpack.c.b16 %v4776, %v4775
    %v4797 = vpack.c.b16 %v4778, %v4777
    %v4798 = vpack.c.b16 %v4780, %v4779
    %v4799 = vpack.c.b16 %v4782, %v4781
    %v4800 = vpack.c.b16 %v4784, %v4783
    %4817 = vmatprep.subr.bf16.mxu0 0
    %4818 = vmatpush1.bf16.msra.mxu0 %v4785
    %4819 = vmatprep.subr.bf16.mxu0 0
    %4820 = vmatpush1.bf16.msra.mxu0 %v4786
    %4821 = vmatprep.subr.bf16.mxu0 0
    %4822 = vmatpush1.bf16.msra.mxu0 %v4787
    %4823 = vmatprep.subr.bf16.mxu0 0
    %4824 = vmatpush1.bf16.msra.mxu0 %v4788
    %4825 = vmatprep.subr.bf16.mxu0 0
    %4826 = vmatpush1.bf16.msra.mxu0 %v4789
    %4827 = vmatprep.subr.bf16.mxu0 0
    %4828 = vmatpush1.bf16.msra.mxu0 %v4790
    %4829 = vmatprep.subr.bf16.mxu0 0
    %4830 = vmatpush1.bf16.msra.mxu0 %v4791
    %4831 = vmatprep.subr.bf16.mxu0 0
    %4832 = vmatpush1.bf16.msra.mxu0 %v4792
    %4833 = vmatprep.subr.bf16.mxu0 0
    %4834 = vmatpush1.bf16.msra.mxu0 %v4793
    %4835 = vmatprep.subr.bf16.mxu0 0
    %4836 = vmatpush1.bf16.msra.mxu0 %v4794
    %4837 = vmatprep.subr.bf16.mxu0 0
    %4838 = vmatpush1.bf16.msra.mxu0 %v4795
    %4839 = vmatprep.subr.bf16.mxu0 0
    %4840 = vmatpush1.bf16.msra.mxu0 %v4796
    %4841 = vmatprep.subr.bf16.mxu0 0
    %4842 = vmatpush1.bf16.msra.mxu0 %v4797
    %4843 = vmatprep.subr.bf16.mxu0 0
    %4844 = vmatpush1.bf16.msra.mxu0 %v4798
    %4845 = vmatprep.subr.bf16.mxu0 0
    %4846 = vmatpush1.bf16.msra.mxu0 %v4799
    %4847 = vmatprep.subr.bf16.mxu0 0
    %4848 = vmatpush1.bf16.msra.mxu0 %v4800
    %4849 = vmatprep.mubr.bf16.mxu0 %v4687
    %4850 = vmatmul.mubr.bf16.gmra.mrb[0].mxu0 %v4686
    %v4851 = vpop.f32.mrb[0].mxu0
    %v4852 = vadd.f32 0.0, %v4851
    %v4853 = vpop.f32.mrb[0].mxu0
    %v4854 = vpop.f32.mrb[0].mxu0
    %v4855 = vpop.f32.mrb[0].mxu0
    %4856 = vdwg.mxu0
    %v4857 = vadd.f32 %v4679, %v4852
    %v4858 = vmul.f32 %v4680, %v4684
    %v4859 = vmul.f32 %v4681, %v4685
    %v4860 = vsub.f32 %v4858, %v4500
    %v4861 = vsub.f32 %v4859, %v4501
    %v4862 = vpack.c.bf16 %v4860, %v4860
    %v4863 = vpack.c.bf16 %v4861, %v4861
    %s4864 = scalar_lea.vmem [#allocation16], 256
    %v4865 = vld [vmem:[%s4864] sm:$0xf]
    %v4866 = vld [vmem:[%s4864 + $0x4] sm:$0xf]
    %v4867 = vld [vmem:[%s4864 + $0x8] sm:$0xf]
    %v4868 = vld [vmem:[%s4864 + $0xc] sm:$0xf]
    %v4869 = vld [vmem:[%s4864 + $0x10] sm:$0xf]
    %v4870 = vld [vmem:[%s4864 + $0x14] sm:$0xf]
    %v4871 = vld [vmem:[%s4864 + $0x18] sm:$0xf]
    %v4872 = vld [vmem:[%s4864 + $0x1c] sm:$0xf]
    %v4873 = vld [vmem:[%s4864 + $0x20] sm:$0xf]
    %v4874 = vld [vmem:[%s4864 + $0x24] sm:$0xf]
    %v4875 = vld [vmem:[%s4864 + $0x28] sm:$0xf]
    %v4876 = vld [vmem:[%s4864 + $0x2c] sm:$0xf]
    %v4877 = vld [vmem:[%s4864 + $0x30] sm:$0xf]
    %v4878 = vld [vmem:[%s4864 + $0x34] sm:$0xf]
    %v4879 = vld [vmem:[%s4864 + $0x38] sm:$0xf]
    %v4880 = vld [vmem:[%s4864 + $0x3c] sm:$0xf]
    %v4881 = vld [vmem:[%s4864 + $0x40] sm:$0xf]
    %v4882 = vld [vmem:[%s4864 + $0x44] sm:$0xf]
    %v4883 = vld [vmem:[%s4864 + $0x48] sm:$0xf]
    %v4884 = vld [vmem:[%s4864 + $0x4c] sm:$0xf]
    %v4885 = vld [vmem:[%s4864 + $0x50] sm:$0xf]
    %v4886 = vld [vmem:[%s4864 + $0x54] sm:$0xf]
    %v4887 = vld [vmem:[%s4864 + $0x58] sm:$0xf]
    %v4888 = vld [vmem:[%s4864 + $0x5c] sm:$0xf]
    %v4889 = vld [vmem:[%s4864 + $0x60] sm:$0xf]
    %v4890 = vld [vmem:[%s4864 + $0x64] sm:$0xf]
    %v4891 = vld [vmem:[%s4864 + $0x68] sm:$0xf]
    %v4892 = vld [vmem:[%s4864 + $0x6c] sm:$0xf]
    %v4893 = vld [vmem:[%s4864 + $0x70] sm:$0xf]
    %v4894 = vld [vmem:[%s4864 + $0x74] sm:$0xf]
    %v4895 = vld [vmem:[%s4864 + $0x78] sm:$0xf]
    %v4896 = vld [vmem:[%s4864 + $0x7c] sm:$0xf]
    %v4929 = vunpack.c.l.b16 %v4865
    %v4930 = vunpack.c.l.b16 %v4866
    %v4931 = vunpack.c.l.b16 %v4867
    %v4932 = vunpack.c.l.b16 %v4868
    %v4933 = vunpack.c.l.b16 %v4869
    %v4934 = vunpack.c.l.b16 %v4870
    %v4935 = vunpack.c.l.b16 %v4871
    %v4936 = vunpack.c.l.b16 %v4872
    %v4937 = vunpack.c.l.b16 %v4873
    %v4938 = vunpack.c.l.b16 %v4874
    %v4939 = vunpack.c.l.b16 %v4875
    %v4940 = vunpack.c.l.b16 %v4876
    %v4941 = vunpack.c.l.b16 %v4877
    %v4942 = vunpack.c.l.b16 %v4878
    %v4943 = vunpack.c.l.b16 %v4879
    %v4944 = vunpack.c.l.b16 %v4880
    %v4945 = vunpack.c.l.b16 %v4881
    %v4946 = vunpack.c.l.b16 %v4882
    %v4947 = vunpack.c.l.b16 %v4883
    %v4948 = vunpack.c.l.b16 %v4884
    %v4949 = vunpack.c.l.b16 %v4885
    %v4950 = vunpack.c.l.b16 %v4886
    %v4951 = vunpack.c.l.b16 %v4887
    %v4952 = vunpack.c.l.b16 %v4888
    %v4953 = vunpack.c.l.b16 %v4889
    %v4954 = vunpack.c.l.b16 %v4890
    %v4955 = vunpack.c.l.b16 %v4891
    %v4956 = vunpack.c.l.b16 %v4892
    %v4957 = vunpack.c.l.b16 %v4893
    %v4958 = vunpack.c.l.b16 %v4894
    %v4959 = vunpack.c.l.b16 %v4895
    %v4960 = vunpack.c.l.b16 %v4896
    %v4961 = vpack.c.b16 %v4930, %v4929
    %v4962 = vpack.c.b16 %v4932, %v4931
    %v4963 = vpack.c.b16 %v4934, %v4933
    %v4964 = vpack.c.b16 %v4936, %v4935
    %v4965 = vpack.c.b16 %v4938, %v4937
    %v4966 = vpack.c.b16 %v4940, %v4939
    %v4967 = vpack.c.b16 %v4942, %v4941
    %v4968 = vpack.c.b16 %v4944, %v4943
    %v4969 = vpack.c.b16 %v4946, %v4945
    %v4970 = vpack.c.b16 %v4948, %v4947
    %v4971 = vpack.c.b16 %v4950, %v4949
    %v4972 = vpack.c.b16 %v4952, %v4951
    %v4973 = vpack.c.b16 %v4954, %v4953
    %v4974 = vpack.c.b16 %v4956, %v4955
    %v4975 = vpack.c.b16 %v4958, %v4957
    %v4976 = vpack.c.b16 %v4960, %v4959
    %4993 = vmatprep.subr.bf16.mxu0 0
    %4994 = vmatpush1.bf16.msra.mxu0 %v4961
    %4995 = vmatprep.subr.bf16.mxu0 0
    %4996 = vmatpush1.bf16.msra.mxu0 %v4962
    %4997 = vmatprep.subr.bf16.mxu0 0
    %4998 = vmatpush1.bf16.msra.mxu0 %v4963
    %4999 = vmatprep.subr.bf16.mxu0 0
    %5000 = vmatpush1.bf16.msra.mxu0 %v4964
    %5001 = vmatprep.subr.bf16.mxu0 0
    %5002 = vmatpush1.bf16.msra.mxu0 %v4965
    %5003 = vmatprep.subr.bf16.mxu0 0
    %5004 = vmatpush1.bf16.msra.mxu0 %v4966
    %5005 = vmatprep.subr.bf16.mxu0 0
    %5006 = vmatpush1.bf16.msra.mxu0 %v4967
    %5007 = vmatprep.subr.bf16.mxu0 0
    %5008 = vmatpush1.bf16.msra.mxu0 %v4968
    %5009 = vmatprep.subr.bf16.mxu0 0
    %5010 = vmatpush1.bf16.msra.mxu0 %v4969
    %5011 = vmatprep.subr.bf16.mxu0 0
    %5012 = vmatpush1.bf16.msra.mxu0 %v4970
    %5013 = vmatprep.subr.bf16.mxu0 0
    %5014 = vmatpush1.bf16.msra.mxu0 %v4971
    %5015 = vmatprep.subr.bf16.mxu0 0
    %5016 = vmatpush1.bf16.msra.mxu0 %v4972
    %5017 = vmatprep.subr.bf16.mxu0 0
    %5018 = vmatpush1.bf16.msra.mxu0 %v4973
    %5019 = vmatprep.subr.bf16.mxu0 0
    %5020 = vmatpush1.bf16.msra.mxu0 %v4974
    %5021 = vmatprep.subr.bf16.mxu0 0
    %5022 = vmatpush1.bf16.msra.mxu0 %v4975
    %5023 = vmatprep.subr.bf16.mxu0 0
    %5024 = vmatpush1.bf16.msra.mxu0 %v4976
    %5025 = vmatprep.mubr.bf16.mxu0 %v4863
    %5026 = vmatmul.mubr.bf16.gmra.mrb[0].mxu0 %v4862
    %v5027 = vpop.f32.mrb[0].mxu0
    %v5028 = vadd.f32 0.0, %v5027
    %v5029 = vpop.f32.mrb[0].mxu0
    %v5030 = vpop.f32.mrb[0].mxu0
    %v5031 = vpop.f32.mrb[0].mxu0
    %5032 = vdwg.mxu0
    %v5033 = vadd.f32 %v4857, %v5028
    %v5034 = vmul.f32 %v4680, %v4860
    %v5035 = vmul.f32 %v4681, %v4861
    %v5036 = vsub.f32 %v5034, %v4684
    %v5037 = vsub.f32 %v5035, %v4685
    %v5038 = vpack.c.bf16 %v5036, %v5036
    %v5039 = vpack.c.bf16 %v5037, %v5037
    %s5040 = scalar_lea.vmem [#allocation16], 384
    %v5041 = vld [vmem:[%s5040] sm:$0xf]
    %v5042 = vld [vmem:[%s5040 + $0x4] sm:$0xf]
    %v5043 = vld [vmem:[%s5040 + $0x8] sm:$0xf]
    %v5044 = vld [vmem:[%s5040 + $0xc] sm:$0xf]
    %v5045 = vld [vmem:[%s5040 + $0x10] sm:$0xf]
    %v5046 = vld [vmem:[%s5040 + $0x14] sm:$0xf]
    %v5047 = vld [vmem:[%s5040 + $0x18] sm:$0xf]
    %v5048 = vld [vmem:[%s5040 + $0x1c] sm:$0xf]
    %v5049 = vld [vmem:[%s5040 + $0x20] sm:$0xf]
    %v5050 = vld [vmem:[%s5040 + $0x24] sm:$0xf]
    %v5051 = vld [vmem:[%s5040 + $0x28] sm:$0xf]
    %v5052 = vld [vmem:[%s5040 + $0x2c] sm:$0xf]
    %v5053 = vld [vmem:[%s5040 + $0x30] sm:$0xf]
    %v5054 = vld [vmem:[%s5040 + $0x34] sm:$0xf]
    %v5055 = vld [vmem:[%s5040 + $0x38] sm:$0xf]
    %v5056 = vld [vmem:[%s5040 + $0x3c] sm:$0xf]
    %v5057 = vld [vmem:[%s5040 + $0x40] sm:$0xf]
    %v5058 = vld [vmem:[%s5040 + $0x44] sm:$0xf]
    %v5059 = vld [vmem:[%s5040 + $0x48] sm:$0xf]
    %v5060 = vld [vmem:[%s5040 + $0x4c] sm:$0xf]
    %v5061 = vld [vmem:[%s5040 + $0x50] sm:$0xf]
    %v5062 = vld [vmem:[%s5040 + $0x54] sm:$0xf]
    %v5063 = vld [vmem:[%s5040 + $0x58] sm:$0xf]
    %v5064 = vld [vmem:[%s5040 + $0x5c] sm:$0xf]
    %v5065 = vld [vmem:[%s5040 + $0x60] sm:$0xf]
    %v5066 = vld [vmem:[%s5040 + $0x64] sm:$0xf]
    %v5067 = vld [vmem:[%s5040 + $0x68] sm:$0xf]
    %v5068 = vld [vmem:[%s5040 + $0x6c] sm:$0xf]
    %v5069 = vld [vmem:[%s5040 + $0x70] sm:$0xf]
    %v5070 = vld [vmem:[%s5040 + $0x74] sm:$0xf]
    %v5071 = vld [vmem:[%s5040 + $0x78] sm:$0xf]
    %v5072 = vld [vmem:[%s5040 + $0x7c] sm:$0xf]
    %v5105 = vunpack.c.l.b16 %v5041
    %v5106 = vunpack.c.l.b16 %v5042
    %v5107 = vunpack.c.l.b16 %v5043
    %v5108 = vunpack.c.l.b16 %v5044
    %v5109 = vunpack.c.l.b16 %v5045
    %v5110 = vunpack.c.l.b16 %v5046
    %v5111 = vunpack.c.l.b16 %v5047
    %v5112 = vunpack.c.l.b16 %v5048
    %v5113 = vunpack.c.l.b16 %v5049
    %v5114 = vunpack.c.l.b16 %v5050
    %v5115 = vunpack.c.l.b16 %v5051
    %v5116 = vunpack.c.l.b16 %v5052
    %v5117 = vunpack.c.l.b16 %v5053
    %v5118 = vunpack.c.l.b16 %v5054
    %v5119 = vunpack.c.l.b16 %v5055
    %v5120 = vunpack.c.l.b16 %v5056
    %v5121 = vunpack.c.l.b16 %v5057
    %v5122 = vunpack.c.l.b16 %v5058
    %v5123 = vunpack.c.l.b16 %v5059
    %v5124 = vunpack.c.l.b16 %v5060
    %v5125 = vunpack.c.l.b16 %v5061
    %v5126 = vunpack.c.l.b16 %v5062
    %v5127 = vunpack.c.l.b16 %v5063
    %v5128 = vunpack.c.l.b16 %v5064
    %v5129 = vunpack.c.l.b16 %v5065
    %v5130 = vunpack.c.l.b16 %v5066
    %v5131 = vunpack.c.l.b16 %v5067
    %v5132 = vunpack.c.l.b16 %v5068
    %v5133 = vunpack.c.l.b16 %v5069
    %v5134 = vunpack.c.l.b16 %v5070
    %v5135 = vunpack.c.l.b16 %v5071
    %v5136 = vunpack.c.l.b16 %v5072
    %v5137 = vpack.c.b16 %v5106, %v5105
    %v5138 = vpack.c.b16 %v5108, %v5107
    %v5139 = vpack.c.b16 %v5110, %v5109
    %v5140 = vpack.c.b16 %v5112, %v5111
    %v5141 = vpack.c.b16 %v5114, %v5113
    %v5142 = vpack.c.b16 %v5116, %v5115
    %v5143 = vpack.c.b16 %v5118, %v5117
    %v5144 = vpack.c.b16 %v5120, %v5119
    %v5145 = vpack.c.b16 %v5122, %v5121
    %v5146 = vpack.c.b16 %v5124, %v5123
    %v5147 = vpack.c.b16 %v5126, %v5125
    %v5148 = vpack.c.b16 %v5128, %v5127
    %v5149 = vpack.c.b16 %v5130, %v5129
    %v5150 = vpack.c.b16 %v5132, %v5131
    %v5151 = vpack.c.b16 %v5134, %v5133
    %v5152 = vpack.c.b16 %v5136, %v5135
    %5169 = vmatprep.subr.bf16.mxu0 0
    %5170 = vmatpush1.bf16.msra.mxu0 %v5137
    %5171 = vmatprep.subr.bf16.mxu0 0
    %5172 = vmatpush1.bf16.msra.mxu0 %v5138
    %5173 = vmatprep.subr.bf16.mxu0 0
    %5174 = vmatpush1.bf16.msra.mxu0 %v5139
    %5175 = vmatprep.subr.bf16.mxu0 0
    %5176 = vmatpush1.bf16.msra.mxu0 %v5140
    %5177 = vmatprep.subr.bf16.mxu0 0
    %5178 = vmatpush1.bf16.msra.mxu0 %v5141
    %5179 = vmatprep.subr.bf16.mxu0 0
    %5180 = vmatpush1.bf16.msra.mxu0 %v5142
    %5181 = vmatprep.subr.bf16.mxu0 0
    %5182 = vmatpush1.bf16.msra.mxu0 %v5143
    %5183 = vmatprep.subr.bf16.mxu0 0
    %5184 = vmatpush1.bf16.msra.mxu0 %v5144
    %5185 = vmatprep.subr.bf16.mxu0 0
    %5186 = vmatpush1.bf16.msra.mxu0 %v5145
    %5187 = vmatprep.subr.bf16.mxu0 0
    %5188 = vmatpush1.bf16.msra.mxu0 %v5146
    %5189 = vmatprep.subr.bf16.mxu0 0
    %5190 = vmatpush1.bf16.msra.mxu0 %v5147
    %5191 = vmatprep.subr.bf16.mxu0 0
    %5192 = vmatpush1.bf16.msra.mxu0 %v5148
    %5193 = vmatprep.subr.bf16.mxu0 0
    %5194 = vmatpush1.bf16.msra.mxu0 %v5149
    %5195 = vmatprep.subr.bf16.mxu0 0
    %5196 = vmatpush1.bf16.msra.mxu0 %v5150
    %5197 = vmatprep.subr.bf16.mxu0 0
    %5198 = vmatpush1.bf16.msra.mxu0 %v5151
    %5199 = vmatprep.subr.bf16.mxu0 0
    %5200 = vmatpush1.bf16.msra.mxu0 %v5152
    %5201 = vmatprep.mubr.bf16.mxu0 %v5039
    %5202 = vmatmul.mubr.bf16.gmra.mrb[0].mxu0 %v5038
    %v5203 = vpop.f32.mrb[0].mxu0
    %v5204 = vadd.f32 0.0, %v5203
    %v5205 = vpop.f32.mrb[0].mxu0
    %v5206 = vpop.f32.mrb[0].mxu0
    %v5207 = vpop.f32.mrb[0].mxu0
    %5208 = vdwg.mxu0
    %v5209 = vadd.f32 %v5033, %v5204
    %5210 = vst [vmem:[#allocation19] sm:$0x3] %v5209
    // Predicated region
    $region86: #{chebynet_forward.1} parent=1 // pred_check
      _
    $region87: #{chebynet_forward.1} parent=1 // pred_check_branch
      %5212 = sbr.rel (0) target = $region89
    $region88: #{chebynet_forward.1} parent=1 // pred_region
      %s5214 = ssub.s32 32, 32
      %5215 = vsyncadd [#allocation4], %s5214
      %s5217 = sshll.u32 [#allocation19], 4
      %s5218 = int_to_ptr.vmem [resolvable:$true] %s5217
      %5220 = dma.vmem_to_hbm [thread:$0]  %s5218, 32, %s11, [#allocation4]
    $region89: #{chebynet_forward.1} parent=1 // pred_fallthru
      _
    // Predicated region
    $region90: #{chebynet_forward.1} parent=1 // pred_check
      _
    $region91: #{chebynet_forward.1} parent=1 // pred_check_branch
      %5222 = sbr.rel (0) target = $region93
    $region92: #{chebynet_forward.1} parent=1 // pred_region
      %5223 = dma.done [#allocation4], 32
    $region93: #{chebynet_forward.1} parent=1 // pred_fallthru
      _
    %5224 = vsyncpa [#allocation3], 1
    %5225 = vsyncpa [#allocation6], 1
    %5226 = vsyncpa [#allocation9], 1
    %5227 = vsyncpa [#allocation12], 1
    %5228 = vsyncpa [#allocation15], 1
    %5229 = vsyncpa [#allocation18], 1
    %5230 = vsyncpa [#allocation4], 1

</llo_original>
